<compile_context>
chip_gen: v7x
topology: tpu7x:2x2x1
jax: 0.10.0
libtpu: 0.0.40
codegen_flags: <defaults>
</compile_context>

<pallas_src>
import jax
import jax.numpy as jnp
from jax.experimental import pallas as pl
from jax.experimental.pallas import tpu as pltpu

# ---------------- configuration (small shapes consistent with the module) ---------------
B = 2            # batch
S = 8            # seq_len
VOCAB = 64       # stand-in vocab for the BERT token embedding
BERT_DIM = 1024  # bert-large hidden size (fixed by proj_bert = Linear(1024, d_model))
D_MODEL = 128    # mamba_args['d_model']
D_STATE = 16
D_CONV = 4
EXPAND = 2
HEADDIM = 64
D_INNER = EXPAND * D_MODEL                                   # 256
N_HEADS = D_INNER // HEADDIM                                 # 4
N_GROUPS = 1
CONV_DIM = D_INNER + 2 * N_GROUPS * D_STATE                  # 288
D_IN_PROJ = 2 * D_INNER + 2 * N_GROUPS * D_STATE + N_HEADS   # 548
EMBED_DIM = 256

NEG_INF = -1e30


def _stable_softplus(x):
    # log(1 + exp(x)) without overflow for large x.
    return jnp.where(x > 20.0, x, jnp.log(1.0 + jnp.exp(jnp.minimum(x, 20.0))))


# ------------------------------ fused encoder kernel ------------------------------------
def _fused_encoder_kernel(
        bert_ref,                        # (B*S, 1024) bf16
        w1_ref, b1_ref,                  # proj_bert: (1024, 128) bf16, (1, 128) f32
        wz_ref, bz_ref,                  # in_proj -> z:   (128, 256) bf16, (1, 256) f32
        wxbc_ref, bxbc_ref,              # in_proj -> xBC: (128, 288) bf16, (1, 288) f32
        wdt_ref, bdt_ref,                # in_proj -> dt:  (128, 4)   bf16, (1, 4)   f32
        convw_ref, convb_ref,            # (D_CONV, 288) f32, (1, 288) f32
        dtb_ref, alog_ref, dpar_ref,     # (1, H) f32 each
        rmsw_ref,                        # (1, 256) f32
        wo_ref, bo_ref,                  # out_proj: (256, 128) bf16, (1, 128) f32
        poolw_ref, poolb_ref,            # (1, 128) f32, (1, 1) f32
        wp_ref, bp_ref,                  # projection: (128, 256) bf16, (1, 256) f32
        o_ref,                           # out: (B, EMBED_DIM) f32
        y_scr,                           # VMEM scratch (B, S, D_INNER) f32
):
    f32 = jnp.float32
    bf16 = jnp.bfloat16
    M = B * S
    H, P = N_HEADS, HEADDIM

    # ---- 1) proj_bert: Linear(1024 -> d_model), single MXU pass (no K-grid) ----
    x = jnp.dot(bert_ref[...], w1_ref[...], preferred_element_type=f32) + b1_ref[...]
    x_bf = x.astype(bf16)

    # ---- 2) in_proj as three lane-aligned slabs ----
    z = jnp.dot(x_bf, wz_ref[...], preferred_element_type=f32) + bz_ref[...]        # (M, 256)
    xBC = jnp.dot(x_bf, wxbc_ref[...], preferred_element_type=f32) + bxbc_ref[...]  # (M, 288)
    dt = jnp.dot(x_bf, wdt_ref[...], preferred_element_type=f32) + bdt_ref[...]     # (M, H)

    # ---- 3) causal depthwise conv1d (kernel=D_CONV) + SiLU; padding folded in-kernel ----
    xBC3 = xBC.reshape(B, S, CONV_DIM)
    xpad = jnp.concatenate(
        [jnp.zeros((B, D_CONV - 1, CONV_DIM), f32), xBC3], axis=1)                  # (B, S+3, C)
    wv = convw_ref[...]
    acc = jnp.zeros((B, S, CONV_DIM), f32)
    for k in range(D_CONV):                                                          # static unroll
        acc = acc + xpad[:, k:k + S, :] * wv[k][None, None, :]
    acc = acc + convb_ref[...][None, :, :]
    xBC_c = acc * jax.nn.sigmoid(acc)                                                # SiLU

    xh = xBC_c[:, :, :D_INNER]                                                       # (B, S, H*P)
    Bm = xBC_c[:, :, D_INNER:D_INNER + N_GROUPS * D_STATE]                           # (B, S, N)
    Cm = xBC_c[:, :, D_INNER + N_GROUPS * D_STATE:]                                  # (B, S, N)

    # ---- 4) SSD selective scan (exact quadratic / attention-like form) ----
    # y[b,t,h,:] = sum_{s<=t} exp(sum_{k=s+1..t} dt_k*A_h) * dt_s * (C_t.B_s) * x[b,s,h,:]
    #              + D_h * x[b,t,h,:]
    dtv = _stable_softplus(dt + dtb_ref[...])                                        # (M, H)
    dtv3 = dtv.reshape(B, S, H)
    Av = -jnp.exp(alog_ref[...])                                                     # (1, H)
    a = dtv3 * Av[None, :, :]                                                        # (B, S, H)

    row = jax.lax.broadcasted_iota(jnp.int32, (S, S), 0)
    col = jax.lax.broadcasted_iota(jnp.int32, (S, S), 1)
    causal = col <= row                                                              # lower-tri incl.
    tril_b = jnp.broadcast_to(causal.astype(f32)[None, :, :], (B, S, S))

    # inclusive cumsum over time for ALL heads at once (one masked matmul on the MXU)
    cum = jnp.einsum('bts,bsh->bth', tril_b, a, preferred_element_type=f32)          # (B, T, H)
    # C_t . B_s, shared by all heads
    CB = jnp.einsum('btn,bsn->bts', Cm, Bm, preferred_element_type=f32)              # (B, T, S)

    Dv = dpar_ref[...]                                                               # (1, H)
    # TODO(synk): for production seq lengths, build the (B,H,T,S) decay in one shot and use a
    # head-batched einsum; at S=8 the per-head temporaries are negligible (256 floats each).
    for h in range(H):                           # static unroll; direct VMEM-scratch stores
        cum_h = cum[:, :, h]                                                         # (B, T)
        dt_h = dtv3[:, :, h]                                                         # (B, S)
        diff = cum_h[:, :, None] - cum_h[:, None, :]                                 # (B, T, S)
        Mmat = jnp.exp(jnp.where(causal[None, :, :], diff, NEG_INF))
        Mmat = Mmat * CB * dt_h[:, None, :]
        x_h = xh[:, :, h * P:(h + 1) * P]                                            # (B, S, P)
        y_h = jnp.einsum('bts,bsp->btp', Mmat, x_h, preferred_element_type=f32)
        y_scr[:, :, h * P:(h + 1) * P] = y_h + Dv[0, h] * x_h                        # no concat

    y2 = y_scr[...].reshape(M, D_INNER)

    # ---- 5) gated RMSNorm: norm(y * silu(z)) * w ----
    u = y2 * (z * jax.nn.sigmoid(z))
    var = jnp.mean(u * u, axis=-1, keepdims=True)
    un = u * jax.lax.rsqrt(var + 1e-5) * rmsw_ref[...]

    # ---- 6) out_proj: Linear(d_inner -> d_model) ----
    emb = jnp.dot(un.astype(bf16), wo_ref[...], preferred_element_type=f32) + bo_ref[...]
    emb3 = emb.reshape(B, S, D_MODEL)

    # ---- 7) AttentionPooling: softmax(Linear(emb), dim=seq); weighted sum over seq ----
    scores = jnp.sum(emb3 * poolw_ref[...][None, :, :], axis=-1, keepdims=True) \
        + poolb_ref[...][None, :, :]                                                 # (B, S, 1)
    mmax = jnp.max(scores, axis=1, keepdims=True)
    ex = jnp.exp(scores - mmax)
    wts = ex / jnp.sum(ex, axis=1, keepdims=True)
    pooled = jnp.sum(emb3 * wts, axis=1)                                             # (B, D_MODEL)

    # ---- 8) Dropout(0.1): inference identity. projection: Linear(d_model -> embed_dim) ----
    out = jnp.dot(pooled.astype(bf16), wp_ref[...], preferred_element_type=f32) + bp_ref[...]
    o_ref[...] = out.astype(o_ref.dtype)


# --------------------------------- parameters -------------------------------------------
def init_params(key):
    ks = jax.random.split(key, 10)
    std = 0.02
    p = {}
    p["tok_emb"] = jax.random.normal(ks[0], (VOCAB, BERT_DIM), jnp.float32) * std
    p["proj_bert_w"] = jax.random.normal(ks[1], (BERT_DIM, D_MODEL), jnp.float32) * std
    p["proj_bert_b"] = jnp.zeros((D_MODEL,), jnp.float32)
    p["in_proj_w"] = jax.random.normal(ks[2], (D_MODEL, D_IN_PROJ), jnp.float32) * std
    p["in_proj_b"] = jnp.zeros((D_IN_PROJ,), jnp.float32)
    p["conv_w"] = jax.random.normal(ks[3], (D_CONV, CONV_DIM), jnp.float32) * 0.1
    p["conv_b"] = jnp.zeros((CONV_DIM,), jnp.float32)
    p["dt_bias"] = jax.random.normal(ks[4], (N_HEADS,), jnp.float32) * 0.1
    p["A_log"] = jnp.log(jnp.arange(1, N_HEADS + 1, dtype=jnp.float32))
    p["D"] = jnp.ones((N_HEADS,), jnp.float32)
    p["rms_w"] = jnp.ones((D_INNER,), jnp.float32)
    p["out_proj_w"] = jax.random.normal(ks[5], (D_INNER, D_MODEL), jnp.float32) * std
    p["out_proj_b"] = jnp.zeros((D_MODEL,), jnp.float32)
    p["pool_w"] = jax.random.normal(ks[6], (D_MODEL,), jnp.float32) * std
    p["pool_b"] = jnp.zeros((), jnp.float32)
    p["proj_w"] = jax.random.normal(ks[7], (D_MODEL, EMBED_DIM), jnp.float32) * std
    p["proj_b"] = jnp.zeros((EMBED_DIM,), jnp.float32)
    return p


# ----------------------------------- forward --------------------------------------------
@jax.jit
def forward(p, input_ids):
    Bb, Sl = input_ids.shape
    attention_mask = (input_ids != 0).astype(jnp.int32)  # as in the reference forward
    del attention_mask  # TODO(synk): frozen bert-large-uncased backbone (and its use of the
    # attention mask) is replaced by a deterministic token-embedding stand-in producing
    # (B, S, 1024) hidden states; loading the pretrained transformer is out of scope here.
    bert_out = jnp.take(p["tok_emb"], input_ids, axis=0).reshape(Bb * Sl, BERT_DIM)

    bf16 = jnp.bfloat16
    # Split in_proj into lane-aligned column blocks (mathematically identical to the
    # single 548-wide Linear) and cast all matmul operands to bf16 (f32 accumulation).
    wz = p["in_proj_w"][:, :D_INNER]
    wxbc = p["in_proj_w"][:, D_INNER:D_INNER + CONV_DIM]
    wdt = p["in_proj_w"][:, D_INNER + CONV_DIM:]
    bz = p["in_proj_b"][:D_INNER]
    bxbc = p["in_proj_b"][D_INNER:D_INNER + CONV_DIM]
    bdt = p["in_proj_b"][D_INNER + CONV_DIM:]

    args = (
        bert_out.astype(bf16),
        p["proj_bert_w"].astype(bf16), p["proj_bert_b"].reshape(1, D_MODEL),
        wz.astype(bf16), bz.reshape(1, D_INNER),
        wxbc.astype(bf16), bxbc.reshape(1, CONV_DIM),
        wdt.astype(bf16), bdt.reshape(1, N_HEADS),
        p["conv_w"], p["conv_b"].reshape(1, CONV_DIM),
        p["dt_bias"].reshape(1, N_HEADS),
        p["A_log"].reshape(1, N_HEADS),
        p["D"].reshape(1, N_HEADS),
        p["rms_w"].reshape(1, D_INNER),
        p["out_proj_w"].astype(bf16), p["out_proj_b"].reshape(1, D_MODEL),
        p["pool_w"].reshape(1, D_MODEL), p["pool_b"].reshape(1, 1),
        p["proj_w"].astype(bf16), p["proj_b"].reshape(1, EMBED_DIM),
    )

    # Single fused kernel; everything (weights + activations, < 1 MB) stays VMEM-resident.
    # TODO(synk): for large batches, add a "parallel" grid axis over batch (v7x dual-TC) and
    # tile M to >=128 rows per MXU op; at B*S=16 a single invocation is optimal.
    return pl.pallas_call(
        _fused_encoder_kernel,
        out_shape=jax.ShapeDtypeStruct((Bb, EMBED_DIM), jnp.float32),
        scratch_shapes=[pltpu.VMEM((Bb, Sl, D_INNER), jnp.float32)],
    )(*args)


# ------------------------------------ main -----------------------------------------------
if __name__ == "__main__":
    key = jax.random.PRNGKey(0)
    pkey, dkey = jax.random.split(key)
    params = init_params(pkey)
    input_ids = jax.random.randint(dkey, (B, S), 1, VOCAB, dtype=jnp.int32)

    out = forward(params, input_ids)
    out = jax.block_until_ready(out)

    assert out.shape == (B, EMBED_DIM), out.shape
    assert bool(jnp.all(jnp.isfinite(out)))
    print("KERNEL_OK")
</pallas_src>

<mosaic_0001>
module attributes {stable_mosaic.version = 11 : i64} {
  func.func @_fused_encoder_kernel(%arg0: memref<16x1024xbf16, #tpu.memory_space<vmem>>, %arg1: memref<1024x128xbf16, #tpu.memory_space<vmem>>, %arg2: memref<1x128xf32, #tpu.memory_space<vmem>>, %arg3: memref<128x256xbf16, #tpu.memory_space<vmem>>, %arg4: memref<1x256xf32, #tpu.memory_space<vmem>>, %arg5: memref<128x288xbf16, #tpu.memory_space<vmem>>, %arg6: memref<1x288xf32, #tpu.memory_space<vmem>>, %arg7: memref<128x4xbf16, #tpu.memory_space<vmem>>, %arg8: memref<1x4xf32, #tpu.memory_space<vmem>>, %arg9: memref<4x288xf32, #tpu.memory_space<vmem>>, %arg10: memref<1x288xf32, #tpu.memory_space<vmem>>, %arg11: memref<1x4xf32, #tpu.memory_space<vmem>>, %arg12: memref<1x4xf32, #tpu.memory_space<vmem>>, %arg13: memref<1x4xf32, #tpu.memory_space<vmem>>, %arg14: memref<1x256xf32, #tpu.memory_space<vmem>>, %arg15: memref<256x128xbf16, #tpu.memory_space<vmem>>, %arg16: memref<1x128xf32, #tpu.memory_space<vmem>>, %arg17: memref<1x128xf32, #tpu.memory_space<vmem>>, %arg18: memref<1x1xf32, #tpu.memory_space<vmem>>, %arg19: memref<128x256xbf16, #tpu.memory_space<vmem>>, %arg20: memref<1x256xf32, #tpu.memory_space<vmem>>, %arg21: memref<2x256xf32, #tpu.memory_space<vmem>>, %arg22: memref<2x8x256xf32, #tpu.memory_space<vmem>>) attributes {dimension_semantics = [], scalar_prefetch = 0 : i64, scratch_operands = 1 : i64, tpu.core_type = #tpu.core_type<tc>} {
    %c0 = arith.constant 0 : index
    %c0_0 = arith.constant 0 : index
    %0 = vector.load %arg0[%c0, %c0_0] : memref<16x1024xbf16, #tpu.memory_space<vmem>>, vector<16x1024xbf16>
    %c0_1 = arith.constant 0 : index
    %c0_2 = arith.constant 0 : index
    %1 = vector.load %arg1[%c0_1, %c0_2] : memref<1024x128xbf16, #tpu.memory_space<vmem>>, vector<1024x128xbf16>
    %cst = arith.constant dense<0.000000e+00> : vector<16x128xf32>
    %2 = tpu.matmul %0, %1, %cst {dimension_numbers = #tpu.dot_dimension_numbers<[1], [0], [0], [1], [0, 0, 1, 1], [], []>} : vector<16x1024xbf16>, vector<1024x128xbf16>, vector<16x128xf32> -> vector<16x128xf32>
    %c0_3 = arith.constant 0 : index
    %c0_4 = arith.constant 0 : index
    %3 = vector.load %arg2[%c0_3, %c0_4] : memref<1x128xf32, #tpu.memory_space<vmem>>, vector<1x128xf32>
    %4 = vector.broadcast %3 : vector<1x128xf32> to vector<16x128xf32>
    %5 = arith.addf %2, %4 : vector<16x128xf32>
    %6 = arith.truncf %5 : vector<16x128xf32> to vector<16x128xbf16>
    %c0_5 = arith.constant 0 : index
    %c0_6 = arith.constant 0 : index
    %7 = vector.load %arg3[%c0_5, %c0_6] : memref<128x256xbf16, #tpu.memory_space<vmem>>, vector<128x256xbf16>
    %cst_7 = arith.constant dense<0.000000e+00> : vector<16x256xf32>
    %8 = tpu.matmul %6, %7, %cst_7 {dimension_numbers = #tpu.dot_dimension_numbers<[1], [0], [0], [1], [0, 0, 1, 1], [], []>} : vector<16x128xbf16>, vector<128x256xbf16>, vector<16x256xf32> -> vector<16x256xf32>
    %c0_8 = arith.constant 0 : index
    %c0_9 = arith.constant 0 : index
    %9 = vector.load %arg4[%c0_8, %c0_9] : memref<1x256xf32, #tpu.memory_space<vmem>>, vector<1x256xf32>
    %10 = vector.broadcast %9 : vector<1x256xf32> to vector<16x256xf32>
    %11 = arith.addf %8, %10 : vector<16x256xf32>
    %c0_10 = arith.constant 0 : index
    %c0_11 = arith.constant 0 : index
    %12 = vector.load %arg5[%c0_10, %c0_11] : memref<128x288xbf16, #tpu.memory_space<vmem>>, vector<128x288xbf16>
    %cst_12 = arith.constant dense<0.000000e+00> : vector<16x288xf32>
    %13 = tpu.matmul %6, %12, %cst_12 {dimension_numbers = #tpu.dot_dimension_numbers<[1], [0], [0], [1], [0, 0, 1, 1], [], []>} : vector<16x128xbf16>, vector<128x288xbf16>, vector<16x288xf32> -> vector<16x288xf32>
    %c0_13 = arith.constant 0 : index
    %c0_14 = arith.constant 0 : index
    %14 = vector.load %arg6[%c0_13, %c0_14] : memref<1x288xf32, #tpu.memory_space<vmem>>, vector<1x288xf32>
    %15 = vector.broadcast %14 : vector<1x288xf32> to vector<16x288xf32>
    %16 = arith.addf %13, %15 : vector<16x288xf32>
    %c0_15 = arith.constant 0 : index
    %c0_16 = arith.constant 0 : index
    %17 = vector.load %arg7[%c0_15, %c0_16] : memref<128x4xbf16, #tpu.memory_space<vmem>>, vector<128x4xbf16>
    %cst_17 = arith.constant dense<0.000000e+00> : vector<16x4xf32>
    %18 = tpu.matmul %6, %17, %cst_17 {dimension_numbers = #tpu.dot_dimension_numbers<[1], [0], [0], [1], [0, 0, 1, 1], [], []>} : vector<16x128xbf16>, vector<128x4xbf16>, vector<16x4xf32> -> vector<16x4xf32>
    %c0_18 = arith.constant 0 : index
    %c0_19 = arith.constant 0 : index
    %19 = vector.load %arg8[%c0_18, %c0_19] : memref<1x4xf32, #tpu.memory_space<vmem>>, vector<1x4xf32>
    %20 = vector.broadcast %19 : vector<1x4xf32> to vector<16x4xf32>
    %21 = arith.addf %18, %20 : vector<16x4xf32>
    %22 = vector.shape_cast %16 : vector<16x288xf32> to vector<2x8x288xf32>
    %cst_20 = arith.constant 0.000000e+00 : f32
    %23 = vector.broadcast %cst_20 : f32 to vector<2x3x288xf32>
    %24 = tpu.concatenate %23, %22 in 1 : vector<2x3x288xf32>, vector<2x8x288xf32> -> vector<2x11x288xf32>
    %c0_21 = arith.constant 0 : index
    %c0_22 = arith.constant 0 : index
    %25 = vector.load %arg9[%c0_21, %c0_22] : memref<4x288xf32, #tpu.memory_space<vmem>>, vector<4x288xf32>
    %cst_23 = arith.constant 0.000000e+00 : f32
    %26 = vector.broadcast %cst_23 : f32 to vector<2x8x288xf32>
    %27 = vector.extract_strided_slice %24 {offsets = [0, 0, 0], sizes = [2, 8, 288], strides = [1, 1, 1]} : vector<2x11x288xf32> to vector<2x8x288xf32>
    %28 = vector.extract_strided_slice %25 {offsets = [0, 0], sizes = [1, 288], strides = [1, 1]} : vector<4x288xf32> to vector<1x288xf32>
    %29 = vector.shape_cast %28 : vector<1x288xf32> to vector<288xf32>
    %30 = vector.shape_cast %29 : vector<288xf32> to vector<1x1x288xf32>
    %31 = vector.broadcast %30 : vector<1x1x288xf32> to vector<2x8x288xf32>
    %32 = arith.mulf %27, %31 : vector<2x8x288xf32>
    %33 = arith.addf %26, %32 : vector<2x8x288xf32>
    %34 = vector.extract_strided_slice %24 {offsets = [0, 1, 0], sizes = [2, 8, 288], strides = [1, 1, 1]} : vector<2x11x288xf32> to vector<2x8x288xf32>
    %35 = vector.extract_strided_slice %25 {offsets = [1, 0], sizes = [1, 288], strides = [1, 1]} : vector<4x288xf32> to vector<1x288xf32>
    %36 = vector.shape_cast %35 : vector<1x288xf32> to vector<288xf32>
    %37 = vector.shape_cast %36 : vector<288xf32> to vector<1x1x288xf32>
    %38 = vector.broadcast %37 : vector<1x1x288xf32> to vector<2x8x288xf32>
    %39 = arith.mulf %34, %38 : vector<2x8x288xf32>
    %40 = arith.addf %33, %39 : vector<2x8x288xf32>
    %41 = vector.extract_strided_slice %24 {offsets = [0, 2, 0], sizes = [2, 8, 288], strides = [1, 1, 1]} : vector<2x11x288xf32> to vector<2x8x288xf32>
    %42 = vector.extract_strided_slice %25 {offsets = [2, 0], sizes = [1, 288], strides = [1, 1]} : vector<4x288xf32> to vector<1x288xf32>
    %43 = vector.shape_cast %42 : vector<1x288xf32> to vector<288xf32>
    %44 = vector.shape_cast %43 : vector<288xf32> to vector<1x1x288xf32>
    %45 = vector.broadcast %44 : vector<1x1x288xf32> to vector<2x8x288xf32>
    %46 = arith.mulf %41, %45 : vector<2x8x288xf32>
    %47 = arith.addf %40, %46 : vector<2x8x288xf32>
    %48 = vector.extract_strided_slice %24 {offsets = [0, 3, 0], sizes = [2, 8, 288], strides = [1, 1, 1]} : vector<2x11x288xf32> to vector<2x8x288xf32>
    %49 = vector.extract_strided_slice %25 {offsets = [3, 0], sizes = [1, 288], strides = [1, 1]} : vector<4x288xf32> to vector<1x288xf32>
    %50 = vector.shape_cast %49 : vector<1x288xf32> to vector<288xf32>
    %51 = vector.shape_cast %50 : vector<288xf32> to vector<1x1x288xf32>
    %52 = vector.broadcast %51 : vector<1x1x288xf32> to vector<2x8x288xf32>
    %53 = arith.mulf %48, %52 : vector<2x8x288xf32>
    %54 = arith.addf %47, %53 : vector<2x8x288xf32>
    %c0_24 = arith.constant 0 : index
    %c0_25 = arith.constant 0 : index
    %55 = vector.load %arg10[%c0_24, %c0_25] : memref<1x288xf32, #tpu.memory_space<vmem>>, vector<1x288xf32>
    %56 = vector.shape_cast %55 : vector<1x288xf32> to vector<1x1x288xf32>
    %57 = vector.broadcast %56 : vector<1x1x288xf32> to vector<2x8x288xf32>
    %58 = arith.addf %54, %57 : vector<2x8x288xf32>
    %59 = arith.negf %58 : vector<2x8x288xf32>
    %60 = math.exp %59 : vector<2x8x288xf32>
    %cst_26 = arith.constant 1.000000e+00 : f32
    %61 = vector.broadcast %cst_26 : f32 to vector<2x8x288xf32>
    %62 = arith.addf %61, %60 : vector<2x8x288xf32>
    %63 = arith.divf %61, %62 : vector<2x8x288xf32>
    %64 = arith.mulf %58, %63 : vector<2x8x288xf32>
    %65 = vector.extract_strided_slice %64 {offsets = [0, 0, 0], sizes = [2, 8, 256], strides = [1, 1, 1]} : vector<2x8x288xf32> to vector<2x8x256xf32>
    %66 = vector.extract_strided_slice %64 {offsets = [0, 0, 256], sizes = [2, 8, 16], strides = [1, 1, 1]} : vector<2x8x288xf32> to vector<2x8x16xf32>
    %67 = vector.extract_strided_slice %64 {offsets = [0, 0, 272], sizes = [2, 8, 16], strides = [1, 1, 1]} : vector<2x8x288xf32> to vector<2x8x16xf32>
    %c0_27 = arith.constant 0 : index
    %c0_28 = arith.constant 0 : index
    %68 = vector.load %arg11[%c0_27, %c0_28] : memref<1x4xf32, #tpu.memory_space<vmem>>, vector<1x4xf32>
    %69 = vector.broadcast %68 : vector<1x4xf32> to vector<16x4xf32>
    %70 = arith.addf %21, %69 : vector<16x4xf32>
    %cst_29 = arith.constant 2.000000e+01 : f32
    %71 = vector.broadcast %cst_29 : f32 to vector<16x4xf32>
    %72 = arith.cmpf ogt, %70, %71 : vector<16x4xf32>
    %cst_30 = arith.constant 2.000000e+01 : f32
    %73 = vector.broadcast %cst_30 : f32 to vector<16x4xf32>
    %74 = arith.minimumf %70, %73 : vector<16x4xf32>
    %75 = math.exp %74 : vector<16x4xf32>
    %cst_31 = arith.constant 1.000000e+00 : f32
    %76 = vector.broadcast %cst_31 : f32 to vector<16x4xf32>
    %77 = arith.addf %76, %75 : vector<16x4xf32>
    %78 = math.log %77 : vector<16x4xf32>
    %79 = arith.select %72, %70, %78 : vector<16x4xi1>, vector<16x4xf32>
    %80 = vector.shape_cast %79 : vector<16x4xf32> to vector<2x8x4xf32>
    %c0_32 = arith.constant 0 : index
    %c0_33 = arith.constant 0 : index
    %81 = vector.load %arg12[%c0_32, %c0_33] : memref<1x4xf32, #tpu.memory_space<vmem>>, vector<1x4xf32>
    %82 = math.exp %81 : vector<1x4xf32>
    %cst_34 = arith.constant 0.000000e+00 : f32
    %83 = vector.broadcast %cst_34 : f32 to vector<1x4xf32>
    %84 = arith.subf %83, %82 : vector<1x4xf32>
    %85 = vector.shape_cast %84 : vector<1x4xf32> to vector<1x1x4xf32>
    %86 = vector.broadcast %85 : vector<1x1x4xf32> to vector<2x8x4xf32>
    %87 = arith.mulf %80, %86 : vector<2x8x4xf32>
    %88 = tpu.iota {dimensions = array<i32: 0>} : vector<8x8xi32>
    %89 = tpu.iota {dimensions = array<i32: 1>} : vector<8x8xi32>
    %90 = arith.cmpi sle, %89, %88 : vector<8x8xi32>
    %91 = arith.extui %90 : vector<8x8xi1> to vector<8x8xi32>
    %92 = arith.sitofp %91 : vector<8x8xi32> to vector<8x8xf32>
    %93 = vector.shape_cast %92 : vector<8x8xf32> to vector<1x8x8xf32>
    %94 = vector.shape_cast %93 : vector<1x8x8xf32> to vector<1x8x8xf32>
    %95 = vector.broadcast %94 : vector<1x8x8xf32> to vector<2x8x8xf32>
    "tpu.trace_start"() <{level = 10 : i32, message = "bts,bsh->bth"}> : () -> ()
    %cst_35 = arith.constant dense<0.000000e+00> : vector<2x8x4xf32>
    %96 = tpu.matmul %95, %87, %cst_35 {dimension_numbers = #tpu.dot_dimension_numbers<[2], [1], [1], [2], [0, 0, 0, 1, 1, 2], [0], [0]>} : vector<2x8x8xf32>, vector<2x8x4xf32>, vector<2x8x4xf32> -> vector<2x8x4xf32>
    "tpu.trace_stop"() : () -> ()
    "tpu.trace_start"() <{level = 10 : i32, message = "btn,bsn->bts"}> : () -> ()
    %cst_36 = arith.constant dense<0.000000e+00> : vector<2x8x8xf32>
    %97 = tpu.matmul %67, %66, %cst_36 {dimension_numbers = #tpu.dot_dimension_numbers<[2], [2], [1], [1], [0, 0, 0, 1, 1, 1], [0], [0]>} : vector<2x8x16xf32>, vector<2x8x16xf32>, vector<2x8x8xf32> -> vector<2x8x8xf32>
    "tpu.trace_stop"() : () -> ()
    %c0_37 = arith.constant 0 : index
    %c0_38 = arith.constant 0 : index
    %98 = vector.load %arg13[%c0_37, %c0_38] : memref<1x4xf32, #tpu.memory_space<vmem>>, vector<1x4xf32>
    %99 = vector.extract_strided_slice %96 {offsets = [0, 0, 0], sizes = [2, 8, 1], strides = [1, 1, 1]} : vector<2x8x4xf32> to vector<2x8x1xf32>
    %100 = vector.shape_cast %99 : vector<2x8x1xf32> to vector<2x8xf32>
    %101 = vector.extract_strided_slice %80 {offsets = [0, 0, 0], sizes = [2, 8, 1], strides = [1, 1, 1]} : vector<2x8x4xf32> to vector<2x8x1xf32>
    %102 = vector.shape_cast %101 : vector<2x8x1xf32> to vector<2x8xf32>
    %103 = vector.shape_cast %100 : vector<2x8xf32> to vector<2x8x1xf32>
    %104 = vector.shape_cast %100 : vector<2x8xf32> to vector<2x1x8xf32>
    %105 = vector.broadcast %103 : vector<2x8x1xf32> to vector<2x8x8xf32>
    %106 = vector.broadcast %104 : vector<2x1x8xf32> to vector<2x8x8xf32>
    %107 = arith.subf %105, %106 : vector<2x8x8xf32>
    %108 = vector.shape_cast %90 : vector<8x8xi1> to vector<1x8x8xi1>
    %cst_39 = arith.constant -1.000000e+30 : f32
    %109 = vector.shape_cast %108 : vector<1x8x8xi1> to vector<1x8x8xi1>
    %110 = vector.broadcast %109 : vector<1x8x8xi1> to vector<2x8x8xi1>
    %111 = vector.broadcast %cst_39 : f32 to vector<2x8x8xf32>
    %112 = arith.select %110, %107, %111 : vector<2x8x8xi1>, vector<2x8x8xf32>
    %113 = math.exp %112 : vector<2x8x8xf32>
    %114 = arith.mulf %113, %97 : vector<2x8x8xf32>
    %115 = vector.shape_cast %102 : vector<2x8xf32> to vector<2x1x8xf32>
    %116 = vector.broadcast %115 : vector<2x1x8xf32> to vector<2x8x8xf32>
    %117 = arith.mulf %114, %116 : vector<2x8x8xf32>
    %118 = vector.extract_strided_slice %65 {offsets = [0, 0, 0], sizes = [2, 8, 64], strides = [1, 1, 1]} : vector<2x8x256xf32> to vector<2x8x64xf32>
    "tpu.trace_start"() <{level = 10 : i32, message = "bts,bsp->btp"}> : () -> ()
    %cst_40 = arith.constant dense<0.000000e+00> : vector<2x8x64xf32>
    %119 = tpu.matmul %117, %118, %cst_40 {dimension_numbers = #tpu.dot_dimension_numbers<[2], [1], [1], [2], [0, 0, 0, 1, 1, 2], [0], [0]>} : vector<2x8x8xf32>, vector<2x8x64xf32>, vector<2x8x64xf32> -> vector<2x8x64xf32>
    "tpu.trace_stop"() : () -> ()
    %120 = vector.extract_strided_slice %98 {offsets = [0, 0], sizes = [1, 1], strides = [1, 1]} : vector<1x4xf32> to vector<1x1xf32>
    %121 = vector.extract %120[0, 0] : f32 from vector<1x1xf32>
    %122 = vector.broadcast %121 : f32 to vector<2x8x64xf32>
    %123 = arith.mulf %122, %118 : vector<2x8x64xf32>
    %124 = arith.addf %119, %123 : vector<2x8x64xf32>
    %c0_41 = arith.constant 0 : index
    %c0_42 = arith.constant 0 : index
    %c0_43 = arith.constant 0 : index
    %125 = vector.load %arg22[%c0_41, %c0_42, %c0_43] : memref<2x8x256xf32, #tpu.memory_space<vmem>>, vector<2x8x64xf32>
    tpu.vector_store %arg22[%c0_41, %c0_42, %c0_43], %124 {strides = array<i32>} : memref<2x8x256xf32, #tpu.memory_space<vmem>>, vector<2x8x64xf32>,
    %126 = vector.extract_strided_slice %96 {offsets = [0, 0, 1], sizes = [2, 8, 1], strides = [1, 1, 1]} : vector<2x8x4xf32> to vector<2x8x1xf32>
    %127 = vector.shape_cast %126 : vector<2x8x1xf32> to vector<2x8xf32>
    %128 = vector.extract_strided_slice %80 {offsets = [0, 0, 1], sizes = [2, 8, 1], strides = [1, 1, 1]} : vector<2x8x4xf32> to vector<2x8x1xf32>
    %129 = vector.shape_cast %128 : vector<2x8x1xf32> to vector<2x8xf32>
    %130 = vector.shape_cast %127 : vector<2x8xf32> to vector<2x8x1xf32>
    %131 = vector.shape_cast %127 : vector<2x8xf32> to vector<2x1x8xf32>
    %132 = vector.broadcast %130 : vector<2x8x1xf32> to vector<2x8x8xf32>
    %133 = vector.broadcast %131 : vector<2x1x8xf32> to vector<2x8x8xf32>
    %134 = arith.subf %132, %133 : vector<2x8x8xf32>
    %135 = vector.shape_cast %90 : vector<8x8xi1> to vector<1x8x8xi1>
    %cst_44 = arith.constant -1.000000e+30 : f32
    %136 = vector.shape_cast %135 : vector<1x8x8xi1> to vector<1x8x8xi1>
    %137 = vector.broadcast %136 : vector<1x8x8xi1> to vector<2x8x8xi1>
    %138 = vector.broadcast %cst_44 : f32 to vector<2x8x8xf32>
    %139 = arith.select %137, %134, %138 : vector<2x8x8xi1>, vector<2x8x8xf32>
    %140 = math.exp %139 : vector<2x8x8xf32>
    %141 = arith.mulf %140, %97 : vector<2x8x8xf32>
    %142 = vector.shape_cast %129 : vector<2x8xf32> to vector<2x1x8xf32>
    %143 = vector.broadcast %142 : vector<2x1x8xf32> to vector<2x8x8xf32>
    %144 = arith.mulf %141, %143 : vector<2x8x8xf32>
    %145 = vector.extract_strided_slice %65 {offsets = [0, 0, 64], sizes = [2, 8, 64], strides = [1, 1, 1]} : vector<2x8x256xf32> to vector<2x8x64xf32>
    "tpu.trace_start"() <{level = 10 : i32, message = "bts,bsp->btp"}> : () -> ()
    %cst_45 = arith.constant dense<0.000000e+00> : vector<2x8x64xf32>
    %146 = tpu.matmul %144, %145, %cst_45 {dimension_numbers = #tpu.dot_dimension_numbers<[2], [1], [1], [2], [0, 0, 0, 1, 1, 2], [0], [0]>} : vector<2x8x8xf32>, vector<2x8x64xf32>, vector<2x8x64xf32> -> vector<2x8x64xf32>
    "tpu.trace_stop"() : () -> ()
    %147 = vector.extract_strided_slice %98 {offsets = [0, 1], sizes = [1, 1], strides = [1, 1]} : vector<1x4xf32> to vector<1x1xf32>
    %148 = vector.extract %147[0, 0] : f32 from vector<1x1xf32>
    %149 = vector.broadcast %148 : f32 to vector<2x8x64xf32>
    %150 = arith.mulf %149, %145 : vector<2x8x64xf32>
    %151 = arith.addf %146, %150 : vector<2x8x64xf32>
    %c0_46 = arith.constant 0 : index
    %c0_47 = arith.constant 0 : index
    %c64 = arith.constant 64 : index
    %152 = vector.load %arg22[%c0_46, %c0_47, %c64] : memref<2x8x256xf32, #tpu.memory_space<vmem>>, vector<2x8x64xf32>
    tpu.vector_store %arg22[%c0_46, %c0_47, %c64], %151 {strides = array<i32>} : memref<2x8x256xf32, #tpu.memory_space<vmem>>, vector<2x8x64xf32>,
    %153 = vector.extract_strided_slice %96 {offsets = [0, 0, 2], sizes = [2, 8, 1], strides = [1, 1, 1]} : vector<2x8x4xf32> to vector<2x8x1xf32>
    %154 = vector.shape_cast %153 : vector<2x8x1xf32> to vector<2x8xf32>
    %155 = vector.extract_strided_slice %80 {offsets = [0, 0, 2], sizes = [2, 8, 1], strides = [1, 1, 1]} : vector<2x8x4xf32> to vector<2x8x1xf32>
    %156 = vector.shape_cast %155 : vector<2x8x1xf32> to vector<2x8xf32>
    %157 = vector.shape_cast %154 : vector<2x8xf32> to vector<2x8x1xf32>
    %158 = vector.shape_cast %154 : vector<2x8xf32> to vector<2x1x8xf32>
    %159 = vector.broadcast %157 : vector<2x8x1xf32> to vector<2x8x8xf32>
    %160 = vector.broadcast %158 : vector<2x1x8xf32> to vector<2x8x8xf32>
    %161 = arith.subf %159, %160 : vector<2x8x8xf32>
    %162 = vector.shape_cast %90 : vector<8x8xi1> to vector<1x8x8xi1>
    %cst_48 = arith.constant -1.000000e+30 : f32
    %163 = vector.shape_cast %162 : vector<1x8x8xi1> to vector<1x8x8xi1>
    %164 = vector.broadcast %163 : vector<1x8x8xi1> to vector<2x8x8xi1>
    %165 = vector.broadcast %cst_48 : f32 to vector<2x8x8xf32>
    %166 = arith.select %164, %161, %165 : vector<2x8x8xi1>, vector<2x8x8xf32>
    %167 = math.exp %166 : vector<2x8x8xf32>
    %168 = arith.mulf %167, %97 : vector<2x8x8xf32>
    %169 = vector.shape_cast %156 : vector<2x8xf32> to vector<2x1x8xf32>
    %170 = vector.broadcast %169 : vector<2x1x8xf32> to vector<2x8x8xf32>
    %171 = arith.mulf %168, %170 : vector<2x8x8xf32>
    %172 = vector.extract_strided_slice %65 {offsets = [0, 0, 128], sizes = [2, 8, 64], strides = [1, 1, 1]} : vector<2x8x256xf32> to vector<2x8x64xf32>
    "tpu.trace_start"() <{level = 10 : i32, message = "bts,bsp->btp"}> : () -> ()
    %cst_49 = arith.constant dense<0.000000e+00> : vector<2x8x64xf32>
    %173 = tpu.matmul %171, %172, %cst_49 {dimension_numbers = #tpu.dot_dimension_numbers<[2], [1], [1], [2], [0, 0, 0, 1, 1, 2], [0], [0]>} : vector<2x8x8xf32>, vector<2x8x64xf32>, vector<2x8x64xf32> -> vector<2x8x64xf32>
    "tpu.trace_stop"() : () -> ()
    %174 = vector.extract_strided_slice %98 {offsets = [0, 2], sizes = [1, 1], strides = [1, 1]} : vector<1x4xf32> to vector<1x1xf32>
    %175 = vector.extract %174[0, 0] : f32 from vector<1x1xf32>
    %176 = vector.broadcast %175 : f32 to vector<2x8x64xf32>
    %177 = arith.mulf %176, %172 : vector<2x8x64xf32>
    %178 = arith.addf %173, %177 : vector<2x8x64xf32>
    %c0_50 = arith.constant 0 : index
    %c0_51 = arith.constant 0 : index
    %c128 = arith.constant 128 : index
    %179 = vector.load %arg22[%c0_50, %c0_51, %c128] : memref<2x8x256xf32, #tpu.memory_space<vmem>>, vector<2x8x64xf32>
    tpu.vector_store %arg22[%c0_50, %c0_51, %c128], %178 {strides = array<i32>} : memref<2x8x256xf32, #tpu.memory_space<vmem>>, vector<2x8x64xf32>,
    %180 = vector.extract_strided_slice %96 {offsets = [0, 0, 3], sizes = [2, 8, 1], strides = [1, 1, 1]} : vector<2x8x4xf32> to vector<2x8x1xf32>
    %181 = vector.shape_cast %180 : vector<2x8x1xf32> to vector<2x8xf32>
    %182 = vector.extract_strided_slice %80 {offsets = [0, 0, 3], sizes = [2, 8, 1], strides = [1, 1, 1]} : vector<2x8x4xf32> to vector<2x8x1xf32>
    %183 = vector.shape_cast %182 : vector<2x8x1xf32> to vector<2x8xf32>
    %184 = vector.shape_cast %181 : vector<2x8xf32> to vector<2x8x1xf32>
    %185 = vector.shape_cast %181 : vector<2x8xf32> to vector<2x1x8xf32>
    %186 = vector.broadcast %184 : vector<2x8x1xf32> to vector<2x8x8xf32>
    %187 = vector.broadcast %185 : vector<2x1x8xf32> to vector<2x8x8xf32>
    %188 = arith.subf %186, %187 : vector<2x8x8xf32>
    %189 = vector.shape_cast %90 : vector<8x8xi1> to vector<1x8x8xi1>
    %cst_52 = arith.constant -1.000000e+30 : f32
    %190 = vector.shape_cast %189 : vector<1x8x8xi1> to vector<1x8x8xi1>
    %191 = vector.broadcast %190 : vector<1x8x8xi1> to vector<2x8x8xi1>
    %192 = vector.broadcast %cst_52 : f32 to vector<2x8x8xf32>
    %193 = arith.select %191, %188, %192 : vector<2x8x8xi1>, vector<2x8x8xf32>
    %194 = math.exp %193 : vector<2x8x8xf32>
    %195 = arith.mulf %194, %97 : vector<2x8x8xf32>
    %196 = vector.shape_cast %183 : vector<2x8xf32> to vector<2x1x8xf32>
    %197 = vector.broadcast %196 : vector<2x1x8xf32> to vector<2x8x8xf32>
    %198 = arith.mulf %195, %197 : vector<2x8x8xf32>
    %199 = vector.extract_strided_slice %65 {offsets = [0, 0, 192], sizes = [2, 8, 64], strides = [1, 1, 1]} : vector<2x8x256xf32> to vector<2x8x64xf32>
    "tpu.trace_start"() <{level = 10 : i32, message = "bts,bsp->btp"}> : () -> ()
    %cst_53 = arith.constant dense<0.000000e+00> : vector<2x8x64xf32>
    %200 = tpu.matmul %198, %199, %cst_53 {dimension_numbers = #tpu.dot_dimension_numbers<[2], [1], [1], [2], [0, 0, 0, 1, 1, 2], [0], [0]>} : vector<2x8x8xf32>, vector<2x8x64xf32>, vector<2x8x64xf32> -> vector<2x8x64xf32>
    "tpu.trace_stop"() : () -> ()
    %201 = vector.extract_strided_slice %98 {offsets = [0, 3], sizes = [1, 1], strides = [1, 1]} : vector<1x4xf32> to vector<1x1xf32>
    %202 = vector.extract %201[0, 0] : f32 from vector<1x1xf32>
    %203 = vector.broadcast %202 : f32 to vector<2x8x64xf32>
    %204 = arith.mulf %203, %199 : vector<2x8x64xf32>
    %205 = arith.addf %200, %204 : vector<2x8x64xf32>
    %c0_54 = arith.constant 0 : index
    %c0_55 = arith.constant 0 : index
    %c192 = arith.constant 192 : index
    %206 = vector.load %arg22[%c0_54, %c0_55, %c192] : memref<2x8x256xf32, #tpu.memory_space<vmem>>, vector<2x8x64xf32>
    tpu.vector_store %arg22[%c0_54, %c0_55, %c192], %205 {strides = array<i32>} : memref<2x8x256xf32, #tpu.memory_space<vmem>>, vector<2x8x64xf32>,
    %c0_56 = arith.constant 0 : index
    %c0_57 = arith.constant 0 : index
    %c0_58 = arith.constant 0 : index
    %207 = vector.load %arg22[%c0_56, %c0_57, %c0_58] : memref<2x8x256xf32, #tpu.memory_space<vmem>>, vector<2x8x256xf32>
    %208 = vector.shape_cast %207 : vector<2x8x256xf32> to vector<16x256xf32>
    %209 = arith.negf %11 : vector<16x256xf32>
    %210 = math.exp %209 : vector<16x256xf32>
    %cst_59 = arith.constant 1.000000e+00 : f32
    %211 = vector.broadcast %cst_59 : f32 to vector<16x256xf32>
    %212 = arith.addf %211, %210 : vector<16x256xf32>
    %213 = arith.divf %211, %212 : vector<16x256xf32>
    %214 = arith.mulf %11, %213 : vector<16x256xf32>
    %215 = arith.mulf %208, %214 : vector<16x256xf32>
    %216 = arith.mulf %215, %215 : vector<16x256xf32>
    %cst_60 = arith.constant dense<0.000000e+00> : vector<16xf32>
    %217 = vector.multi_reduction <add>, %216, %cst_60 [1] : vector<16x256xf32> to vector<16xf32>
    %218 = vector.shape_cast %217 : vector<16xf32> to vector<16x1xf32>
    %cst_61 = arith.constant 2.560000e+02 : f32
    %219 = vector.broadcast %cst_61 : f32 to vector<16x1xf32>
    %220 = arith.divf %218, %219 : vector<16x1xf32>
    %cst_62 = arith.constant 9.99999974E-6 : f32
    %221 = vector.broadcast %cst_62 : f32 to vector<16x1xf32>
    %222 = arith.addf %220, %221 : vector<16x1xf32>
    %223 = math.rsqrt %222 : vector<16x1xf32>
    %224 = vector.broadcast %223 : vector<16x1xf32> to vector<16x256xf32>
    %225 = arith.mulf %215, %224 : vector<16x256xf32>
    %c0_63 = arith.constant 0 : index
    %c0_64 = arith.constant 0 : index
    %226 = vector.load %arg14[%c0_63, %c0_64] : memref<1x256xf32, #tpu.memory_space<vmem>>, vector<1x256xf32>
    %227 = vector.broadcast %226 : vector<1x256xf32> to vector<16x256xf32>
    %228 = arith.mulf %225, %227 : vector<16x256xf32>
    %229 = arith.truncf %228 : vector<16x256xf32> to vector<16x256xbf16>
    %c0_65 = arith.constant 0 : index
    %c0_66 = arith.constant 0 : index
    %230 = vector.load %arg15[%c0_65, %c0_66] : memref<256x128xbf16, #tpu.memory_space<vmem>>, vector<256x128xbf16>
    %cst_67 = arith.constant dense<0.000000e+00> : vector<16x128xf32>
    %231 = tpu.matmul %229, %230, %cst_67 {dimension_numbers = #tpu.dot_dimension_numbers<[1], [0], [0], [1], [0, 0, 1, 1], [], []>} : vector<16x256xbf16>, vector<256x128xbf16>, vector<16x128xf32> -> vector<16x128xf32>
    %c0_68 = arith.constant 0 : index
    %c0_69 = arith.constant 0 : index
    %232 = vector.load %arg16[%c0_68, %c0_69] : memref<1x128xf32, #tpu.memory_space<vmem>>, vector<1x128xf32>
    %233 = vector.broadcast %232 : vector<1x128xf32> to vector<16x128xf32>
    %234 = arith.addf %231, %233 : vector<16x128xf32>
    %235 = vector.shape_cast %234 : vector<16x128xf32> to vector<2x8x128xf32>
    %c0_70 = arith.constant 0 : index
    %c0_71 = arith.constant 0 : index
    %236 = vector.load %arg17[%c0_70, %c0_71] : memref<1x128xf32, #tpu.memory_space<vmem>>, vector<1x128xf32>
    %237 = vector.shape_cast %236 : vector<1x128xf32> to vector<1x1x128xf32>
    %238 = vector.broadcast %237 : vector<1x1x128xf32> to vector<2x8x128xf32>
    %239 = arith.mulf %235, %238 : vector<2x8x128xf32>
    %cst_72 = arith.constant dense<0.000000e+00> : vector<2x8xf32>
    %240 = vector.multi_reduction <add>, %239, %cst_72 [2] : vector<2x8x128xf32> to vector<2x8xf32>
    %241 = vector.shape_cast %240 : vector<2x8xf32> to vector<2x8x1xf32>
    %c0_73 = arith.constant 0 : index
    %c0_74 = arith.constant 0 : index
    %242 = vector.load %arg18[%c0_73, %c0_74] : memref<1x1xf32, #tpu.memory_space<vmem>>, vector<1x1xf32>
    %243 = vector.shape_cast %242 : vector<1x1xf32> to vector<1x1x1xf32>
    %244 = vector.broadcast %243 : vector<1x1x1xf32> to vector<2x8x1xf32>
    %245 = arith.addf %241, %244 : vector<2x8x1xf32>
    %cst_75 = arith.constant dense<0xFF800000> : vector<2x1xf32>
    %246 = vector.multi_reduction <maximumf>, %245, %cst_75 [1] : vector<2x8x1xf32> to vector<2x1xf32>
    %247 = vector.shape_cast %246 : vector<2x1xf32> to vector<2x1x1xf32>
    %248 = vector.broadcast %247 : vector<2x1x1xf32> to vector<2x8x1xf32>
    %249 = arith.subf %245, %248 : vector<2x8x1xf32>
    %250 = math.exp %249 : vector<2x8x1xf32>
    %cst_76 = arith.constant dense<0.000000e+00> : vector<2x1xf32>
    %251 = vector.multi_reduction <add>, %250, %cst_76 [1] : vector<2x8x1xf32> to vector<2x1xf32>
    %252 = vector.shape_cast %251 : vector<2x1xf32> to vector<2x1x1xf32>
    %253 = vector.broadcast %252 : vector<2x1x1xf32> to vector<2x8x1xf32>
    %254 = arith.divf %250, %253 : vector<2x8x1xf32>
    %255 = vector.broadcast %254 : vector<2x8x1xf32> to vector<2x8x128xf32>
    %256 = arith.mulf %235, %255 : vector<2x8x128xf32>
    %cst_77 = arith.constant dense<0.000000e+00> : vector<2x128xf32>
    %257 = vector.multi_reduction <add>, %256, %cst_77 [1] : vector<2x8x128xf32> to vector<2x128xf32>
    %258 = arith.truncf %257 : vector<2x128xf32> to vector<2x128xbf16>
    %c0_78 = arith.constant 0 : index
    %c0_79 = arith.constant 0 : index
    %259 = vector.load %arg19[%c0_78, %c0_79] : memref<128x256xbf16, #tpu.memory_space<vmem>>, vector<128x256xbf16>
    %cst_80 = arith.constant dense<0.000000e+00> : vector<2x256xf32>
    %260 = tpu.matmul %258, %259, %cst_80 {dimension_numbers = #tpu.dot_dimension_numbers<[1], [0], [0], [1], [0, 0, 1, 1], [], []>} : vector<2x128xbf16>, vector<128x256xbf16>, vector<2x256xf32> -> vector<2x256xf32>
    %c0_81 = arith.constant 0 : index
    %c0_82 = arith.constant 0 : index
    %261 = vector.load %arg20[%c0_81, %c0_82] : memref<1x256xf32, #tpu.memory_space<vmem>>, vector<1x256xf32>
    %262 = vector.broadcast %261 : vector<1x256xf32> to vector<2x256xf32>
    %263 = arith.addf %260, %262 : vector<2x256xf32>
    %c0_83 = arith.constant 0 : index
    %c0_84 = arith.constant 0 : index
    %264 = vector.load %arg21[%c0_83, %c0_84] : memref<2x256xf32, #tpu.memory_space<vmem>>, vector<2x256xf32>
    tpu.vector_store %arg21[%c0_83, %c0_84], %263 {strides = array<i32>} : memref<2x256xf32, #tpu.memory_space<vmem>>, vector<2x256xf32>,
    return
  }
}

</mosaic_0001>

<llo_original>
// kernel: forward.1
$region0: #{forward.1}
  #allocation0 [shape = 'u32[]', space=smem, size = 0x4, offset = 0x4, fixed_abs, tag = 'smem constant byte address 0x4 - core index']
  #allocation1 [shape = 'u32[144,128]{1,0:T(1,128)}', space=vmem, size = 0x12000, scoped, tag = 'internal scratch']
  #allocation2 [shape = 'f32[2,8,256]{2,1,0:T(8,128)}', space=vmem, size = 0x4000, scoped, tag = 'scratch operand']
  #allocation3 [shape = 'f32[1,1]{1,0:T(1,128)S(1)}', space=vmem, size = 0x200, scoped, tag = 'scoped memory for forward.1']
  %s0 = inlined_call_operand.vmem [shape: bf16[16,1024], index: 0, kind: input, shape index: {}]
  %s1 = inlined_call_operand.vmem [shape: bf16[1024,128], index: 1, kind: input, shape index: {}]
  %s2 = inlined_call_operand.vmem [shape: f32[1,128], index: 2, kind: input, shape index: {}]
  %s3 = inlined_call_operand.vmem [shape: bf16[128,256], index: 3, kind: input, shape index: {}]
  %s4 = inlined_call_operand.vmem [shape: f32[1,256], index: 4, kind: input, shape index: {}]
  %s5 = inlined_call_operand.vmem [shape: bf16[128,288], index: 5, kind: input, shape index: {}]
  %s6 = inlined_call_operand.vmem [shape: f32[1,288], index: 6, kind: input, shape index: {}]
  %s7 = inlined_call_operand.vmem [shape: bf16[128,4], index: 7, kind: input, shape index: {}]
  %s8 = inlined_call_operand.vmem [shape: f32[1,4], index: 8, kind: input, shape index: {}]
  %s9 = inlined_call_operand.vmem [shape: f32[4,288], index: 9, kind: input, shape index: {}]
  %s10 = inlined_call_operand.vmem [shape: f32[1,288], index: 10, kind: input, shape index: {}]
  %s11 = inlined_call_operand.vmem [shape: f32[1,4], index: 11, kind: input, shape index: {}]
  %s12 = inlined_call_operand.vmem [shape: f32[1,4], index: 12, kind: input, shape index: {}]
  %s13 = inlined_call_operand.vmem [shape: f32[1,4], index: 13, kind: input, shape index: {}]
  %s14 = inlined_call_operand.vmem [shape: f32[1,256], index: 14, kind: input, shape index: {}]
  %s15 = inlined_call_operand.vmem [shape: bf16[256,128], index: 15, kind: input, shape index: {}]
  %s16 = inlined_call_operand.vmem [shape: f32[1,128], index: 16, kind: input, shape index: {}]
  %s17 = inlined_call_operand.vmem [shape: f32[1,128], index: 17, kind: input, shape index: {}]
  %s18 = inlined_call_operand.<no memory space> [shape: f32[1,1], index: 18, kind: input, shape index: {}]
  %s19 = inlined_call_operand.vmem [shape: bf16[128,256], index: 19, kind: input, shape index: {}]
  %s20 = inlined_call_operand.vmem [shape: f32[1,256], index: 20, kind: input, shape index: {}]
  %s21 = inlined_call_operand.hbm [shape: f32[2,256], index: 21, kind: output, shape index: {}]
  %s22 = sld [smem:[#allocation0]]
  $region94: #{forward.1} parent=0
    _
  %s24 = ssub.s32 1, %s22
  %s25 = scalar_select 0, %s24, %s22
  %v26 = vstv %s18
  %27 = vst [vmem:[#allocation3] sm:$0x1] %v26
  $region1: #{forward.1} parent=0
    #allocation4 [shape = 'u8[2048]{0}', space=vmem, size = 0x800, scoped, tag = 'output window, operand 0, single buffered']
    #allocation5 [shape = 's32[1]{0}', space=sflag, size = 0x4, scoped, tag = 'scoped memory for forward.1']
    %28 = vsyncpa [#allocation5], 0
    // Predicated region
    $region2: #{forward.1} parent=1 // pred_check
      _
    $region3: #{forward.1} parent=1 // pred_check_branch
      %30 = sbr.rel (0) target = $region5
    $region4: #{forward.1} parent=1 // pred_region
      _
    $region5: #{forward.1} parent=1 // pred_fallthru
      _
    // Predicated region
    $region6: #{forward.1} parent=1 // pred_check
      _
    $region7: #{forward.1} parent=1 // pred_check_branch
      %32 = sbr.rel (0) target = $region9
    $region8: #{forward.1} parent=1 // pred_region
      _
    $region9: #{forward.1} parent=1 // pred_fallthru
      _
    // Predicated region
    $region10: #{forward.1} parent=1 // pred_check
      _
    $region11: #{forward.1} parent=1 // pred_check_branch
      %34 = sbr.rel (0) target = $region13
    $region12: #{forward.1} parent=1 // pred_region
      _
    $region13: #{forward.1} parent=1 // pred_fallthru
      _
    // Predicated region
    $region14: #{forward.1} parent=1 // pred_check
      _
    $region15: #{forward.1} parent=1 // pred_check_branch
      %36 = sbr.rel (0) target = $region17
    $region16: #{forward.1} parent=1 // pred_region
      _
    $region17: #{forward.1} parent=1 // pred_fallthru
      _
    // Predicated region
    $region18: #{forward.1} parent=1 // pred_check
      _
    $region19: #{forward.1} parent=1 // pred_check_branch
      %38 = sbr.rel (0) target = $region21
    $region20: #{forward.1} parent=1 // pred_region
      _
    $region21: #{forward.1} parent=1 // pred_fallthru
      _
    // Predicated region
    $region22: #{forward.1} parent=1 // pred_check
      _
    $region23: #{forward.1} parent=1 // pred_check_branch
      %40 = sbr.rel (0) target = $region25
    $region24: #{forward.1} parent=1 // pred_region
      _
    $region25: #{forward.1} parent=1 // pred_fallthru
      _
    // Predicated region
    $region26: #{forward.1} parent=1 // pred_check
      _
    $region27: #{forward.1} parent=1 // pred_check_branch
      %42 = sbr.rel (0) target = $region29
    $region28: #{forward.1} parent=1 // pred_region
      _
    $region29: #{forward.1} parent=1 // pred_fallthru
      _
    // Predicated region
    $region30: #{forward.1} parent=1 // pred_check
      _
    $region31: #{forward.1} parent=1 // pred_check_branch
      %44 = sbr.rel (0) target = $region33
    $region32: #{forward.1} parent=1 // pred_region
      _
    $region33: #{forward.1} parent=1 // pred_fallthru
      _
    // Predicated region
    $region34: #{forward.1} parent=1 // pred_check
      _
    $region35: #{forward.1} parent=1 // pred_check_branch
      %46 = sbr.rel (0) target = $region37
    $region36: #{forward.1} parent=1 // pred_region
      _
    $region37: #{forward.1} parent=1 // pred_fallthru
      _
    // Predicated region
    $region38: #{forward.1} parent=1 // pred_check
      _
    $region39: #{forward.1} parent=1 // pred_check_branch
      %48 = sbr.rel (0) target = $region41
    $region40: #{forward.1} parent=1 // pred_region
      _
    $region41: #{forward.1} parent=1 // pred_fallthru
      _
    // Predicated region
    $region42: #{forward.1} parent=1 // pred_check
      _
    $region43: #{forward.1} parent=1 // pred_check_branch
      %50 = sbr.rel (0) target = $region45
    $region44: #{forward.1} parent=1 // pred_region
      _
    $region45: #{forward.1} parent=1 // pred_fallthru
      _
    // Predicated region
    $region46: #{forward.1} parent=1 // pred_check
      _
    $region47: #{forward.1} parent=1 // pred_check_branch
      %52 = sbr.rel (0) target = $region49
    $region48: #{forward.1} parent=1 // pred_region
      _
    $region49: #{forward.1} parent=1 // pred_fallthru
      _
    // Predicated region
    $region50: #{forward.1} parent=1 // pred_check
      _
    $region51: #{forward.1} parent=1 // pred_check_branch
      %54 = sbr.rel (0) target = $region53
    $region52: #{forward.1} parent=1 // pred_region
      _
    $region53: #{forward.1} parent=1 // pred_fallthru
      _
    // Predicated region
    $region54: #{forward.1} parent=1 // pred_check
      _
    $region55: #{forward.1} parent=1 // pred_check_branch
      %56 = sbr.rel (0) target = $region57
    $region56: #{forward.1} parent=1 // pred_region
      _
    $region57: #{forward.1} parent=1 // pred_fallthru
      _
    // Predicated region
    $region58: #{forward.1} parent=1 // pred_check
      _
    $region59: #{forward.1} parent=1 // pred_check_branch
      %58 = sbr.rel (0) target = $region61
    $region60: #{forward.1} parent=1 // pred_region
      _
    $region61: #{forward.1} parent=1 // pred_fallthru
      _
    // Predicated region
    $region62: #{forward.1} parent=1 // pred_check
      _
    $region63: #{forward.1} parent=1 // pred_check_branch
      %60 = sbr.rel (0) target = $region65
    $region64: #{forward.1} parent=1 // pred_region
      _
    $region65: #{forward.1} parent=1 // pred_fallthru
      _
    // Predicated region
    $region66: #{forward.1} parent=1 // pred_check
      _
    $region67: #{forward.1} parent=1 // pred_check_branch
      %62 = sbr.rel (0) target = $region69
    $region68: #{forward.1} parent=1 // pred_region
      _
    $region69: #{forward.1} parent=1 // pred_fallthru
      _
    // Predicated region
    $region70: #{forward.1} parent=1 // pred_check
      _
    $region71: #{forward.1} parent=1 // pred_check_branch
      %64 = sbr.rel (0) target = $region73
    $region72: #{forward.1} parent=1 // pred_region
      _
    $region73: #{forward.1} parent=1 // pred_fallthru
      _
    // Predicated region
    $region74: #{forward.1} parent=1 // pred_check
      _
    $region75: #{forward.1} parent=1 // pred_check_branch
      %66 = sbr.rel (0) target = $region77
    $region76: #{forward.1} parent=1 // pred_region
      _
    $region77: #{forward.1} parent=1 // pred_fallthru
      _
    // Predicated region
    $region78: #{forward.1} parent=1 // pred_check
      _
    $region79: #{forward.1} parent=1 // pred_check_branch
      %68 = sbr.rel (0) target = $region81
    $region80: #{forward.1} parent=1 // pred_region
      _
    $region81: #{forward.1} parent=1 // pred_fallthru
      _
    // Predicated region
    $region82: #{forward.1} parent=1 // pred_check
      _
    $region83: #{forward.1} parent=1 // pred_check_branch
      %70 = sbr.rel (0) target = $region85
    $region84: #{forward.1} parent=1 // pred_region
      _
    $region85: #{forward.1} parent=1 // pred_fallthru
      _
    %v72 = vld [vmem:[%s0] sm:$0xff]
    %v73 = vld [vmem:[%s0 + $0x8] sm:$0xff]
    %v74 = vld [vmem:[%s0 + $0x10] sm:$0xff]
    %v75 = vld [vmem:[%s0 + $0x18] sm:$0xff]
    %v76 = vld [vmem:[%s0 + $0x20] sm:$0xff]
    %v77 = vld [vmem:[%s0 + $0x28] sm:$0xff]
    %v78 = vld [vmem:[%s0 + $0x30] sm:$0xff]
    %v79 = vld [vmem:[%s0 + $0x38] sm:$0xff]
    %v80 = vld [vmem:[%s1] sm:$0xf]
    %v81 = vld [vmem:[%s1 + $0x4] sm:$0xf]
    %v82 = vld [vmem:[%s1 + $0x8] sm:$0xf]
    %v83 = vld [vmem:[%s1 + $0xc] sm:$0xf]
    %v84 = vld [vmem:[%s1 + $0x10] sm:$0xf]
    %v85 = vld [vmem:[%s1 + $0x14] sm:$0xf]
    %v86 = vld [vmem:[%s1 + $0x18] sm:$0xf]
    %v87 = vld [vmem:[%s1 + $0x1c] sm:$0xf]
    %v88 = vld [vmem:[%s1 + $0x20] sm:$0xf]
    %v89 = vld [vmem:[%s1 + $0x24] sm:$0xf]
    %v90 = vld [vmem:[%s1 + $0x28] sm:$0xf]
    %v91 = vld [vmem:[%s1 + $0x2c] sm:$0xf]
    %v92 = vld [vmem:[%s1 + $0x30] sm:$0xf]
    %v93 = vld [vmem:[%s1 + $0x34] sm:$0xf]
    %v94 = vld [vmem:[%s1 + $0x38] sm:$0xf]
    %v95 = vld [vmem:[%s1 + $0x3c] sm:$0xf]
    %v96 = vld [vmem:[%s1 + $0x40] sm:$0xf]
    %v97 = vld [vmem:[%s1 + $0x44] sm:$0xf]
    %v98 = vld [vmem:[%s1 + $0x48] sm:$0xf]
    %v99 = vld [vmem:[%s1 + $0x4c] sm:$0xf]
    %v100 = vld [vmem:[%s1 + $0x50] sm:$0xf]
    %v101 = vld [vmem:[%s1 + $0x54] sm:$0xf]
    %v102 = vld [vmem:[%s1 + $0x58] sm:$0xf]
    %v103 = vld [vmem:[%s1 + $0x5c] sm:$0xf]
    %v104 = vld [vmem:[%s1 + $0x60] sm:$0xf]
    %v105 = vld [vmem:[%s1 + $0x64] sm:$0xf]
    %v106 = vld [vmem:[%s1 + $0x68] sm:$0xf]
    %v107 = vld [vmem:[%s1 + $0x6c] sm:$0xf]
    %v108 = vld [vmem:[%s1 + $0x70] sm:$0xf]
    %v109 = vld [vmem:[%s1 + $0x74] sm:$0xf]
    %v110 = vld [vmem:[%s1 + $0x78] sm:$0xf]
    %v111 = vld [vmem:[%s1 + $0x7c] sm:$0xf]
    %v112 = vld [vmem:[%s1 + $0x80] sm:$0xf]
    %v113 = vld [vmem:[%s1 + $0x84] sm:$0xf]
    %v114 = vld [vmem:[%s1 + $0x88] sm:$0xf]
    %v115 = vld [vmem:[%s1 + $0x8c] sm:$0xf]
    %v116 = vld [vmem:[%s1 + $0x90] sm:$0xf]
    %v117 = vld [vmem:[%s1 + $0x94] sm:$0xf]
    %v118 = vld [vmem:[%s1 + $0x98] sm:$0xf]
    %v119 = vld [vmem:[%s1 + $0x9c] sm:$0xf]
    %v120 = vld [vmem:[%s1 + $0xa0] sm:$0xf]
    %v121 = vld [vmem:[%s1 + $0xa4] sm:$0xf]
    %v122 = vld [vmem:[%s1 + $0xa8] sm:$0xf]
    %v123 = vld [vmem:[%s1 + $0xac] sm:$0xf]
    %v124 = vld [vmem:[%s1 + $0xb0] sm:$0xf]
    %v125 = vld [vmem:[%s1 + $0xb4] sm:$0xf]
    %v126 = vld [vmem:[%s1 + $0xb8] sm:$0xf]
    %v127 = vld [vmem:[%s1 + $0xbc] sm:$0xf]
    %v128 = vld [vmem:[%s1 + $0xc0] sm:$0xf]
    %v129 = vld [vmem:[%s1 + $0xc4] sm:$0xf]
    %v130 = vld [vmem:[%s1 + $0xc8] sm:$0xf]
    %v131 = vld [vmem:[%s1 + $0xcc] sm:$0xf]
    %v132 = vld [vmem:[%s1 + $0xd0] sm:$0xf]
    %v133 = vld [vmem:[%s1 + $0xd4] sm:$0xf]
    %v134 = vld [vmem:[%s1 + $0xd8] sm:$0xf]
    %v135 = vld [vmem:[%s1 + $0xdc] sm:$0xf]
    %v136 = vld [vmem:[%s1 + $0xe0] sm:$0xf]
    %v137 = vld [vmem:[%s1 + $0xe4] sm:$0xf]
    %v138 = vld [vmem:[%s1 + $0xe8] sm:$0xf]
    %v139 = vld [vmem:[%s1 + $0xec] sm:$0xf]
    %v140 = vld [vmem:[%s1 + $0xf0] sm:$0xf]
    %v141 = vld [vmem:[%s1 + $0xf4] sm:$0xf]
    %v142 = vld [vmem:[%s1 + $0xf8] sm:$0xf]
    %v143 = vld [vmem:[%s1 + $0xfc] sm:$0xf]
    %v144 = vld [vmem:[%s1 + $0x100] sm:$0xf]
    %v145 = vld [vmem:[%s1 + $0x104] sm:$0xf]
    %v146 = vld [vmem:[%s1 + $0x108] sm:$0xf]
    %v147 = vld [vmem:[%s1 + $0x10c] sm:$0xf]
    %v148 = vld [vmem:[%s1 + $0x110] sm:$0xf]
    %v149 = vld [vmem:[%s1 + $0x114] sm:$0xf]
    %v150 = vld [vmem:[%s1 + $0x118] sm:$0xf]
    %v151 = vld [vmem:[%s1 + $0x11c] sm:$0xf]
    %v152 = vld [vmem:[%s1 + $0x120] sm:$0xf]
    %v153 = vld [vmem:[%s1 + $0x124] sm:$0xf]
    %v154 = vld [vmem:[%s1 + $0x128] sm:$0xf]
    %v155 = vld [vmem:[%s1 + $0x12c] sm:$0xf]
    %v156 = vld [vmem:[%s1 + $0x130] sm:$0xf]
    %v157 = vld [vmem:[%s1 + $0x134] sm:$0xf]
    %v158 = vld [vmem:[%s1 + $0x138] sm:$0xf]
    %v159 = vld [vmem:[%s1 + $0x13c] sm:$0xf]
    %v160 = vld [vmem:[%s1 + $0x140] sm:$0xf]
    %v161 = vld [vmem:[%s1 + $0x144] sm:$0xf]
    %v162 = vld [vmem:[%s1 + $0x148] sm:$0xf]
    %v163 = vld [vmem:[%s1 + $0x14c] sm:$0xf]
    %v164 = vld [vmem:[%s1 + $0x150] sm:$0xf]
    %v165 = vld [vmem:[%s1 + $0x154] sm:$0xf]
    %v166 = vld [vmem:[%s1 + $0x158] sm:$0xf]
    %v167 = vld [vmem:[%s1 + $0x15c] sm:$0xf]
    %v168 = vld [vmem:[%s1 + $0x160] sm:$0xf]
    %v169 = vld [vmem:[%s1 + $0x164] sm:$0xf]
    %v170 = vld [vmem:[%s1 + $0x168] sm:$0xf]
    %v171 = vld [vmem:[%s1 + $0x16c] sm:$0xf]
    %v172 = vld [vmem:[%s1 + $0x170] sm:$0xf]
    %v173 = vld [vmem:[%s1 + $0x174] sm:$0xf]
    %v174 = vld [vmem:[%s1 + $0x178] sm:$0xf]
    %v175 = vld [vmem:[%s1 + $0x17c] sm:$0xf]
    %v176 = vld [vmem:[%s1 + $0x180] sm:$0xf]
    %v177 = vld [vmem:[%s1 + $0x184] sm:$0xf]
    %v178 = vld [vmem:[%s1 + $0x188] sm:$0xf]
    %v179 = vld [vmem:[%s1 + $0x18c] sm:$0xf]
    %v180 = vld [vmem:[%s1 + $0x190] sm:$0xf]
    %v181 = vld [vmem:[%s1 + $0x194] sm:$0xf]
    %v182 = vld [vmem:[%s1 + $0x198] sm:$0xf]
    %v183 = vld [vmem:[%s1 + $0x19c] sm:$0xf]
    %v184 = vld [vmem:[%s1 + $0x1a0] sm:$0xf]
    %v185 = vld [vmem:[%s1 + $0x1a4] sm:$0xf]
    %v186 = vld [vmem:[%s1 + $0x1a8] sm:$0xf]
    %v187 = vld [vmem:[%s1 + $0x1ac] sm:$0xf]
    %v188 = vld [vmem:[%s1 + $0x1b0] sm:$0xf]
    %v189 = vld [vmem:[%s1 + $0x1b4] sm:$0xf]
    %v190 = vld [vmem:[%s1 + $0x1b8] sm:$0xf]
    %v191 = vld [vmem:[%s1 + $0x1bc] sm:$0xf]
    %v192 = vld [vmem:[%s1 + $0x1c0] sm:$0xf]
    %v193 = vld [vmem:[%s1 + $0x1c4] sm:$0xf]
    %v194 = vld [vmem:[%s1 + $0x1c8] sm:$0xf]
    %v195 = vld [vmem:[%s1 + $0x1cc] sm:$0xf]
    %v196 = vld [vmem:[%s1 + $0x1d0] sm:$0xf]
    %v197 = vld [vmem:[%s1 + $0x1d4] sm:$0xf]
    %v198 = vld [vmem:[%s1 + $0x1d8] sm:$0xf]
    %v199 = vld [vmem:[%s1 + $0x1dc] sm:$0xf]
    %v200 = vld [vmem:[%s1 + $0x1e0] sm:$0xf]
    %v201 = vld [vmem:[%s1 + $0x1e4] sm:$0xf]
    %v202 = vld [vmem:[%s1 + $0x1e8] sm:$0xf]
    %v203 = vld [vmem:[%s1 + $0x1ec] sm:$0xf]
    %v204 = vld [vmem:[%s1 + $0x1f0] sm:$0xf]
    %v205 = vld [vmem:[%s1 + $0x1f4] sm:$0xf]
    %v206 = vld [vmem:[%s1 + $0x1f8] sm:$0xf]
    %v207 = vld [vmem:[%s1 + $0x1fc] sm:$0xf]
    %v208 = vld [vmem:[%s2] sm:$0x1]
    %v210 = vlaneseq
    %v211 = vshrl.u32 %v210, 7
    %v212 = vsub.s32 0, %v211
    %v213 = vrot.slane %v208, %v212
    %v223 = vunpack.c.l.b16 %v72
    %v224 = vunpack.c.h.b16 %v72
    %v225 = vunpack.c.l.b16 %v73
    %v226 = vunpack.c.h.b16 %v73
    %v227 = vunpack.c.l.b16 %v74
    %v228 = vunpack.c.h.b16 %v74
    %v229 = vunpack.c.l.b16 %v75
    %v230 = vunpack.c.h.b16 %v75
    %v231 = vunpack.c.l.b16 %v76
    %v232 = vunpack.c.h.b16 %v76
    %v233 = vunpack.c.l.b16 %v77
    %v234 = vunpack.c.h.b16 %v77
    %v235 = vunpack.c.l.b16 %v78
    %v236 = vunpack.c.h.b16 %v78
    %v237 = vunpack.c.l.b16 %v79
    %v238 = vunpack.c.h.b16 %v79
    %v239 = vpack.c.b16 %v231, %v223
    %v240 = vpack.c.b16 %v232, %v224
    %v241 = vpack.c.b16 %v233, %v225
    %v242 = vpack.c.b16 %v234, %v226
    %v243 = vpack.c.b16 %v235, %v227
    %v244 = vpack.c.b16 %v236, %v228
    %v245 = vpack.c.b16 %v237, %v229
    %v246 = vpack.c.b16 %v238, %v230
    %v383 = vunpack.c.l.b16 %v80
    %v384 = vunpack.c.l.b16 %v81
    %v385 = vunpack.c.l.b16 %v82
    %v386 = vunpack.c.l.b16 %v83
    %v387 = vunpack.c.l.b16 %v84
    %v388 = vunpack.c.l.b16 %v85
    %v389 = vunpack.c.l.b16 %v86
    %v390 = vunpack.c.l.b16 %v87
    %v391 = vunpack.c.l.b16 %v88
    %v392 = vunpack.c.l.b16 %v89
    %v393 = vunpack.c.l.b16 %v90
    %v394 = vunpack.c.l.b16 %v91
    %v395 = vunpack.c.l.b16 %v92
    %v396 = vunpack.c.l.b16 %v93
    %v397 = vunpack.c.l.b16 %v94
    %v398 = vunpack.c.l.b16 %v95
    %v399 = vunpack.c.l.b16 %v96
    %v400 = vunpack.c.l.b16 %v97
    %v401 = vunpack.c.l.b16 %v98
    %v402 = vunpack.c.l.b16 %v99
    %v403 = vunpack.c.l.b16 %v100
    %v404 = vunpack.c.l.b16 %v101
    %v405 = vunpack.c.l.b16 %v102
    %v406 = vunpack.c.l.b16 %v103
    %v407 = vunpack.c.l.b16 %v104
    %v408 = vunpack.c.l.b16 %v105
    %v409 = vunpack.c.l.b16 %v106
    %v410 = vunpack.c.l.b16 %v107
    %v411 = vunpack.c.l.b16 %v108
    %v412 = vunpack.c.l.b16 %v109
    %v413 = vunpack.c.l.b16 %v110
    %v414 = vunpack.c.l.b16 %v111
    %v415 = vunpack.c.l.b16 %v112
    %v416 = vunpack.c.l.b16 %v113
    %v417 = vunpack.c.l.b16 %v114
    %v418 = vunpack.c.l.b16 %v115
    %v419 = vunpack.c.l.b16 %v116
    %v420 = vunpack.c.l.b16 %v117
    %v421 = vunpack.c.l.b16 %v118
    %v422 = vunpack.c.l.b16 %v119
    %v423 = vunpack.c.l.b16 %v120
    %v424 = vunpack.c.l.b16 %v121
    %v425 = vunpack.c.l.b16 %v122
    %v426 = vunpack.c.l.b16 %v123
    %v427 = vunpack.c.l.b16 %v124
    %v428 = vunpack.c.l.b16 %v125
    %v429 = vunpack.c.l.b16 %v126
    %v430 = vunpack.c.l.b16 %v127
    %v431 = vunpack.c.l.b16 %v128
    %v432 = vunpack.c.l.b16 %v129
    %v433 = vunpack.c.l.b16 %v130
    %v434 = vunpack.c.l.b16 %v131
    %v435 = vunpack.c.l.b16 %v132
    %v436 = vunpack.c.l.b16 %v133
    %v437 = vunpack.c.l.b16 %v134
    %v438 = vunpack.c.l.b16 %v135
    %v439 = vunpack.c.l.b16 %v136
    %v440 = vunpack.c.l.b16 %v137
    %v441 = vunpack.c.l.b16 %v138
    %v442 = vunpack.c.l.b16 %v139
    %v443 = vunpack.c.l.b16 %v140
    %v444 = vunpack.c.l.b16 %v141
    %v445 = vunpack.c.l.b16 %v142
    %v446 = vunpack.c.l.b16 %v143
    %v447 = vunpack.c.l.b16 %v144
    %v448 = vunpack.c.l.b16 %v145
    %v449 = vunpack.c.l.b16 %v146
    %v450 = vunpack.c.l.b16 %v147
    %v451 = vunpack.c.l.b16 %v148
    %v452 = vunpack.c.l.b16 %v149
    %v453 = vunpack.c.l.b16 %v150
    %v454 = vunpack.c.l.b16 %v151
    %v455 = vunpack.c.l.b16 %v152
    %v456 = vunpack.c.l.b16 %v153
    %v457 = vunpack.c.l.b16 %v154
    %v458 = vunpack.c.l.b16 %v155
    %v459 = vunpack.c.l.b16 %v156
    %v460 = vunpack.c.l.b16 %v157
    %v461 = vunpack.c.l.b16 %v158
    %v462 = vunpack.c.l.b16 %v159
    %v463 = vunpack.c.l.b16 %v160
    %v464 = vunpack.c.l.b16 %v161
    %v465 = vunpack.c.l.b16 %v162
    %v466 = vunpack.c.l.b16 %v163
    %v467 = vunpack.c.l.b16 %v164
    %v468 = vunpack.c.l.b16 %v165
    %v469 = vunpack.c.l.b16 %v166
    %v470 = vunpack.c.l.b16 %v167
    %v471 = vunpack.c.l.b16 %v168
    %v472 = vunpack.c.l.b16 %v169
    %v473 = vunpack.c.l.b16 %v170
    %v474 = vunpack.c.l.b16 %v171
    %v475 = vunpack.c.l.b16 %v172
    %v476 = vunpack.c.l.b16 %v173
    %v477 = vunpack.c.l.b16 %v174
    %v478 = vunpack.c.l.b16 %v175
    %v479 = vunpack.c.l.b16 %v176
    %v480 = vunpack.c.l.b16 %v177
    %v481 = vunpack.c.l.b16 %v178
    %v482 = vunpack.c.l.b16 %v179
    %v483 = vunpack.c.l.b16 %v180
    %v484 = vunpack.c.l.b16 %v181
    %v485 = vunpack.c.l.b16 %v182
    %v486 = vunpack.c.l.b16 %v183
    %v487 = vunpack.c.l.b16 %v184
    %v488 = vunpack.c.l.b16 %v185
    %v489 = vunpack.c.l.b16 %v186
    %v490 = vunpack.c.l.b16 %v187
    %v491 = vunpack.c.l.b16 %v188
    %v492 = vunpack.c.l.b16 %v189
    %v493 = vunpack.c.l.b16 %v190
    %v494 = vunpack.c.l.b16 %v191
    %v495 = vunpack.c.l.b16 %v192
    %v496 = vunpack.c.l.b16 %v193
    %v497 = vunpack.c.l.b16 %v194
    %v498 = vunpack.c.l.b16 %v195
    %v499 = vunpack.c.l.b16 %v196
    %v500 = vunpack.c.l.b16 %v197
    %v501 = vunpack.c.l.b16 %v198
    %v502 = vunpack.c.l.b16 %v199
    %v503 = vunpack.c.l.b16 %v200
    %v504 = vunpack.c.l.b16 %v201
    %v505 = vunpack.c.l.b16 %v202
    %v506 = vunpack.c.l.b16 %v203
    %v507 = vunpack.c.l.b16 %v204
    %v508 = vunpack.c.l.b16 %v205
    %v509 = vunpack.c.l.b16 %v206
    %v510 = vunpack.c.l.b16 %v207
    %v511 = vpack.c.b16 %v384, %v383
    %v512 = vpack.c.b16 %v386, %v385
    %v513 = vpack.c.b16 %v388, %v387
    %v514 = vpack.c.b16 %v390, %v389
    %v515 = vpack.c.b16 %v392, %v391
    %v516 = vpack.c.b16 %v394, %v393
    %v517 = vpack.c.b16 %v396, %v395
    %v518 = vpack.c.b16 %v398, %v397
    %v519 = vpack.c.b16 %v400, %v399
    %v520 = vpack.c.b16 %v402, %v401
    %v521 = vpack.c.b16 %v404, %v403
    %v522 = vpack.c.b16 %v406, %v405
    %v523 = vpack.c.b16 %v408, %v407
    %v524 = vpack.c.b16 %v410, %v409
    %v525 = vpack.c.b16 %v412, %v411
    %v526 = vpack.c.b16 %v414, %v413
    %v527 = vpack.c.b16 %v416, %v415
    %v528 = vpack.c.b16 %v418, %v417
    %v529 = vpack.c.b16 %v420, %v419
    %v530 = vpack.c.b16 %v422, %v421
    %v531 = vpack.c.b16 %v424, %v423
    %v532 = vpack.c.b16 %v426, %v425
    %v533 = vpack.c.b16 %v428, %v427
    %v534 = vpack.c.b16 %v430, %v429
    %v535 = vpack.c.b16 %v432, %v431
    %v536 = vpack.c.b16 %v434, %v433
    %v537 = vpack.c.b16 %v436, %v435
    %v538 = vpack.c.b16 %v438, %v437
    %v539 = vpack.c.b16 %v440, %v439
    %v540 = vpack.c.b16 %v442, %v441
    %v541 = vpack.c.b16 %v444, %v443
    %v542 = vpack.c.b16 %v446, %v445
    %v543 = vpack.c.b16 %v448, %v447
    %v544 = vpack.c.b16 %v450, %v449
    %v545 = vpack.c.b16 %v452, %v451
    %v546 = vpack.c.b16 %v454, %v453
    %v547 = vpack.c.b16 %v456, %v455
    %v548 = vpack.c.b16 %v458, %v457
    %v549 = vpack.c.b16 %v460, %v459
    %v550 = vpack.c.b16 %v462, %v461
    %v551 = vpack.c.b16 %v464, %v463
    %v552 = vpack.c.b16 %v466, %v465
    %v553 = vpack.c.b16 %v468, %v467
    %v554 = vpack.c.b16 %v470, %v469
    %v555 = vpack.c.b16 %v472, %v471
    %v556 = vpack.c.b16 %v474, %v473
    %v557 = vpack.c.b16 %v476, %v475
    %v558 = vpack.c.b16 %v478, %v477
    %v559 = vpack.c.b16 %v480, %v479
    %v560 = vpack.c.b16 %v482, %v481
    %v561 = vpack.c.b16 %v484, %v483
    %v562 = vpack.c.b16 %v486, %v485
    %v563 = vpack.c.b16 %v488, %v487
    %v564 = vpack.c.b16 %v490, %v489
    %v565 = vpack.c.b16 %v492, %v491
    %v566 = vpack.c.b16 %v494, %v493
    %v567 = vpack.c.b16 %v496, %v495
    %v568 = vpack.c.b16 %v498, %v497
    %v569 = vpack.c.b16 %v500, %v499
    %v570 = vpack.c.b16 %v502, %v501
    %v571 = vpack.c.b16 %v504, %v503
    %v572 = vpack.c.b16 %v506, %v505
    %v573 = vpack.c.b16 %v508, %v507
    %v574 = vpack.c.b16 %v510, %v509
    %639 = vmatprep.subr.bf16.mxu0 0
    %640 = vmatpush1.bf16.msra.mxu0 %v511
    %641 = vmatprep.subr.bf16.mxu0 0
    %642 = vmatpush1.bf16.msra.mxu0 %v512
    %643 = vmatprep.subr.bf16.mxu0 0
    %644 = vmatpush1.bf16.msra.mxu0 %v513
    %645 = vmatprep.subr.bf16.mxu0 0
    %646 = vmatpush1.bf16.msra.mxu0 %v514
    %647 = vmatprep.subr.bf16.mxu0 0
    %648 = vmatpush1.bf16.msra.mxu0 %v515
    %649 = vmatprep.subr.bf16.mxu0 0
    %650 = vmatpush1.bf16.msra.mxu0 %v516
    %651 = vmatprep.subr.bf16.mxu0 0
    %652 = vmatpush1.bf16.msra.mxu0 %v517
    %653 = vmatprep.subr.bf16.mxu0 0
    %654 = vmatpush1.bf16.msra.mxu0 %v518
    %655 = vmatprep.subr.bf16.mxu0 0
    %656 = vmatpush1.bf16.msra.mxu0 %v519
    %657 = vmatprep.subr.bf16.mxu0 0
    %658 = vmatpush1.bf16.msra.mxu0 %v520
    %659 = vmatprep.subr.bf16.mxu0 0
    %660 = vmatpush1.bf16.msra.mxu0 %v521
    %661 = vmatprep.subr.bf16.mxu0 0
    %662 = vmatpush1.bf16.msra.mxu0 %v522
    %663 = vmatprep.subr.bf16.mxu0 0
    %664 = vmatpush1.bf16.msra.mxu0 %v523
    %665 = vmatprep.subr.bf16.mxu0 0
    %666 = vmatpush1.bf16.msra.mxu0 %v524
    %667 = vmatprep.subr.bf16.mxu0 0
    %668 = vmatpush1.bf16.msra.mxu0 %v525
    %669 = vmatprep.subr.bf16.mxu0 0
    %670 = vmatpush1.bf16.msra.mxu0 %v526
    %671 = vmatprep.mubr.bf16.mxu0 %v240
    %672 = vmatmul.mubr.bf16.gmra.mrb[0].mxu0 %v239
    %v673 = vpop.f32.mrb[0].mxu0
    %v674 = vadd.f32 %v213, %v673
    %v675 = vpop.f32.mrb[0].mxu0
    %v676 = vpop.f32.mrb[0].mxu0
    %v677 = vadd.f32 %v213, %v676
    %v678 = vpop.f32.mrb[0].mxu0
    %679 = vdwg.mxu0
    %680 = vmatprep.subr.bf16.mxu0 0
    %681 = vmatpush1.bf16.msra.mxu0 %v527
    %682 = vmatprep.subr.bf16.mxu0 0
    %683 = vmatpush1.bf16.msra.mxu0 %v528
    %684 = vmatprep.subr.bf16.mxu0 0
    %685 = vmatpush1.bf16.msra.mxu0 %v529
    %686 = vmatprep.subr.bf16.mxu0 0
    %687 = vmatpush1.bf16.msra.mxu0 %v530
    %688 = vmatprep.subr.bf16.mxu0 0
    %689 = vmatpush1.bf16.msra.mxu0 %v531
    %690 = vmatprep.subr.bf16.mxu0 0
    %691 = vmatpush1.bf16.msra.mxu0 %v532
    %692 = vmatprep.subr.bf16.mxu0 0
    %693 = vmatpush1.bf16.msra.mxu0 %v533
    %694 = vmatprep.subr.bf16.mxu0 0
    %695 = vmatpush1.bf16.msra.mxu0 %v534
    %696 = vmatprep.subr.bf16.mxu0 0
    %697 = vmatpush1.bf16.msra.mxu0 %v535
    %698 = vmatprep.subr.bf16.mxu0 0
    %699 = vmatpush1.bf16.msra.mxu0 %v536
    %700 = vmatprep.subr.bf16.mxu0 0
    %701 = vmatpush1.bf16.msra.mxu0 %v537
    %702 = vmatprep.subr.bf16.mxu0 0
    %703 = vmatpush1.bf16.msra.mxu0 %v538
    %704 = vmatprep.subr.bf16.mxu0 0
    %705 = vmatpush1.bf16.msra.mxu0 %v539
    %706 = vmatprep.subr.bf16.mxu0 0
    %707 = vmatpush1.bf16.msra.mxu0 %v540
    %708 = vmatprep.subr.bf16.mxu0 0
    %709 = vmatpush1.bf16.msra.mxu0 %v541
    %710 = vmatprep.subr.bf16.mxu0 0
    %711 = vmatpush1.bf16.msra.mxu0 %v542
    %712 = vmatprep.mubr.bf16.mxu0 %v242
    %713 = vmatmul.mubr.bf16.gmra.mrb[0].mxu0 %v241
    %v714 = vpop.f32.mrb[0].mxu0
    %v715 = vadd.f32 %v674, %v714
    %v716 = vpop.f32.mrb[0].mxu0
    %v717 = vpop.f32.mrb[0].mxu0
    %v718 = vadd.f32 %v677, %v717
    %v719 = vpop.f32.mrb[0].mxu0
    %720 = vdwg.mxu0
    %721 = vmatprep.subr.bf16.mxu0 0
    %722 = vmatpush1.bf16.msra.mxu0 %v543
    %723 = vmatprep.subr.bf16.mxu0 0
    %724 = vmatpush1.bf16.msra.mxu0 %v544
    %725 = vmatprep.subr.bf16.mxu0 0
    %726 = vmatpush1.bf16.msra.mxu0 %v545
    %727 = vmatprep.subr.bf16.mxu0 0
    %728 = vmatpush1.bf16.msra.mxu0 %v546
    %729 = vmatprep.subr.bf16.mxu0 0
    %730 = vmatpush1.bf16.msra.mxu0 %v547
    %731 = vmatprep.subr.bf16.mxu0 0
    %732 = vmatpush1.bf16.msra.mxu0 %v548
    %733 = vmatprep.subr.bf16.mxu0 0
    %734 = vmatpush1.bf16.msra.mxu0 %v549
    %735 = vmatprep.subr.bf16.mxu0 0
    %736 = vmatpush1.bf16.msra.mxu0 %v550
    %737 = vmatprep.subr.bf16.mxu0 0
    %738 = vmatpush1.bf16.msra.mxu0 %v551
    %739 = vmatprep.subr.bf16.mxu0 0
    %740 = vmatpush1.bf16.msra.mxu0 %v552
    %741 = vmatprep.subr.bf16.mxu0 0
    %742 = vmatpush1.bf16.msra.mxu0 %v553
    %743 = vmatprep.subr.bf16.mxu0 0
    %744 = vmatpush1.bf16.msra.mxu0 %v554
    %745 = vmatprep.subr.bf16.mxu0 0
    %746 = vmatpush1.bf16.msra.mxu0 %v555
    %747 = vmatprep.subr.bf16.mxu0 0
    %748 = vmatpush1.bf16.msra.mxu0 %v556
    %749 = vmatprep.subr.bf16.mxu0 0
    %750 = vmatpush1.bf16.msra.mxu0 %v557
    %751 = vmatprep.subr.bf16.mxu0 0
    %752 = vmatpush1.bf16.msra.mxu0 %v558
    %753 = vmatprep.mubr.bf16.mxu0 %v244
    %754 = vmatmul.mubr.bf16.gmra.mrb[0].mxu0 %v243
    %v755 = vpop.f32.mrb[0].mxu0
    %v756 = vadd.f32 %v715, %v755
    %v757 = vpop.f32.mrb[0].mxu0
    %v758 = vpop.f32.mrb[0].mxu0
    %v759 = vadd.f32 %v718, %v758
    %v760 = vpop.f32.mrb[0].mxu0
    %761 = vdwg.mxu0
    %762 = vmatprep.subr.bf16.mxu0 0
    %763 = vmatpush1.bf16.msra.mxu0 %v559
    %764 = vmatprep.subr.bf16.mxu0 0
    %765 = vmatpush1.bf16.msra.mxu0 %v560
    %766 = vmatprep.subr.bf16.mxu0 0
    %767 = vmatpush1.bf16.msra.mxu0 %v561
    %768 = vmatprep.subr.bf16.mxu0 0
    %769 = vmatpush1.bf16.msra.mxu0 %v562
    %770 = vmatprep.subr.bf16.mxu0 0
    %771 = vmatpush1.bf16.msra.mxu0 %v563
    %772 = vmatprep.subr.bf16.mxu0 0
    %773 = vmatpush1.bf16.msra.mxu0 %v564
    %774 = vmatprep.subr.bf16.mxu0 0
    %775 = vmatpush1.bf16.msra.mxu0 %v565
    %776 = vmatprep.subr.bf16.mxu0 0
    %777 = vmatpush1.bf16.msra.mxu0 %v566
    %778 = vmatprep.subr.bf16.mxu0 0
    %779 = vmatpush1.bf16.msra.mxu0 %v567
    %780 = vmatprep.subr.bf16.mxu0 0
    %781 = vmatpush1.bf16.msra.mxu0 %v568
    %782 = vmatprep.subr.bf16.mxu0 0
    %783 = vmatpush1.bf16.msra.mxu0 %v569
    %784 = vmatprep.subr.bf16.mxu0 0
    %785 = vmatpush1.bf16.msra.mxu0 %v570
    %786 = vmatprep.subr.bf16.mxu0 0
    %787 = vmatpush1.bf16.msra.mxu0 %v571
    %788 = vmatprep.subr.bf16.mxu0 0
    %789 = vmatpush1.bf16.msra.mxu0 %v572
    %790 = vmatprep.subr.bf16.mxu0 0
    %791 = vmatpush1.bf16.msra.mxu0 %v573
    %792 = vmatprep.subr.bf16.mxu0 0
    %793 = vmatpush1.bf16.msra.mxu0 %v574
    %794 = vmatprep.mubr.bf16.mxu0 %v246
    %795 = vmatmul.mubr.bf16.gmra.mrb[0].mxu0 %v245
    %v796 = vpop.f32.mrb[0].mxu0
    %v797 = vadd.f32 %v756, %v796
    %v798 = vpop.f32.mrb[0].mxu0
    %v799 = vpop.f32.mrb[0].mxu0
    %v800 = vadd.f32 %v759, %v799
    %v801 = vpop.f32.mrb[0].mxu0
    %802 = vdwg.mxu0
    %v803 = vpack.c.bf16 %v800, %v797
    %v804 = vld [vmem:[%s3] sm:$0xff]
    %v805 = vld [vmem:[%s3 + $0x8] sm:$0xff]
    %v806 = vld [vmem:[%s3 + $0x10] sm:$0xff]
    %v807 = vld [vmem:[%s3 + $0x18] sm:$0xff]
    %v808 = vld [vmem:[%s3 + $0x20] sm:$0xff]
    %v809 = vld [vmem:[%s3 + $0x28] sm:$0xff]
    %v810 = vld [vmem:[%s3 + $0x30] sm:$0xff]
    %v811 = vld [vmem:[%s3 + $0x38] sm:$0xff]
    %v812 = vld [vmem:[%s3 + $0x40] sm:$0xff]
    %v813 = vld [vmem:[%s3 + $0x48] sm:$0xff]
    %v814 = vld [vmem:[%s3 + $0x50] sm:$0xff]
    %v815 = vld [vmem:[%s3 + $0x58] sm:$0xff]
    %v816 = vld [vmem:[%s3 + $0x60] sm:$0xff]
    %v817 = vld [vmem:[%s3 + $0x68] sm:$0xff]
    %v818 = vld [vmem:[%s3 + $0x70] sm:$0xff]
    %v819 = vld [vmem:[%s3 + $0x78] sm:$0xff]
    %v820 = vld [vmem:[%s4] sm:$0x3]
    %v822 = vlaneseq
    %v823 = vshrl.u32 %v822, 7
    %v824 = vsub.s32 0, %v823
    %v825 = vrot.slane %v820, %v824
    %v826 = vlaneseq
    %v827 = vshrl.u32 %v826, 7
    %v828 = vsub.s32 1, %v827
    %v829 = vrot.slane %v820, %v828
    %v848 = vunpack.c.l.b16 %v804
    %v849 = vunpack.c.h.b16 %v804
    %v850 = vunpack.c.l.b16 %v805
    %v851 = vunpack.c.h.b16 %v805
    %v852 = vunpack.c.l.b16 %v806
    %v853 = vunpack.c.h.b16 %v806
    %v854 = vunpack.c.l.b16 %v807
    %v855 = vunpack.c.h.b16 %v807
    %v856 = vunpack.c.l.b16 %v808
    %v857 = vunpack.c.h.b16 %v808
    %v858 = vunpack.c.l.b16 %v809
    %v859 = vunpack.c.h.b16 %v809
    %v860 = vunpack.c.l.b16 %v810
    %v861 = vunpack.c.h.b16 %v810
    %v862 = vunpack.c.l.b16 %v811
    %v863 = vunpack.c.h.b16 %v811
    %v864 = vunpack.c.l.b16 %v812
    %v865 = vunpack.c.h.b16 %v812
    %v866 = vunpack.c.l.b16 %v813
    %v867 = vunpack.c.h.b16 %v813
    %v868 = vunpack.c.l.b16 %v814
    %v869 = vunpack.c.h.b16 %v814
    %v870 = vunpack.c.l.b16 %v815
    %v871 = vunpack.c.h.b16 %v815
    %v872 = vunpack.c.l.b16 %v816
    %v873 = vunpack.c.h.b16 %v816
    %v874 = vunpack.c.l.b16 %v817
    %v875 = vunpack.c.h.b16 %v817
    %v876 = vunpack.c.l.b16 %v818
    %v877 = vunpack.c.h.b16 %v818
    %v878 = vunpack.c.l.b16 %v819
    %v879 = vunpack.c.h.b16 %v819
    %v880 = vpack.c.b16 %v850, %v848
    %v881 = vpack.c.b16 %v851, %v849
    %v882 = vpack.c.b16 %v854, %v852
    %v883 = vpack.c.b16 %v855, %v853
    %v884 = vpack.c.b16 %v858, %v856
    %v885 = vpack.c.b16 %v859, %v857
    %v886 = vpack.c.b16 %v862, %v860
    %v887 = vpack.c.b16 %v863, %v861
    %v888 = vpack.c.b16 %v866, %v864
    %v889 = vpack.c.b16 %v867, %v865
    %v890 = vpack.c.b16 %v870, %v868
    %v891 = vpack.c.b16 %v871, %v869
    %v892 = vpack.c.b16 %v874, %v872
    %v893 = vpack.c.b16 %v875, %v873
    %v894 = vpack.c.b16 %v878, %v876
    %v895 = vpack.c.b16 %v879, %v877
    %912 = vmatprep.subr.bf16.mxu0 %v881
    %913 = vmatpush1.bf16.msra.mxu0 %v880
    %914 = vmatprep.subr.bf16.mxu0 %v883
    %915 = vmatpush1.bf16.msra.mxu0 %v882
    %916 = vmatprep.subr.bf16.mxu0 %v885
    %917 = vmatpush1.bf16.msra.mxu0 %v884
    %918 = vmatprep.subr.bf16.mxu0 %v887
    %919 = vmatpush1.bf16.msra.mxu0 %v886
    %920 = vmatprep.subr.bf16.mxu0 %v889
    %921 = vmatpush1.bf16.msra.mxu0 %v888
    %922 = vmatprep.subr.bf16.mxu0 %v891
    %923 = vmatpush1.bf16.msra.mxu0 %v890
    %924 = vmatprep.subr.bf16.mxu0 %v893
    %925 = vmatpush1.bf16.msra.mxu0 %v892
    %926 = vmatprep.subr.bf16.mxu0 %v895
    %927 = vmatpush1.bf16.msra.mxu0 %v894
    %928 = vmatprep.subr.bf16.mxu0 0
    %929 = vmatpush1.bf16.msra.mxu0 0
    %930 = vmatprep.subr.bf16.mxu0 0
    %931 = vmatpush1.bf16.msra.mxu0 0
    %932 = vmatprep.subr.bf16.mxu0 0
    %933 = vmatpush1.bf16.msra.mxu0 0
    %934 = vmatprep.subr.bf16.mxu0 0
    %935 = vmatpush1.bf16.msra.mxu0 0
    %936 = vmatprep.subr.bf16.mxu0 0
    %937 = vmatpush1.bf16.msra.mxu0 0
    %938 = vmatprep.subr.bf16.mxu0 0
    %939 = vmatpush1.bf16.msra.mxu0 0
    %940 = vmatprep.subr.bf16.mxu0 0
    %941 = vmatpush1.bf16.msra.mxu0 0
    %942 = vmatprep.subr.bf16.mxu0 0
    %943 = vmatpush1.bf16.msra.mxu0 0
    %944 = vmatprep.mubr.bf16.mxu0 0
    %945 = vmatmul.mubr.bf16.gmra.mrb[0].mxu0 %v803
    %v946 = vpop.f32.mrb[0].mxu0
    %v947 = vadd.f32 %v825, %v946
    %v948 = vpop.f32.mrb[0].mxu0
    %v949 = vadd.f32 %v829, %v948
    %v950 = vpop.f32.mrb[0].mxu0
    %v951 = vadd.f32 %v825, %v950
    %v952 = vpop.f32.mrb[0].mxu0
    %v953 = vadd.f32 %v829, %v952
    %954 = vdwg.mxu0
    %v955 = vld [vmem:[%s5] sm:$0xff]
    %v956 = vld [vmem:[%s5 + $0x8] sm:$0xf]
    %v957 = vld [vmem:[%s5 + $0xc] sm:$0xff]
    %v958 = vld [vmem:[%s5 + $0x14] sm:$0xf]
    %v959 = vld [vmem:[%s5 + $0x18] sm:$0xff]
    %v960 = vld [vmem:[%s5 + $0x20] sm:$0xf]
    %v961 = vld [vmem:[%s5 + $0x24] sm:$0xff]
    %v962 = vld [vmem:[%s5 + $0x2c] sm:$0xf]
    %v963 = vld [vmem:[%s5 + $0x30] sm:$0xff]
    %v964 = vld [vmem:[%s5 + $0x38] sm:$0xf]
    %v965 = vld [vmem:[%s5 + $0x3c] sm:$0xff]
    %v966 = vld [vmem:[%s5 + $0x44] sm:$0xf]
    %v967 = vld [vmem:[%s5 + $0x48] sm:$0xff]
    %v968 = vld [vmem:[%s5 + $0x50] sm:$0xf]
    %v969 = vld [vmem:[%s5 + $0x54] sm:$0xff]
    %v970 = vld [vmem:[%s5 + $0x5c] sm:$0xf]
    %v971 = vld [vmem:[%s5 + $0x60] sm:$0xff]
    %v972 = vld [vmem:[%s5 + $0x68] sm:$0xf]
    %v973 = vld [vmem:[%s5 + $0x6c] sm:$0xff]
    %v974 = vld [vmem:[%s5 + $0x74] sm:$0xf]
    %v975 = vld [vmem:[%s5 + $0x78] sm:$0xff]
    %v976 = vld [vmem:[%s5 + $0x80] sm:$0xf]
    %v977 = vld [vmem:[%s5 + $0x84] sm:$0xff]
    %v978 = vld [vmem:[%s5 + $0x8c] sm:$0xf]
    %v979 = vld [vmem:[%s5 + $0x90] sm:$0xff]
    %v980 = vld [vmem:[%s5 + $0x98] sm:$0xf]
    %v981 = vld [vmem:[%s5 + $0x9c] sm:$0xff]
    %v982 = vld [vmem:[%s5 + $0xa4] sm:$0xf]
    %v983 = vld [vmem:[%s5 + $0xa8] sm:$0xff]
    %v984 = vld [vmem:[%s5 + $0xb0] sm:$0xf]
    %v985 = vld [vmem:[%s5 + $0xb4] sm:$0xff]
    %v986 = vld [vmem:[%s5 + $0xbc] sm:$0xf]
    %v987 = vld [vmem:[%s6] sm:$0x7]
    %v989 = vlaneseq
    %v990 = vshrl.u32 %v989, 7
    %v991 = vsub.s32 0, %v990
    %v992 = vrot.slane %v987, %v991
    %v993 = vlaneseq
    %v994 = vshrl.u32 %v993, 7
    %v995 = vsub.s32 1, %v994
    %v996 = vrot.slane %v987, %v995
    %v997 = vlaneseq
    %v998 = vshrl.u32 %v997, 7
    %v999 = vsub.s32 2, %v998
    %v1000 = vrot.slane %v987, %v999
    %v1036 = vunpack.c.l.b16 %v955
    %v1037 = vunpack.c.h.b16 %v955
    %v1038 = vunpack.c.l.b16 %v956
    %v1039 = vunpack.c.l.b16 %v957
    %v1040 = vunpack.c.h.b16 %v957
    %v1041 = vunpack.c.l.b16 %v958
    %v1042 = vunpack.c.l.b16 %v959
    %v1043 = vunpack.c.h.b16 %v959
    %v1044 = vunpack.c.l.b16 %v960
    %v1045 = vunpack.c.l.b16 %v961
    %v1046 = vunpack.c.h.b16 %v961
    %v1047 = vunpack.c.l.b16 %v962
    %v1048 = vunpack.c.l.b16 %v963
    %v1049 = vunpack.c.h.b16 %v963
    %v1050 = vunpack.c.l.b16 %v964
    %v1051 = vunpack.c.l.b16 %v965
    %v1052 = vunpack.c.h.b16 %v965
    %v1053 = vunpack.c.l.b16 %v966
    %v1054 = vunpack.c.l.b16 %v967
    %v1055 = vunpack.c.h.b16 %v967
    %v1056 = vunpack.c.l.b16 %v968
    %v1057 = vunpack.c.l.b16 %v969
    %v1058 = vunpack.c.h.b16 %v969
    %v1059 = vunpack.c.l.b16 %v970
    %v1060 = vunpack.c.l.b16 %v971
    %v1061 = vunpack.c.h.b16 %v971
    %v1062 = vunpack.c.l.b16 %v972
    %v1063 = vunpack.c.l.b16 %v973
    %v1064 = vunpack.c.h.b16 %v973
    %v1065 = vunpack.c.l.b16 %v974
    %v1066 = vunpack.c.l.b16 %v975
    %v1067 = vunpack.c.h.b16 %v975
    %v1068 = vunpack.c.l.b16 %v976
    %v1069 = vunpack.c.l.b16 %v977
    %v1070 = vunpack.c.h.b16 %v977
    %v1071 = vunpack.c.l.b16 %v978
    %v1072 = vunpack.c.l.b16 %v979
    %v1073 = vunpack.c.h.b16 %v979
    %v1074 = vunpack.c.l.b16 %v980
    %v1075 = vunpack.c.l.b16 %v981
    %v1076 = vunpack.c.h.b16 %v981
    %v1077 = vunpack.c.l.b16 %v982
    %v1078 = vunpack.c.l.b16 %v983
    %v1079 = vunpack.c.h.b16 %v983
    %v1080 = vunpack.c.l.b16 %v984
    %v1081 = vunpack.c.l.b16 %v985
    %v1082 = vunpack.c.h.b16 %v985
    %v1083 = vunpack.c.l.b16 %v986
    %v1084 = vpack.c.b16 %v1039, %v1036
    %v1085 = vpack.c.b16 %v1040, %v1037
    %v1086 = vpack.c.b16 %v1041, %v1038
    %v1087 = vpack.c.b16 %v1045, %v1042
    %v1088 = vpack.c.b16 %v1046, %v1043
    %v1089 = vpack.c.b16 %v1047, %v1044
    %v1090 = vpack.c.b16 %v1051, %v1048
    %v1091 = vpack.c.b16 %v1052, %v1049
    %v1092 = vpack.c.b16 %v1053, %v1050
    %v1093 = vpack.c.b16 %v1057, %v1054
    %v1094 = vpack.c.b16 %v1058, %v1055
    %v1095 = vpack.c.b16 %v1059, %v1056
    %v1096 = vpack.c.b16 %v1063, %v1060
    %v1097 = vpack.c.b16 %v1064, %v1061
    %v1098 = vpack.c.b16 %v1065, %v1062
    %v1099 = vpack.c.b16 %v1069, %v1066
    %v1100 = vpack.c.b16 %v1070, %v1067
    %v1101 = vpack.c.b16 %v1071, %v1068
    %v1102 = vpack.c.b16 %v1075, %v1072
    %v1103 = vpack.c.b16 %v1076, %v1073
    %v1104 = vpack.c.b16 %v1077, %v1074
    %v1105 = vpack.c.b16 %v1081, %v1078
    %v1106 = vpack.c.b16 %v1082, %v1079
    %v1107 = vpack.c.b16 %v1083, %v1080
    %1132 = vmatprep.subr.bf16.mxu0 %v1085
    %1133 = vmatpush1.bf16.msra.mxu0 %v1084
    %1134 = vmatprep.subr.bf16.mxu0 %v1088
    %1135 = vmatpush1.bf16.msra.mxu0 %v1087
    %1136 = vmatprep.subr.bf16.mxu0 %v1091
    %1137 = vmatpush1.bf16.msra.mxu0 %v1090
    %1138 = vmatprep.subr.bf16.mxu0 %v1094
    %1139 = vmatpush1.bf16.msra.mxu0 %v1093
    %1140 = vmatprep.subr.bf16.mxu0 %v1097
    %1141 = vmatpush1.bf16.msra.mxu0 %v1096
    %1142 = vmatprep.subr.bf16.mxu0 %v1100
    %1143 = vmatpush1.bf16.msra.mxu0 %v1099
    %1144 = vmatprep.subr.bf16.mxu0 %v1103
    %1145 = vmatpush1.bf16.msra.mxu0 %v1102
    %1146 = vmatprep.subr.bf16.mxu0 %v1106
    %1147 = vmatpush1.bf16.msra.mxu0 %v1105
    %1148 = vmatprep.subr.bf16.mxu0 0
    %1149 = vmatpush1.bf16.msra.mxu0 0
    %1150 = vmatprep.subr.bf16.mxu0 0
    %1151 = vmatpush1.bf16.msra.mxu0 0
    %1152 = vmatprep.subr.bf16.mxu0 0
    %1153 = vmatpush1.bf16.msra.mxu0 0
    %1154 = vmatprep.subr.bf16.mxu0 0
    %1155 = vmatpush1.bf16.msra.mxu0 0
    %1156 = vmatprep.subr.bf16.mxu0 0
    %1157 = vmatpush1.bf16.msra.mxu0 0
    %1158 = vmatprep.subr.bf16.mxu0 0
    %1159 = vmatpush1.bf16.msra.mxu0 0
    %1160 = vmatprep.subr.bf16.mxu0 0
    %1161 = vmatpush1.bf16.msra.mxu0 0
    %1162 = vmatprep.subr.bf16.mxu0 0
    %1163 = vmatpush1.bf16.msra.mxu0 0
    %1164 = vmatprep.mubr.bf16.mxu0 0
    %1165 = vmatmul.mubr.bf16.gmra.mrb[0].mxu0 %v803
    %v1166 = vpop.f32.mrb[0].mxu0
    %v1167 = vadd.f32 %v992, %v1166
    %v1168 = vpop.f32.mrb[0].mxu0
    %v1169 = vadd.f32 %v996, %v1168
    %v1170 = vpop.f32.mrb[0].mxu0
    %v1171 = vadd.f32 %v992, %v1170
    %v1172 = vpop.f32.mrb[0].mxu0
    %v1173 = vadd.f32 %v996, %v1172
    %1174 = vdwg.mxu0
    %1175 = vmatprep.subr.bf16.mxu0 0
    %1176 = vmatpush1.bf16.msra.mxu0 %v1086
    %1177 = vmatprep.subr.bf16.mxu0 0
    %1178 = vmatpush1.bf16.msra.mxu0 %v1089
    %1179 = vmatprep.subr.bf16.mxu0 0
    %1180 = vmatpush1.bf16.msra.mxu0 %v1092
    %1181 = vmatprep.subr.bf16.mxu0 0
    %1182 = vmatpush1.bf16.msra.mxu0 %v1095
    %1183 = vmatprep.subr.bf16.mxu0 0
    %1184 = vmatpush1.bf16.msra.mxu0 %v1098
    %1185 = vmatprep.subr.bf16.mxu0 0
    %1186 = vmatpush1.bf16.msra.mxu0 %v1101
    %1187 = vmatprep.subr.bf16.mxu0 0
    %1188 = vmatpush1.bf16.msra.mxu0 %v1104
    %1189 = vmatprep.subr.bf16.mxu0 0
    %1190 = vmatpush1.bf16.msra.mxu0 %v1107
    %1191 = vmatprep.subr.bf16.mxu0 0
    %1192 = vmatpush1.bf16.msra.mxu0 0
    %1193 = vmatprep.subr.bf16.mxu0 0
    %1194 = vmatpush1.bf16.msra.mxu0 0
    %1195 = vmatprep.subr.bf16.mxu0 0
    %1196 = vmatpush1.bf16.msra.mxu0 0
    %1197 = vmatprep.subr.bf16.mxu0 0
    %1198 = vmatpush1.bf16.msra.mxu0 0
    %1199 = vmatprep.subr.bf16.mxu0 0
    %1200 = vmatpush1.bf16.msra.mxu0 0
    %1201 = vmatprep.subr.bf16.mxu0 0
    %1202 = vmatpush1.bf16.msra.mxu0 0
    %1203 = vmatprep.subr.bf16.mxu0 0
    %1204 = vmatpush1.bf16.msra.mxu0 0
    %1205 = vmatprep.subr.bf16.mxu0 0
    %1206 = vmatpush1.bf16.msra.mxu0 0
    %1207 = vmatprep.mubr.bf16.mxu0 0
    %1208 = vmatmul.mubr.bf16.gmra.mrb[0].mxu0 %v803
    %v1209 = vpop.f32.mrb[0].mxu0
    %v1210 = vadd.f32 %v1000, %v1209
    %v1211 = vpop.f32.mrb[0].mxu0
    %v1212 = vpop.f32.mrb[0].mxu0
    %v1213 = vadd.f32 %v1000, %v1212
    %v1214 = vpop.f32.mrb[0].mxu0
    %1215 = vdwg.mxu0
    %v1216 = vld [vmem:[%s7] sm:$0xf]
    %v1217 = vld [vmem:[%s7 + $0x4] sm:$0xf]
    %v1218 = vld [vmem:[%s7 + $0x8] sm:$0xf]
    %v1219 = vld [vmem:[%s7 + $0xc] sm:$0xf]
    %v1220 = vld [vmem:[%s7 + $0x10] sm:$0xf]
    %v1221 = vld [vmem:[%s7 + $0x14] sm:$0xf]
    %v1222 = vld [vmem:[%s7 + $0x18] sm:$0xf]
    %v1223 = vld [vmem:[%s7 + $0x1c] sm:$0xf]
    %v1224 = vld [vmem:[%s7 + $0x20] sm:$0xf]
    %v1225 = vld [vmem:[%s7 + $0x24] sm:$0xf]
    %v1226 = vld [vmem:[%s7 + $0x28] sm:$0xf]
    %v1227 = vld [vmem:[%s7 + $0x2c] sm:$0xf]
    %v1228 = vld [vmem:[%s7 + $0x30] sm:$0xf]
    %v1229 = vld [vmem:[%s7 + $0x34] sm:$0xf]
    %v1230 = vld [vmem:[%s7 + $0x38] sm:$0xf]
    %v1231 = vld [vmem:[%s7 + $0x3c] sm:$0xf]
    %v1232 = vld [vmem:[%s8] sm:$0x1]
    %v1234 = vlaneseq
    %v1235 = vshrl.u32 %v1234, 7
    %v1236 = vsub.s32 0, %v1235
    %v1237 = vrot.slane %v1232, %v1236
    %v1255 = vunpack.c.l.b16 %v1216
    %v1256 = vunpack.c.l.b16 %v1217
    %v1257 = vunpack.c.l.b16 %v1218
    %v1258 = vunpack.c.l.b16 %v1219
    %v1259 = vunpack.c.l.b16 %v1220
    %v1260 = vunpack.c.l.b16 %v1221
    %v1261 = vunpack.c.l.b16 %v1222
    %v1262 = vunpack.c.l.b16 %v1223
    %v1263 = vunpack.c.l.b16 %v1224
    %v1264 = vunpack.c.l.b16 %v1225
    %v1265 = vunpack.c.l.b16 %v1226
    %v1266 = vunpack.c.l.b16 %v1227
    %v1267 = vunpack.c.l.b16 %v1228
    %v1268 = vunpack.c.l.b16 %v1229
    %v1269 = vunpack.c.l.b16 %v1230
    %v1270 = vunpack.c.l.b16 %v1231
    %v1271 = vpack.c.b16 %v1256, %v1255
    %v1272 = vpack.c.b16 %v1258, %v1257
    %v1273 = vpack.c.b16 %v1260, %v1259
    %v1274 = vpack.c.b16 %v1262, %v1261
    %v1275 = vpack.c.b16 %v1264, %v1263
    %v1276 = vpack.c.b16 %v1266, %v1265
    %v1277 = vpack.c.b16 %v1268, %v1267
    %v1278 = vpack.c.b16 %v1270, %v1269
    %1287 = vmatprep.subr.bf16.mxu0 0
    %1288 = vmatpush1.bf16.msra.mxu0 %v1271
    %1289 = vmatprep.subr.bf16.mxu0 0
    %1290 = vmatpush1.bf16.msra.mxu0 %v1272
    %1291 = vmatprep.subr.bf16.mxu0 0
    %1292 = vmatpush1.bf16.msra.mxu0 %v1273
    %1293 = vmatprep.subr.bf16.mxu0 0
    %1294 = vmatpush1.bf16.msra.mxu0 %v1274
    %1295 = vmatprep.subr.bf16.mxu0 0
    %1296 = vmatpush1.bf16.msra.mxu0 %v1275
    %1297 = vmatprep.subr.bf16.mxu0 0
    %1298 = vmatpush1.bf16.msra.mxu0 %v1276
    %1299 = vmatprep.subr.bf16.mxu0 0
    %1300 = vmatpush1.bf16.msra.mxu0 %v1277
    %1301 = vmatprep.subr.bf16.mxu0 0
    %1302 = vmatpush1.bf16.msra.mxu0 %v1278
    %1303 = vmatprep.subr.bf16.mxu0 0
    %1304 = vmatpush1.bf16.msra.mxu0 0
    %1305 = vmatprep.subr.bf16.mxu0 0
    %1306 = vmatpush1.bf16.msra.mxu0 0
    %1307 = vmatprep.subr.bf16.mxu0 0
    %1308 = vmatpush1.bf16.msra.mxu0 0
    %1309 = vmatprep.subr.bf16.mxu0 0
    %1310 = vmatpush1.bf16.msra.mxu0 0
    %1311 = vmatprep.subr.bf16.mxu0 0
    %1312 = vmatpush1.bf16.msra.mxu0 0
    %1313 = vmatprep.subr.bf16.mxu0 0
    %1314 = vmatpush1.bf16.msra.mxu0 0
    %1315 = vmatprep.subr.bf16.mxu0 0
    %1316 = vmatpush1.bf16.msra.mxu0 0
    %1317 = vmatprep.subr.bf16.mxu0 0
    %1318 = vmatpush1.bf16.msra.mxu0 0
    %1319 = vmatprep.mubr.bf16.mxu0 0
    %1320 = vmatmul.mubr.bf16.gmra.mrb[0].mxu0 %v803
    %v1321 = vpop.f32.mrb[0].mxu0
    %v1322 = vadd.f32 %v1237, %v1321
    %v1323 = vpop.f32.mrb[0].mxu0
    %v1324 = vpop.f32.mrb[0].mxu0
    %v1325 = vadd.f32 %v1237, %v1324
    %v1326 = vpop.f32.mrb[0].mxu0
    %1327 = vdwg.mxu0
    %v1334 = vrot.slane %v1167, 5
    %v1335 = vrot.slane %v1169, 5
    %v1336 = vrot.slane %v1210, 5
    %v1337 = vrot.slane %v1171, 5
    %v1338 = vrot.slane %v1173, 5
    %v1339 = vrot.slane %v1213, 5
    %vm1346 = vcmask 1042432
    %v1347 = vsel %vm1346, 0.0, %v1334
    %v1348 = vsel %vm1346, 0.0, %v1335
    %v1349 = vsel %vm1346, 0.0, %v1336
    %v1350 = vsel %vm1346, 0.0, %v1337
    %v1351 = vsel %vm1346, 0.0, %v1338
    %v1352 = vsel %vm1346, 0.0, %v1339
    %v1353 = vld [vmem:[%s9] sm:$0xff]
    %v1354 = vld [vmem:[%s9 + $0x8] sm:$0xf]
    %v1357 = vlaneseq
    %v1358 = vshrl.u32 %v1357, 7
    %v1359 = vsub.s32 0, %v1358
    %v1360 = vrot.slane %v1353, %v1359
    %v1361 = vlaneseq
    %v1362 = vshrl.u32 %v1361, 7
    %v1363 = vsub.s32 4, %v1362
    %v1364 = vrot.slane %v1353, %v1363
    %v1365 = vlaneseq
    %v1366 = vshrl.u32 %v1365, 7
    %v1367 = vsub.s32 0, %v1366
    %v1368 = vrot.slane %v1354, %v1367
    %v1372 = vlaneseq
    %v1373 = vshrl.u32 %v1372, 7
    %v1374 = vsub.s32 0, %v1373
    %v1375 = vrot.slane %v1360, %v1374
    %v1376 = vlaneseq
    %v1377 = vshrl.u32 %v1376, 7
    %v1378 = vsub.s32 0, %v1377
    %v1379 = vrot.slane %v1364, %v1378
    %v1380 = vlaneseq
    %v1381 = vshrl.u32 %v1380, 7
    %v1382 = vsub.s32 0, %v1381
    %v1383 = vrot.slane %v1368, %v1382
    %v1384 = vmul.f32 %v1347, %v1375
    %v1385 = vmul.f32 %v1348, %v1379
    %v1386 = vmul.f32 %v1349, %v1383
    %v1387 = vmul.f32 %v1350, %v1375
    %v1388 = vmul.f32 %v1351, %v1379
    %v1389 = vmul.f32 %v1352, %v1383
    %v1390 = vadd.f32 %v1384, 0.0
    %v1391 = vadd.f32 %v1385, 0.0
    %v1392 = vadd.f32 %v1386, 0.0
    %v1393 = vadd.f32 %v1387, 0.0
    %v1394 = vadd.f32 %v1388, 0.0
    %v1395 = vadd.f32 %v1389, 0.0
    %v1396 = vlaneseq
    %v1397 = vshrl.u32 %v1396, 7
    %v1398 = vsub.s32 1, %v1397
    %v1399 = vrot.slane %v1353, %v1398
    %v1400 = vlaneseq
    %v1401 = vshrl.u32 %v1400, 7
    %v1402 = vsub.s32 5, %v1401
    %v1403 = vrot.slane %v1353, %v1402
    %v1404 = vlaneseq
    %v1405 = vshrl.u32 %v1404, 7
    %v1406 = vsub.s32 1, %v1405
    %v1407 = vrot.slane %v1354, %v1406
    %v1411 = vlaneseq
    %v1412 = vshrl.u32 %v1411, 7
    %v1413 = vsub.s32 1, %v1412
    %v1414 = vrot.slane %v1399, %v1413
    %v1415 = vlaneseq
    %v1416 = vshrl.u32 %v1415, 7
    %v1417 = vsub.s32 1, %v1416
    %v1418 = vrot.slane %v1403, %v1417
    %v1419 = vlaneseq
    %v1420 = vshrl.u32 %v1419, 7
    %v1421 = vsub.s32 1, %v1420
    %v1422 = vrot.slane %v1407, %v1421
    %v1423 = vmul.f32 %v1347, %v1414
    %v1424 = vmul.f32 %v1348, %v1418
    %v1425 = vmul.f32 %v1349, %v1422
    %v1426 = vmul.f32 %v1334, %v1414
    %v1427 = vmul.f32 %v1335, %v1418
    %v1428 = vmul.f32 %v1336, %v1422
    %v1429 = vmul.f32 %v1350, %v1414
    %v1430 = vmul.f32 %v1351, %v1418
    %v1431 = vmul.f32 %v1352, %v1422
    %v1432 = vmul.f32 %v1337, %v1414
    %v1433 = vmul.f32 %v1338, %v1418
    %v1434 = vmul.f32 %v1339, %v1422
    %vm1447 = vcmask 1046528
    %v1448 = vrot.slane %v1423, 1
    %v1449 = vrot.slane %v1426, 1
    %v1450 = vsel %vm1447, %v1448, %v1449
    %v1451 = vrot.slane %v1424, 1
    %v1452 = vrot.slane %v1427, 1
    %v1453 = vsel %vm1447, %v1451, %v1452
    %v1454 = vrot.slane %v1425, 1
    %v1455 = vrot.slane %v1428, 1
    %v1456 = vsel %vm1447, %v1454, %v1455
    %v1457 = vrot.slane %v1429, 1
    %v1458 = vrot.slane %v1432, 1
    %v1459 = vsel %vm1447, %v1457, %v1458
    %v1460 = vrot.slane %v1430, 1
    %v1461 = vrot.slane %v1433, 1
    %v1462 = vsel %vm1447, %v1460, %v1461
    %v1463 = vrot.slane %v1431, 1
    %v1464 = vrot.slane %v1434, 1
    %v1465 = vsel %vm1447, %v1463, %v1464
    %v1472 = vadd.f32 %v1390, %v1450
    %v1473 = vadd.f32 %v1391, %v1453
    %v1474 = vadd.f32 %v1392, %v1456
    %v1475 = vadd.f32 %v1393, %v1459
    %v1476 = vadd.f32 %v1394, %v1462
    %v1477 = vadd.f32 %v1395, %v1465
    %v1478 = vlaneseq
    %v1479 = vshrl.u32 %v1478, 7
    %v1480 = vsub.s32 2, %v1479
    %v1481 = vrot.slane %v1353, %v1480
    %v1482 = vlaneseq
    %v1483 = vshrl.u32 %v1482, 7
    %v1484 = vsub.s32 6, %v1483
    %v1485 = vrot.slane %v1353, %v1484
    %v1486 = vlaneseq
    %v1487 = vshrl.u32 %v1486, 7
    %v1488 = vsub.s32 2, %v1487
    %v1489 = vrot.slane %v1354, %v1488
    %v1493 = vlaneseq
    %v1494 = vshrl.u32 %v1493, 7
    %v1495 = vsub.s32 2, %v1494
    %v1496 = vrot.slane %v1481, %v1495
    %v1497 = vlaneseq
    %v1498 = vshrl.u32 %v1497, 7
    %v1499 = vsub.s32 2, %v1498
    %v1500 = vrot.slane %v1485, %v1499
    %v1501 = vlaneseq
    %v1502 = vshrl.u32 %v1501, 7
    %v1503 = vsub.s32 2, %v1502
    %v1504 = vrot.slane %v1489, %v1503
    %v1505 = vmul.f32 %v1347, %v1496
    %v1506 = vmul.f32 %v1348, %v1500
    %v1507 = vmul.f32 %v1349, %v1504
    %v1508 = vmul.f32 %v1334, %v1496
    %v1509 = vmul.f32 %v1335, %v1500
    %v1510 = vmul.f32 %v1336, %v1504
    %v1511 = vmul.f32 %v1350, %v1496
    %v1512 = vmul.f32 %v1351, %v1500
    %v1513 = vmul.f32 %v1352, %v1504
    %v1514 = vmul.f32 %v1337, %v1496
    %v1515 = vmul.f32 %v1338, %v1500
    %v1516 = vmul.f32 %v1339, %v1504
    %vm1529 = vcmask 1045504
    %v1530 = vrot.slane %v1505, 2
    %v1531 = vrot.slane %v1508, 2
    %v1532 = vsel %vm1529, %v1530, %v1531
    %v1533 = vrot.slane %v1506, 2
    %v1534 = vrot.slane %v1509, 2
    %v1535 = vsel %vm1529, %v1533, %v1534
    %v1536 = vrot.slane %v1507, 2
    %v1537 = vrot.slane %v1510, 2
    %v1538 = vsel %vm1529, %v1536, %v1537
    %v1539 = vrot.slane %v1511, 2
    %v1540 = vrot.slane %v1514, 2
    %v1541 = vsel %vm1529, %v1539, %v1540
    %v1542 = vrot.slane %v1512, 2
    %v1543 = vrot.slane %v1515, 2
    %v1544 = vsel %vm1529, %v1542, %v1543
    %v1545 = vrot.slane %v1513, 2
    %v1546 = vrot.slane %v1516, 2
    %v1547 = vsel %vm1529, %v1545, %v1546
    %v1554 = vadd.f32 %v1472, %v1532
    %v1555 = vadd.f32 %v1473, %v1535
    %v1556 = vadd.f32 %v1474, %v1538
    %v1557 = vadd.f32 %v1475, %v1541
    %v1558 = vadd.f32 %v1476, %v1544
    %v1559 = vadd.f32 %v1477, %v1547
    %v1560 = vlaneseq
    %v1561 = vshrl.u32 %v1560, 7
    %v1562 = vsub.s32 3, %v1561
    %v1563 = vrot.slane %v1353, %v1562
    %v1564 = vlaneseq
    %v1565 = vshrl.u32 %v1564, 7
    %v1566 = vsub.s32 7, %v1565
    %v1567 = vrot.slane %v1353, %v1566
    %v1568 = vlaneseq
    %v1569 = vshrl.u32 %v1568, 7
    %v1570 = vsub.s32 3, %v1569
    %v1571 = vrot.slane %v1354, %v1570
    %v1575 = vlaneseq
    %v1576 = vshrl.u32 %v1575, 7
    %v1577 = vsub.s32 3, %v1576
    %v1578 = vrot.slane %v1563, %v1577
    %v1579 = vlaneseq
    %v1580 = vshrl.u32 %v1579, 7
    %v1581 = vsub.s32 3, %v1580
    %v1582 = vrot.slane %v1567, %v1581
    %v1583 = vlaneseq
    %v1584 = vshrl.u32 %v1583, 7
    %v1585 = vsub.s32 3, %v1584
    %v1586 = vrot.slane %v1571, %v1585
    %v1587 = vmul.f32 %v1347, %v1578
    %v1588 = vmul.f32 %v1348, %v1582
    %v1589 = vmul.f32 %v1349, %v1586
    %v1590 = vmul.f32 %v1334, %v1578
    %v1591 = vmul.f32 %v1335, %v1582
    %v1592 = vmul.f32 %v1336, %v1586
    %v1593 = vmul.f32 %v1350, %v1578
    %v1594 = vmul.f32 %v1351, %v1582
    %v1595 = vmul.f32 %v1352, %v1586
    %v1596 = vmul.f32 %v1337, %v1578
    %v1597 = vmul.f32 %v1338, %v1582
    %v1598 = vmul.f32 %v1339, %v1586
    %vm1611 = vcmask 1044480
    %v1612 = vrot.slane %v1587, 3
    %v1613 = vrot.slane %v1590, 3
    %v1614 = vsel %vm1611, %v1612, %v1613
    %v1615 = vrot.slane %v1588, 3
    %v1616 = vrot.slane %v1591, 3
    %v1617 = vsel %vm1611, %v1615, %v1616
    %v1618 = vrot.slane %v1589, 3
    %v1619 = vrot.slane %v1592, 3
    %v1620 = vsel %vm1611, %v1618, %v1619
    %v1621 = vrot.slane %v1593, 3
    %v1622 = vrot.slane %v1596, 3
    %v1623 = vsel %vm1611, %v1621, %v1622
    %v1624 = vrot.slane %v1594, 3
    %v1625 = vrot.slane %v1597, 3
    %v1626 = vsel %vm1611, %v1624, %v1625
    %v1627 = vrot.slane %v1595, 3
    %v1628 = vrot.slane %v1598, 3
    %v1629 = vsel %vm1611, %v1627, %v1628
    %v1636 = vadd.f32 %v1554, %v1614
    %v1637 = vadd.f32 %v1555, %v1617
    %v1638 = vadd.f32 %v1556, %v1620
    %v1639 = vadd.f32 %v1557, %v1623
    %v1640 = vadd.f32 %v1558, %v1626
    %v1641 = vadd.f32 %v1559, %v1629
    %v1642 = vld [vmem:[%s10] sm:$0x7]
    %v1644 = vlaneseq
    %v1645 = vshrl.u32 %v1644, 7
    %v1646 = vsub.s32 0, %v1645
    %v1647 = vrot.slane %v1642, %v1646
    %v1648 = vlaneseq
    %v1649 = vshrl.u32 %v1648, 7
    %v1650 = vsub.s32 1, %v1649
    %v1651 = vrot.slane %v1642, %v1650
    %v1652 = vlaneseq
    %v1653 = vshrl.u32 %v1652, 7
    %v1654 = vsub.s32 2, %v1653
    %v1655 = vrot.slane %v1642, %v1654
    %v1659 = vadd.f32 %v1636, %v1647
    %v1660 = vadd.f32 %v1637, %v1651
    %v1661 = vadd.f32 %v1638, %v1655
    %v1662 = vadd.f32 %v1639, %v1647
    %v1663 = vadd.f32 %v1640, %v1651
    %v1664 = vadd.f32 %v1641, %v1655
    %v1665 = vxor.u32 %v1659, 2147483648
    %v1666 = vxor.u32 %v1660, 2147483648
    %v1667 = vxor.u32 %v1661, 2147483648
    %v1668 = vxor.u32 %v1662, 2147483648
    %v1669 = vxor.u32 %v1663, 2147483648
    %v1670 = vxor.u32 %v1664, 2147483648
    %v1671 = vmul.f32 %v1665, 1.442695
    %v1672 = vpow.pop %v1671
    %v1673 = vmul.f32 %v1666, 1.442695
    %v1674 = vpow.pop %v1673
    %v1675 = vmul.f32 %v1667, 1.442695
    %v1676 = vpow.pop %v1675
    %v1677 = vmul.f32 %v1668, 1.442695
    %v1678 = vpow.pop %v1677
    %v1679 = vmul.f32 %v1669, 1.442695
    %v1680 = vpow.pop %v1679
    %v1681 = vmul.f32 %v1670, 1.442695
    %v1682 = vpow.pop %v1681
    %v1683 = vadd.f32 %v1672, 1.0
    %v1684 = vadd.f32 %v1674, 1.0
    %v1685 = vadd.f32 %v1676, 1.0
    %v1686 = vadd.f32 %v1678, 1.0
    %v1687 = vadd.f32 %v1680, 1.0
    %v1688 = vadd.f32 %v1682, 1.0
    %v1689 = vrcp.pop %v1683
    %v1690 = vmul.f32 1.0, %v1689
    %v1691 = vrcp.pop %v1684
    %v1692 = vmul.f32 1.0, %v1691
    %v1693 = vrcp.pop %v1685
    %v1694 = vmul.f32 1.0, %v1693
    %v1695 = vrcp.pop %v1686
    %v1696 = vmul.f32 1.0, %v1695
    %v1697 = vrcp.pop %v1687
    %v1698 = vmul.f32 1.0, %v1697
    %v1699 = vrcp.pop %v1688
    %v1700 = vmul.f32 1.0, %v1699
    %v1701 = vmul.f32 %v1659, %v1690
    %v1702 = vmul.f32 %v1660, %v1692
    %v1703 = vmul.f32 %v1661, %v1694
    %v1704 = vmul.f32 %v1662, %v1696
    %v1705 = vmul.f32 %v1663, %v1698
    %v1706 = vmul.f32 %v1664, %v1700
    %v1707 = vld [vmem:[%s11] sm:$0x1]
    %v1709 = vlaneseq
    %v1710 = vshrl.u32 %v1709, 7
    %v1711 = vsub.s32 0, %v1710
    %v1712 = vrot.slane %v1707, %v1711
    %v1714 = vadd.f32 %v1322, %v1712
    %v1715 = vadd.f32 %v1325, %v1712
    %vm1716 = vcmp.gt.f32.partialorder %v1714, 20.0
    %vm1717 = vcmp.gt.f32.partialorder %v1715, 20.0
    %v1718 = vmin.f32 %v1714, 20.0
    %v1719 = vmin.f32 %v1715, 20.0
    %v1720 = vmul.f32 %v1718, 1.442695
    %v1721 = vpow.pop %v1720
    %v1722 = vmul.f32 %v1719, 1.442695
    %v1723 = vpow.pop %v1722
    %v1724 = vadd.f32 %v1721, 1.0
    %v1725 = vadd.f32 %v1723, 1.0
    %v1726 = vlog2.pop %v1724
    %v1727 = vmul.f32 %v1726, 0.6931472
    %v1728 = vlog2.pop %v1725
    %v1729 = vmul.f32 %v1728, 0.6931472
    %v1730 = vsel %vm1716, %v1714, %v1727
    %v1731 = vsel %vm1717, %v1715, %v1729
    %v1732 = vld [vmem:[%s12] sm:$0x1]
    %v1733 = vmul.f32 %v1732, 1.442695
    %v1734 = vpow.pop %v1733
    %v1735 = vsub.f32 0.0, %v1734
    %v1737 = vlaneseq
    %v1738 = vshrl.u32 %v1737, 7
    %v1739 = vsub.s32 0, %v1738
    %v1740 = vrot.slane %v1735, %v1739
    %v1742 = vmul.f32 %v1730, %v1740
    %v1743 = vmul.f32 %v1731, %v1740
    %v1744 = vlaneseq
    %v1745 = vshrl.u32 %v1744, 7
    %v1746 = vlaneseq
    %v1747 = vand.u32 %v1746, 127
    %vm1748 = vcmp.le.s32.totalorder %v1747, %v1745
    %v1749 = vsel %vm1748, 1, 0
    %v1750 = vcvt.s32.f32 %v1749
    %vm1751 = vcmask 64512
    %v1753 = vsel %vm1751, %v1750, 0
    %1755 = vmatprep.subr.mxu0 0.0
    %1756 = vmatpush1.msra.mxu0 %v1742
    %1757 = vmatprep.subr.mxu0 0.0
    %1758 = vmatpush1.msra.mxu0 0.0
    %1759 = vmatprep.subr.mxu0 0.0
    %1760 = vmatpush1.msra.mxu0 0.0
    %1761 = vmatprep.subr.mxu0 0.0
    %1762 = vmatpush1.msra.mxu0 0.0
    %1763 = vmatprep.subr.mxu0 0.0
    %1764 = vmatpush1.msra.mxu0 0.0
    %1765 = vmatprep.subr.mxu0 0.0
    %1766 = vmatpush1.msra.mxu0 0.0
    %1767 = vmatprep.subr.mxu0 0.0
    %1768 = vmatpush1.msra.mxu0 0.0
    %1769 = vmatprep.subr.mxu0 0.0
    %1770 = vmatpush1.msra.mxu0 0.0
    %1771 = vmatprep.subr.mxu0 0.0
    %1772 = vmatpush1.msra.mxu0 0.0
    %1773 = vmatprep.subr.mxu0 0.0
    %1774 = vmatpush1.msra.mxu0 0.0
    %1775 = vmatprep.subr.mxu0 0.0
    %1776 = vmatpush1.msra.mxu0 0.0
    %1777 = vmatprep.subr.mxu0 0.0
    %1778 = vmatpush1.msra.mxu0 0.0
    %1779 = vmatprep.subr.mxu0 0.0
    %1780 = vmatpush1.msra.mxu0 0.0
    %1781 = vmatprep.subr.mxu0 0.0
    %1782 = vmatpush1.msra.mxu0 0.0
    %1783 = vmatprep.subr.mxu0 0.0
    %1784 = vmatpush1.msra.mxu0 0.0
    %1785 = vmatprep.subr.mxu0 0.0
    %1786 = vmatpush1.msra.mxu0 0.0
    %1787 = vmatprep.subr.mxu0 0.0
    %1788 = vmatpush1.msra.mxu0 0.0
    %1789 = vmatprep.subr.mxu0 0.0
    %1790 = vmatpush1.msra.mxu0 0.0
    %1791 = vmatprep.subr.mxu0 0.0
    %1792 = vmatpush1.msra.mxu0 0.0
    %1793 = vmatprep.subr.mxu0 0.0
    %1794 = vmatpush1.msra.mxu0 0.0
    %1795 = vmatprep.subr.mxu0 0.0
    %1796 = vmatpush1.msra.mxu0 0.0
    %1797 = vmatprep.subr.mxu0 0.0
    %1798 = vmatpush1.msra.mxu0 0.0
    %1799 = vmatprep.subr.mxu0 0.0
    %1800 = vmatpush1.msra.mxu0 0.0
    %1801 = vmatprep.subr.mxu0 0.0
    %1802 = vmatpush1.msra.mxu0 0.0
    %1803 = vmatprep.subr.mxu0 0.0
    %1804 = vmatpush1.msra.mxu0 0.0
    %1805 = vmatprep.subr.mxu0 0.0
    %1806 = vmatpush1.msra.mxu0 0.0
    %1807 = vmatprep.subr.mxu0 0.0
    %1808 = vmatpush1.msra.mxu0 0.0
    %1809 = vmatprep.subr.mxu0 0.0
    %1810 = vmatpush1.msra.mxu0 0.0
    %1811 = vmatprep.subr.mxu0 0.0
    %1812 = vmatpush1.msra.mxu0 0.0
    %1813 = vmatprep.subr.mxu0 0.0
    %1814 = vmatpush1.msra.mxu0 0.0
    %1815 = vmatprep.subr.mxu0 0.0
    %1816 = vmatpush1.msra.mxu0 0.0
    %1817 = vmatprep.subr.mxu0 0.0
    %1818 = vmatpush1.msra.mxu0 0.0
    %1819 = vmatprep.mubr.f32.mxu0 0.0
    %1820 = vmatmul.mubr.f32.gmra.mrb[0].mxu0 %v1753
    %v1821 = vpop.f32.mrb[0].mxu0
    %v1822 = vadd.f32 0.0, %v1821
    %v1823 = vpop.f32.mrb[0].mxu0
    %1824 = vdwg.mxu0
    %1825 = vmatprep.subr.mxu0 0.0
    %1826 = vmatpush1.msra.mxu0 %v1743
    %1827 = vmatprep.subr.mxu0 0.0
    %1828 = vmatpush1.msra.mxu0 0.0
    %1829 = vmatprep.subr.mxu0 0.0
    %1830 = vmatpush1.msra.mxu0 0.0
    %1831 = vmatprep.subr.mxu0 0.0
    %1832 = vmatpush1.msra.mxu0 0.0
    %1833 = vmatprep.subr.mxu0 0.0
    %1834 = vmatpush1.msra.mxu0 0.0
    %1835 = vmatprep.subr.mxu0 0.0
    %1836 = vmatpush1.msra.mxu0 0.0
    %1837 = vmatprep.subr.mxu0 0.0
    %1838 = vmatpush1.msra.mxu0 0.0
    %1839 = vmatprep.subr.mxu0 0.0
    %1840 = vmatpush1.msra.mxu0 0.0
    %1841 = vmatprep.subr.mxu0 0.0
    %1842 = vmatpush1.msra.mxu0 0.0
    %1843 = vmatprep.subr.mxu0 0.0
    %1844 = vmatpush1.msra.mxu0 0.0
    %1845 = vmatprep.subr.mxu0 0.0
    %1846 = vmatpush1.msra.mxu0 0.0
    %1847 = vmatprep.subr.mxu0 0.0
    %1848 = vmatpush1.msra.mxu0 0.0
    %1849 = vmatprep.subr.mxu0 0.0
    %1850 = vmatpush1.msra.mxu0 0.0
    %1851 = vmatprep.subr.mxu0 0.0
    %1852 = vmatpush1.msra.mxu0 0.0
    %1853 = vmatprep.subr.mxu0 0.0
    %1854 = vmatpush1.msra.mxu0 0.0
    %1855 = vmatprep.subr.mxu0 0.0
    %1856 = vmatpush1.msra.mxu0 0.0
    %1857 = vmatprep.subr.mxu0 0.0
    %1858 = vmatpush1.msra.mxu0 0.0
    %1859 = vmatprep.subr.mxu0 0.0
    %1860 = vmatpush1.msra.mxu0 0.0
    %1861 = vmatprep.subr.mxu0 0.0
    %1862 = vmatpush1.msra.mxu0 0.0
    %1863 = vmatprep.subr.mxu0 0.0
    %1864 = vmatpush1.msra.mxu0 0.0
    %1865 = vmatprep.subr.mxu0 0.0
    %1866 = vmatpush1.msra.mxu0 0.0
    %1867 = vmatprep.subr.mxu0 0.0
    %1868 = vmatpush1.msra.mxu0 0.0
    %1869 = vmatprep.subr.mxu0 0.0
    %1870 = vmatpush1.msra.mxu0 0.0
    %1871 = vmatprep.subr.mxu0 0.0
    %1872 = vmatpush1.msra.mxu0 0.0
    %1873 = vmatprep.subr.mxu0 0.0
    %1874 = vmatpush1.msra.mxu0 0.0
    %1875 = vmatprep.subr.mxu0 0.0
    %1876 = vmatpush1.msra.mxu0 0.0
    %1877 = vmatprep.subr.mxu0 0.0
    %1878 = vmatpush1.msra.mxu0 0.0
    %1879 = vmatprep.subr.mxu0 0.0
    %1880 = vmatpush1.msra.mxu0 0.0
    %1881 = vmatprep.subr.mxu0 0.0
    %1882 = vmatpush1.msra.mxu0 0.0
    %1883 = vmatprep.subr.mxu0 0.0
    %1884 = vmatpush1.msra.mxu0 0.0
    %1885 = vmatprep.subr.mxu0 0.0
    %1886 = vmatpush1.msra.mxu0 0.0
    %1887 = vmatprep.subr.mxu0 0.0
    %1888 = vmatpush1.msra.mxu0 0.0
    %1889 = vmatprep.mubr.f32.mxu0 0.0
    %1890 = vmatmul.mubr.f32.gmra.mrb[0].mxu0 %v1753
    %v1891 = vpop.f32.mrb[0].mxu0
    %v1892 = vadd.f32 0.0, %v1891
    %v1893 = vpop.f32.mrb[0].mxu0
    %1894 = vdwg.mxu0
    %1896 = vrot.lane.b32.xlu0 %v1703, 112
    %v1897 = vpop.permute.xlu0 %1896
    %vm1898 = vcmask 130048
    %v1899 = vsel %vm1898, %v1897, 0
    %v1901 = vsel %vm1898, %v1703, 0
    %1903 = vmatprep.subr.mxu0 0.0
    %1904 = vmatpush1.xpose.msra.mxu0 %v1901
    %1905 = vmatprep.subr.mxu0 0.0
    %1906 = vmatpush1.xpose.msra.mxu0 0.0
    %1907 = vmatprep.subr.mxu0 0.0
    %1908 = vmatpush1.xpose.msra.mxu0 0.0
    %1909 = vmatprep.subr.mxu0 0.0
    %1910 = vmatpush1.xpose.msra.mxu0 0.0
    %1911 = vmatprep.subr.mxu0 0.0
    %1912 = vmatpush1.xpose.msra.mxu0 0.0
    %1913 = vmatprep.subr.mxu0 0.0
    %1914 = vmatpush1.xpose.msra.mxu0 0.0
    %1915 = vmatprep.subr.mxu0 0.0
    %1916 = vmatpush1.xpose.msra.mxu0 0.0
    %1917 = vmatprep.subr.mxu0 0.0
    %1918 = vmatpush1.xpose.msra.mxu0 0.0
    %1919 = vmatprep.subr.mxu0 0.0
    %1920 = vmatpush1.xpose.msra.mxu0 0.0
    %1921 = vmatprep.subr.mxu0 0.0
    %1922 = vmatpush1.xpose.msra.mxu0 0.0
    %1923 = vmatprep.subr.mxu0 0.0
    %1924 = vmatpush1.xpose.msra.mxu0 0.0
    %1925 = vmatprep.subr.mxu0 0.0
    %1926 = vmatpush1.xpose.msra.mxu0 0.0
    %1927 = vmatprep.subr.mxu0 0.0
    %1928 = vmatpush1.xpose.msra.mxu0 0.0
    %1929 = vmatprep.subr.mxu0 0.0
    %1930 = vmatpush1.xpose.msra.mxu0 0.0
    %1931 = vmatprep.subr.mxu0 0.0
    %1932 = vmatpush1.xpose.msra.mxu0 0.0
    %1933 = vmatprep.subr.mxu0 0.0
    %1934 = vmatpush1.xpose.msra.mxu0 0.0
    %1935 = vmatprep.subr.mxu0 0.0
    %1936 = vmatpush1.xpose.msra.mxu0 0.0
    %1937 = vmatprep.subr.mxu0 0.0
    %1938 = vmatpush1.xpose.msra.mxu0 0.0
    %1939 = vmatprep.subr.mxu0 0.0
    %1940 = vmatpush1.xpose.msra.mxu0 0.0
    %1941 = vmatprep.subr.mxu0 0.0
    %1942 = vmatpush1.xpose.msra.mxu0 0.0
    %1943 = vmatprep.subr.mxu0 0.0
    %1944 = vmatpush1.xpose.msra.mxu0 0.0
    %1945 = vmatprep.subr.mxu0 0.0
    %1946 = vmatpush1.xpose.msra.mxu0 0.0
    %1947 = vmatprep.subr.mxu0 0.0
    %1948 = vmatpush1.xpose.msra.mxu0 0.0
    %1949 = vmatprep.subr.mxu0 0.0
    %1950 = vmatpush1.xpose.msra.mxu0 0.0
    %1951 = vmatprep.subr.mxu0 0.0
    %1952 = vmatpush1.xpose.msra.mxu0 0.0
    %1953 = vmatprep.subr.mxu0 0.0
    %1954 = vmatpush1.xpose.msra.mxu0 0.0
    %1955 = vmatprep.subr.mxu0 0.0
    %1956 = vmatpush1.xpose.msra.mxu0 0.0
    %1957 = vmatprep.subr.mxu0 0.0
    %1958 = vmatpush1.xpose.msra.mxu0 0.0
    %1959 = vmatprep.subr.mxu0 0.0
    %1960 = vmatpush1.xpose.msra.mxu0 0.0
    %1961 = vmatprep.subr.mxu0 0.0
    %1962 = vmatpush1.xpose.msra.mxu0 0.0
    %1963 = vmatprep.subr.mxu0 0.0
    %1964 = vmatpush1.xpose.msra.mxu0 0.0
    %1965 = vmatprep.subr.mxu0 0.0
    %1966 = vmatpush1.xpose.msra.mxu0 0.0
    %1967 = vmatprep.mubr.f32.mxu0 0.0
    %1968 = vmatmul.mubr.f32.gmra.mrb[0].mxu0 %v1899
    %v1969 = vpop.f32.mrb[0].mxu0
    %v1970 = vadd.f32 0.0, %v1969
    %v1971 = vpop.f32.mrb[0].mxu0
    %1972 = vdwg.mxu0
    %1974 = vrot.lane.b32.xlu0 %v1706, 112
    %v1975 = vpop.permute.xlu0 %1974
    %v1976 = vsel %vm1898, %v1975, 0
    %v1978 = vsel %vm1898, %v1706, 0
    %1980 = vmatprep.subr.mxu0 0.0
    %1981 = vmatpush1.xpose.msra.mxu0 %v1978
    %1982 = vmatprep.subr.mxu0 0.0
    %1983 = vmatpush1.xpose.msra.mxu0 0.0
    %1984 = vmatprep.subr.mxu0 0.0
    %1985 = vmatpush1.xpose.msra.mxu0 0.0
    %1986 = vmatprep.subr.mxu0 0.0
    %1987 = vmatpush1.xpose.msra.mxu0 0.0
    %1988 = vmatprep.subr.mxu0 0.0
    %1989 = vmatpush1.xpose.msra.mxu0 0.0
    %1990 = vmatprep.subr.mxu0 0.0
    %1991 = vmatpush1.xpose.msra.mxu0 0.0
    %1992 = vmatprep.subr.mxu0 0.0
    %1993 = vmatpush1.xpose.msra.mxu0 0.0
    %1994 = vmatprep.subr.mxu0 0.0
    %1995 = vmatpush1.xpose.msra.mxu0 0.0
    %1996 = vmatprep.subr.mxu0 0.0
    %1997 = vmatpush1.xpose.msra.mxu0 0.0
    %1998 = vmatprep.subr.mxu0 0.0
    %1999 = vmatpush1.xpose.msra.mxu0 0.0
    %2000 = vmatprep.subr.mxu0 0.0
    %2001 = vmatpush1.xpose.msra.mxu0 0.0
    %2002 = vmatprep.subr.mxu0 0.0
    %2003 = vmatpush1.xpose.msra.mxu0 0.0
    %2004 = vmatprep.subr.mxu0 0.0
    %2005 = vmatpush1.xpose.msra.mxu0 0.0
    %2006 = vmatprep.subr.mxu0 0.0
    %2007 = vmatpush1.xpose.msra.mxu0 0.0
    %2008 = vmatprep.subr.mxu0 0.0
    %2009 = vmatpush1.xpose.msra.mxu0 0.0
    %2010 = vmatprep.subr.mxu0 0.0
    %2011 = vmatpush1.xpose.msra.mxu0 0.0
    %2012 = vmatprep.subr.mxu0 0.0
    %2013 = vmatpush1.xpose.msra.mxu0 0.0
    %2014 = vmatprep.subr.mxu0 0.0
    %2015 = vmatpush1.xpose.msra.mxu0 0.0
    %2016 = vmatprep.subr.mxu0 0.0
    %2017 = vmatpush1.xpose.msra.mxu0 0.0
    %2018 = vmatprep.subr.mxu0 0.0
    %2019 = vmatpush1.xpose.msra.mxu0 0.0
    %2020 = vmatprep.subr.mxu0 0.0
    %2021 = vmatpush1.xpose.msra.mxu0 0.0
    %2022 = vmatprep.subr.mxu0 0.0
    %2023 = vmatpush1.xpose.msra.mxu0 0.0
    %2024 = vmatprep.subr.mxu0 0.0
    %2025 = vmatpush1.xpose.msra.mxu0 0.0
    %2026 = vmatprep.subr.mxu0 0.0
    %2027 = vmatpush1.xpose.msra.mxu0 0.0
    %2028 = vmatprep.subr.mxu0 0.0
    %2029 = vmatpush1.xpose.msra.mxu0 0.0
    %2030 = vmatprep.subr.mxu0 0.0
    %2031 = vmatpush1.xpose.msra.mxu0 0.0
    %2032 = vmatprep.subr.mxu0 0.0
    %2033 = vmatpush1.xpose.msra.mxu0 0.0
    %2034 = vmatprep.subr.mxu0 0.0
    %2035 = vmatpush1.xpose.msra.mxu0 0.0
    %2036 = vmatprep.subr.mxu0 0.0
    %2037 = vmatpush1.xpose.msra.mxu0 0.0
    %2038 = vmatprep.subr.mxu0 0.0
    %2039 = vmatpush1.xpose.msra.mxu0 0.0
    %2040 = vmatprep.subr.mxu0 0.0
    %2041 = vmatpush1.xpose.msra.mxu0 0.0
    %2042 = vmatprep.subr.mxu0 0.0
    %2043 = vmatpush1.xpose.msra.mxu0 0.0
    %2044 = vmatprep.mubr.f32.mxu0 0.0
    %2045 = vmatmul.mubr.f32.gmra.mrb[0].mxu0 %v1976
    %v2046 = vpop.f32.mrb[0].mxu0
    %v2047 = vadd.f32 0.0, %v2046
    %v2048 = vpop.f32.mrb[0].mxu0
    %2049 = vdwg.mxu0
    %v2050 = vld [vmem:[%s13] sm:$0x1]
    %2052 = vset.pattern.permute.xlu0 0
    %2053 = vperm.xlu0 %2052, %v1822
    %v2054 = vpop.permute.xlu0 %2053
    %2057 = vset.pattern.permute.xlu0 0
    %2058 = vperm.xlu0 %2057, %v1892
    %v2059 = vpop.permute.xlu0 %2058
    %v2061 = vlaneseq
    %v2062 = vshrl.u32 %v2061, 7
    %v2063 = vsub.s32 %v1747, %v2062
    %v2064 = vrot.slane %v2054, %v2063
    %v2065 = vlaneseq
    %v2066 = vshrl.u32 %v2065, 7
    %v2067 = vsub.s32 %v1747, %v2066
    %v2068 = vrot.slane %v2059, %v2067
    %vm2069 = vcmask 1041409
    %vm2070 = vcmask 1042434
    %v2071 = vsel %vm2070, %v2064, %v2064
    %vm2072 = vcmask 1043459
    %v2073 = vsel %vm2072, %v2064, %v2071
    %vm2074 = vcmask 1044484
    %v2075 = vsel %vm2074, %v2064, %v2073
    %vm2076 = vcmask 1045509
    %v2077 = vsel %vm2076, %v2064, %v2075
    %vm2078 = vcmask 1046534
    %v2079 = vsel %vm2078, %v2064, %v2077
    %vm2080 = vcmask 1047559
    %v2081 = vsel %vm2080, %v2064, %v2079
    %v2082 = vsel %vm2070, %v2068, %v2068
    %v2083 = vsel %vm2072, %v2068, %v2082
    %v2084 = vsel %vm2074, %v2068, %v2083
    %v2085 = vsel %vm2076, %v2068, %v2084
    %v2086 = vsel %vm2078, %v2068, %v2085
    %v2087 = vsel %vm2080, %v2068, %v2086
    %v2090 = vsub.f32 %v2054, %v2081
    %v2091 = vsub.f32 %v2059, %v2087
    %vm2092 = vcmp.eq.s32.totalorder %v1749, 1
    %v2093 = vsel %vm2092, %v2090, -1e+30
    %v2094 = vsel %vm2092, %v2091, -1e+30
    %v2095 = vmul.f32 %v2093, 1.442695
    %v2096 = vpow.pop %v2095
    %v2097 = vmul.f32 %v2094, 1.442695
    %v2098 = vpow.pop %v2097
    %v2099 = vmul.f32 %v2096, %v1970
    %v2100 = vmul.f32 %v2098, %v2047
    %2103 = vset.pattern.permute.xlu0 0
    %2104 = vperm.xlu0 %2103, %v1730
    %v2105 = vpop.permute.xlu0 %2104
    %2106 = vset.pattern.permute.xlu0 0
    %2107 = vperm.xlu0 %2106, %v1731
    %v2108 = vpop.permute.xlu0 %2107
    %v2109 = vlaneseq
    %v2110 = vshrl.u32 %v2109, 7
    %v2111 = vsub.s32 %v1747, %v2110
    %v2112 = vrot.slane %v2105, %v2111
    %v2113 = vlaneseq
    %v2114 = vshrl.u32 %v2113, 7
    %v2115 = vsub.s32 %v1747, %v2114
    %v2116 = vrot.slane %v2108, %v2115
    %v2117 = vsel %vm2070, %v2112, %v2112
    %v2118 = vsel %vm2072, %v2112, %v2117
    %v2119 = vsel %vm2074, %v2112, %v2118
    %v2120 = vsel %vm2076, %v2112, %v2119
    %v2121 = vsel %vm2078, %v2112, %v2120
    %v2122 = vsel %vm2080, %v2112, %v2121
    %v2123 = vsel %vm2070, %v2116, %v2116
    %v2124 = vsel %vm2072, %v2116, %v2123
    %v2125 = vsel %vm2074, %v2116, %v2124
    %v2126 = vsel %vm2076, %v2116, %v2125
    %v2127 = vsel %vm2078, %v2116, %v2126
    %v2128 = vsel %vm2080, %v2116, %v2127
    %v2131 = vmul.f32 %v2099, %v2122
    %v2132 = vmul.f32 %v2100, %v2128
    %s2133 = vtos %v2050
    %v2134 = vstv %s2133
    %v2135 = vmul.f32 %v2134, %v1701
    %v2136 = vmul.f32 %v2134, %v1704
    %v2138 = vsel %vm1751, %v2131, 0
    %2140 = vmatprep.subr.mxu0 0.0
    %2141 = vmatpush1.msra.mxu0 %v1701
    %2142 = vmatprep.subr.mxu0 0.0
    %2143 = vmatpush1.msra.mxu0 0.0
    %2144 = vmatprep.subr.mxu0 0.0
    %2145 = vmatpush1.msra.mxu0 0.0
    %2146 = vmatprep.subr.mxu0 0.0
    %2147 = vmatpush1.msra.mxu0 0.0
    %2148 = vmatprep.subr.mxu0 0.0
    %2149 = vmatpush1.msra.mxu0 0.0
    %2150 = vmatprep.subr.mxu0 0.0
    %2151 = vmatpush1.msra.mxu0 0.0
    %2152 = vmatprep.subr.mxu0 0.0
    %2153 = vmatpush1.msra.mxu0 0.0
    %2154 = vmatprep.subr.mxu0 0.0
    %2155 = vmatpush1.msra.mxu0 0.0
    %2156 = vmatprep.subr.mxu0 0.0
    %2157 = vmatpush1.msra.mxu0 0.0
    %2158 = vmatprep.subr.mxu0 0.0
    %2159 = vmatpush1.msra.mxu0 0.0
    %2160 = vmatprep.subr.mxu0 0.0
    %2161 = vmatpush1.msra.mxu0 0.0
    %2162 = vmatprep.subr.mxu0 0.0
    %2163 = vmatpush1.msra.mxu0 0.0
    %2164 = vmatprep.subr.mxu0 0.0
    %2165 = vmatpush1.msra.mxu0 0.0
    %2166 = vmatprep.subr.mxu0 0.0
    %2167 = vmatpush1.msra.mxu0 0.0
    %2168 = vmatprep.subr.mxu0 0.0
    %2169 = vmatpush1.msra.mxu0 0.0
    %2170 = vmatprep.subr.mxu0 0.0
    %2171 = vmatpush1.msra.mxu0 0.0
    %2172 = vmatprep.subr.mxu0 0.0
    %2173 = vmatpush1.msra.mxu0 0.0
    %2174 = vmatprep.subr.mxu0 0.0
    %2175 = vmatpush1.msra.mxu0 0.0
    %2176 = vmatprep.subr.mxu0 0.0
    %2177 = vmatpush1.msra.mxu0 0.0
    %2178 = vmatprep.subr.mxu0 0.0
    %2179 = vmatpush1.msra.mxu0 0.0
    %2180 = vmatprep.subr.mxu0 0.0
    %2181 = vmatpush1.msra.mxu0 0.0
    %2182 = vmatprep.subr.mxu0 0.0
    %2183 = vmatpush1.msra.mxu0 0.0
    %2184 = vmatprep.subr.mxu0 0.0
    %2185 = vmatpush1.msra.mxu0 0.0
    %2186 = vmatprep.subr.mxu0 0.0
    %2187 = vmatpush1.msra.mxu0 0.0
    %2188 = vmatprep.subr.mxu0 0.0
    %2189 = vmatpush1.msra.mxu0 0.0
    %2190 = vmatprep.subr.mxu0 0.0
    %2191 = vmatpush1.msra.mxu0 0.0
    %2192 = vmatprep.subr.mxu0 0.0
    %2193 = vmatpush1.msra.mxu0 0.0
    %2194 = vmatprep.subr.mxu0 0.0
    %2195 = vmatpush1.msra.mxu0 0.0
    %2196 = vmatprep.subr.mxu0 0.0
    %2197 = vmatpush1.msra.mxu0 0.0
    %2198 = vmatprep.subr.mxu0 0.0
    %2199 = vmatpush1.msra.mxu0 0.0
    %2200 = vmatprep.subr.mxu0 0.0
    %2201 = vmatpush1.msra.mxu0 0.0
    %2202 = vmatprep.subr.mxu0 0.0
    %2203 = vmatpush1.msra.mxu0 0.0
    %2204 = vmatprep.mubr.f32.mxu0 0.0
    %2205 = vmatmul.mubr.f32.gmra.mrb[0].mxu0 %v2138
    %v2206 = vpop.f32.mrb[0].mxu0
    %v2207 = vadd.f32 %v2135, %v2206
    %v2208 = vpop.f32.mrb[0].mxu0
    %2209 = vdwg.mxu0
    %v2211 = vsel %vm1751, %v2132, 0
    %2213 = vmatprep.subr.mxu0 0.0
    %2214 = vmatpush1.msra.mxu0 %v1704
    %2215 = vmatprep.subr.mxu0 0.0
    %2216 = vmatpush1.msra.mxu0 0.0
    %2217 = vmatprep.subr.mxu0 0.0
    %2218 = vmatpush1.msra.mxu0 0.0
    %2219 = vmatprep.subr.mxu0 0.0
    %2220 = vmatpush1.msra.mxu0 0.0
    %2221 = vmatprep.subr.mxu0 0.0
    %2222 = vmatpush1.msra.mxu0 0.0
    %2223 = vmatprep.subr.mxu0 0.0
    %2224 = vmatpush1.msra.mxu0 0.0
    %2225 = vmatprep.subr.mxu0 0.0
    %2226 = vmatpush1.msra.mxu0 0.0
    %2227 = vmatprep.subr.mxu0 0.0
    %2228 = vmatpush1.msra.mxu0 0.0
    %2229 = vmatprep.subr.mxu0 0.0
    %2230 = vmatpush1.msra.mxu0 0.0
    %2231 = vmatprep.subr.mxu0 0.0
    %2232 = vmatpush1.msra.mxu0 0.0
    %2233 = vmatprep.subr.mxu0 0.0
    %2234 = vmatpush1.msra.mxu0 0.0
    %2235 = vmatprep.subr.mxu0 0.0
    %2236 = vmatpush1.msra.mxu0 0.0
    %2237 = vmatprep.subr.mxu0 0.0
    %2238 = vmatpush1.msra.mxu0 0.0
    %2239 = vmatprep.subr.mxu0 0.0
    %2240 = vmatpush1.msra.mxu0 0.0
    %2241 = vmatprep.subr.mxu0 0.0
    %2242 = vmatpush1.msra.mxu0 0.0
    %2243 = vmatprep.subr.mxu0 0.0
    %2244 = vmatpush1.msra.mxu0 0.0
    %2245 = vmatprep.subr.mxu0 0.0
    %2246 = vmatpush1.msra.mxu0 0.0
    %2247 = vmatprep.subr.mxu0 0.0
    %2248 = vmatpush1.msra.mxu0 0.0
    %2249 = vmatprep.subr.mxu0 0.0
    %2250 = vmatpush1.msra.mxu0 0.0
    %2251 = vmatprep.subr.mxu0 0.0
    %2252 = vmatpush1.msra.mxu0 0.0
    %2253 = vmatprep.subr.mxu0 0.0
    %2254 = vmatpush1.msra.mxu0 0.0
    %2255 = vmatprep.subr.mxu0 0.0
    %2256 = vmatpush1.msra.mxu0 0.0
    %2257 = vmatprep.subr.mxu0 0.0
    %2258 = vmatpush1.msra.mxu0 0.0
    %2259 = vmatprep.subr.mxu0 0.0
    %2260 = vmatpush1.msra.mxu0 0.0
    %2261 = vmatprep.subr.mxu0 0.0
    %2262 = vmatpush1.msra.mxu0 0.0
    %2263 = vmatprep.subr.mxu0 0.0
    %2264 = vmatpush1.msra.mxu0 0.0
    %2265 = vmatprep.subr.mxu0 0.0
    %2266 = vmatpush1.msra.mxu0 0.0
    %2267 = vmatprep.subr.mxu0 0.0
    %2268 = vmatpush1.msra.mxu0 0.0
    %2269 = vmatprep.subr.mxu0 0.0
    %2270 = vmatpush1.msra.mxu0 0.0
    %2271 = vmatprep.subr.mxu0 0.0
    %2272 = vmatpush1.msra.mxu0 0.0
    %2273 = vmatprep.subr.mxu0 0.0
    %2274 = vmatpush1.msra.mxu0 0.0
    %2275 = vmatprep.subr.mxu0 0.0
    %2276 = vmatpush1.msra.mxu0 0.0
    %2277 = vmatprep.mubr.f32.mxu0 0.0
    %2278 = vmatmul.mubr.f32.gmra.mrb[0].mxu0 %v2211
    %v2279 = vpop.f32.mrb[0].mxu0
    %v2280 = vadd.f32 %v2136, %v2279
    %v2281 = vpop.f32.mrb[0].mxu0
    %2282 = vdwg.mxu0
    %vm2283 = vcmask 523264
    %2284 = vst.msk [vmem:[#allocation2] sm:$0xff] %vm2283, %v2207
    %2285 = vst.msk [vmem:[#allocation2 + $0x10] sm:$0xff] %vm2283, %v2280
    %2286 = vset.pattern.permute.xlu0 1
    %2287 = vperm.xlu0 %2286, %v1822
    %v2288 = vpop.permute.xlu0 %2287
    %2290 = vset.pattern.permute.xlu0 1
    %2291 = vperm.xlu0 %2290, %v1892
    %v2292 = vpop.permute.xlu0 %2291
    %v2294 = vlaneseq
    %v2295 = vshrl.u32 %v2294, 7
    %v2296 = vsub.s32 %v1747, %v2295
    %v2297 = vrot.slane %v2288, %v2296
    %v2298 = vlaneseq
    %v2299 = vshrl.u32 %v2298, 7
    %v2300 = vsub.s32 %v1747, %v2299
    %v2301 = vrot.slane %v2292, %v2300
    %v2302 = vsel %vm2070, %v2297, %v2297
    %v2303 = vsel %vm2072, %v2297, %v2302
    %v2304 = vsel %vm2074, %v2297, %v2303
    %v2305 = vsel %vm2076, %v2297, %v2304
    %v2306 = vsel %vm2078, %v2297, %v2305
    %v2307 = vsel %vm2080, %v2297, %v2306
    %v2308 = vsel %vm2070, %v2301, %v2301
    %v2309 = vsel %vm2072, %v2301, %v2308
    %v2310 = vsel %vm2074, %v2301, %v2309
    %v2311 = vsel %vm2076, %v2301, %v2310
    %v2312 = vsel %vm2078, %v2301, %v2311
    %v2313 = vsel %vm2080, %v2301, %v2312
    %v2316 = vsub.f32 %v2288, %v2307
    %v2317 = vsub.f32 %v2292, %v2313
    %v2318 = vsel %vm2092, %v2316, -1e+30
    %v2319 = vsel %vm2092, %v2317, -1e+30
    %v2320 = vmul.f32 %v2318, 1.442695
    %v2321 = vpow.pop %v2320
    %v2322 = vmul.f32 %v2319, 1.442695
    %v2323 = vpow.pop %v2322
    %v2324 = vmul.f32 %v2321, %v1970
    %v2325 = vmul.f32 %v2323, %v2047
    %2326 = vset.pattern.permute.xlu0 1
    %2327 = vperm.xlu0 %2326, %v1730
    %v2328 = vpop.permute.xlu0 %2327
    %2329 = vset.pattern.permute.xlu0 1
    %2330 = vperm.xlu0 %2329, %v1731
    %v2331 = vpop.permute.xlu0 %2330
    %v2332 = vlaneseq
    %v2333 = vshrl.u32 %v2332, 7
    %v2334 = vsub.s32 %v1747, %v2333
    %v2335 = vrot.slane %v2328, %v2334
    %v2336 = vlaneseq
    %v2337 = vshrl.u32 %v2336, 7
    %v2338 = vsub.s32 %v1747, %v2337
    %v2339 = vrot.slane %v2331, %v2338
    %v2340 = vsel %vm2070, %v2335, %v2335
    %v2341 = vsel %vm2072, %v2335, %v2340
    %v2342 = vsel %vm2074, %v2335, %v2341
    %v2343 = vsel %vm2076, %v2335, %v2342
    %v2344 = vsel %vm2078, %v2335, %v2343
    %v2345 = vsel %vm2080, %v2335, %v2344
    %v2346 = vsel %vm2070, %v2339, %v2339
    %v2347 = vsel %vm2072, %v2339, %v2346
    %v2348 = vsel %vm2074, %v2339, %v2347
    %v2349 = vsel %vm2076, %v2339, %v2348
    %v2350 = vsel %vm2078, %v2339, %v2349
    %v2351 = vsel %vm2080, %v2339, %v2350
    %v2354 = vmul.f32 %v2324, %v2345
    %v2355 = vmul.f32 %v2325, %v2351
    %2356 = vrot.lane.b32.xlu0 %v2050, 127
    %v2357 = vpop.permute.xlu0 %2356
    %s2358 = vtos %v2357
    %v2359 = vstv %s2358
    %v2360 = vmul.f32 %v2359, %v1701
    %v2361 = vmul.f32 %v2359, %v1704
    %2363 = vrot.lane.b32.xlu0 %v1701, 64
    %v2364 = vpop.permute.xlu0 %2363
    %2367 = vrot.lane.b32.xlu0 %v2360, 64
    %v2368 = vpop.permute.xlu0 %2367
    %v2371 = vsel %vm1751, %v2354, 0
    %2373 = vmatprep.subr.mxu0 0.0
    %2374 = vmatpush1.msra.mxu0 %v2364
    %2375 = vmatprep.subr.mxu0 0.0
    %2376 = vmatpush1.msra.mxu0 0.0
    %2377 = vmatprep.subr.mxu0 0.0
    %2378 = vmatpush1.msra.mxu0 0.0
    %2379 = vmatprep.subr.mxu0 0.0
    %2380 = vmatpush1.msra.mxu0 0.0
    %2381 = vmatprep.subr.mxu0 0.0
    %2382 = vmatpush1.msra.mxu0 0.0
    %2383 = vmatprep.subr.mxu0 0.0
    %2384 = vmatpush1.msra.mxu0 0.0
    %2385 = vmatprep.subr.mxu0 0.0
    %2386 = vmatpush1.msra.mxu0 0.0
    %2387 = vmatprep.subr.mxu0 0.0
    %2388 = vmatpush1.msra.mxu0 0.0
    %2389 = vmatprep.subr.mxu0 0.0
    %2390 = vmatpush1.msra.mxu0 0.0
    %2391 = vmatprep.subr.mxu0 0.0
    %2392 = vmatpush1.msra.mxu0 0.0
    %2393 = vmatprep.subr.mxu0 0.0
    %2394 = vmatpush1.msra.mxu0 0.0
    %2395 = vmatprep.subr.mxu0 0.0
    %2396 = vmatpush1.msra.mxu0 0.0
    %2397 = vmatprep.subr.mxu0 0.0
    %2398 = vmatpush1.msra.mxu0 0.0
    %2399 = vmatprep.subr.mxu0 0.0
    %2400 = vmatpush1.msra.mxu0 0.0
    %2401 = vmatprep.subr.mxu0 0.0
    %2402 = vmatpush1.msra.mxu0 0.0
    %2403 = vmatprep.subr.mxu0 0.0
    %2404 = vmatpush1.msra.mxu0 0.0
    %2405 = vmatprep.subr.mxu0 0.0
    %2406 = vmatpush1.msra.mxu0 0.0
    %2407 = vmatprep.subr.mxu0 0.0
    %2408 = vmatpush1.msra.mxu0 0.0
    %2409 = vmatprep.subr.mxu0 0.0
    %2410 = vmatpush1.msra.mxu0 0.0
    %2411 = vmatprep.subr.mxu0 0.0
    %2412 = vmatpush1.msra.mxu0 0.0
    %2413 = vmatprep.subr.mxu0 0.0
    %2414 = vmatpush1.msra.mxu0 0.0
    %2415 = vmatprep.subr.mxu0 0.0
    %2416 = vmatpush1.msra.mxu0 0.0
    %2417 = vmatprep.subr.mxu0 0.0
    %2418 = vmatpush1.msra.mxu0 0.0
    %2419 = vmatprep.subr.mxu0 0.0
    %2420 = vmatpush1.msra.mxu0 0.0
    %2421 = vmatprep.subr.mxu0 0.0
    %2422 = vmatpush1.msra.mxu0 0.0
    %2423 = vmatprep.subr.mxu0 0.0
    %2424 = vmatpush1.msra.mxu0 0.0
    %2425 = vmatprep.subr.mxu0 0.0
    %2426 = vmatpush1.msra.mxu0 0.0
    %2427 = vmatprep.subr.mxu0 0.0
    %2428 = vmatpush1.msra.mxu0 0.0
    %2429 = vmatprep.subr.mxu0 0.0
    %2430 = vmatpush1.msra.mxu0 0.0
    %2431 = vmatprep.subr.mxu0 0.0
    %2432 = vmatpush1.msra.mxu0 0.0
    %2433 = vmatprep.subr.mxu0 0.0
    %2434 = vmatpush1.msra.mxu0 0.0
    %2435 = vmatprep.subr.mxu0 0.0
    %2436 = vmatpush1.msra.mxu0 0.0
    %2437 = vmatprep.mubr.f32.mxu0 0.0
    %2438 = vmatmul.mubr.f32.gmra.mrb[0].mxu0 %v2371
    %v2439 = vpop.f32.mrb[0].mxu0
    %v2440 = vadd.f32 %v2368, %v2439
    %v2441 = vpop.f32.mrb[0].mxu0
    %2442 = vdwg.mxu0
    %2444 = vrot.lane.b32.xlu0 %v1704, 64
    %v2445 = vpop.permute.xlu0 %2444
    %2448 = vrot.lane.b32.xlu0 %v2361, 64
    %v2449 = vpop.permute.xlu0 %2448
    %v2452 = vsel %vm1751, %v2355, 0
    %2454 = vmatprep.subr.mxu0 0.0
    %2455 = vmatpush1.msra.mxu0 %v2445
    %2456 = vmatprep.subr.mxu0 0.0
    %2457 = vmatpush1.msra.mxu0 0.0
    %2458 = vmatprep.subr.mxu0 0.0
    %2459 = vmatpush1.msra.mxu0 0.0
    %2460 = vmatprep.subr.mxu0 0.0
    %2461 = vmatpush1.msra.mxu0 0.0
    %2462 = vmatprep.subr.mxu0 0.0
    %2463 = vmatpush1.msra.mxu0 0.0
    %2464 = vmatprep.subr.mxu0 0.0
    %2465 = vmatpush1.msra.mxu0 0.0
    %2466 = vmatprep.subr.mxu0 0.0
    %2467 = vmatpush1.msra.mxu0 0.0
    %2468 = vmatprep.subr.mxu0 0.0
    %2469 = vmatpush1.msra.mxu0 0.0
    %2470 = vmatprep.subr.mxu0 0.0
    %2471 = vmatpush1.msra.mxu0 0.0
    %2472 = vmatprep.subr.mxu0 0.0
    %2473 = vmatpush1.msra.mxu0 0.0
    %2474 = vmatprep.subr.mxu0 0.0
    %2475 = vmatpush1.msra.mxu0 0.0
    %2476 = vmatprep.subr.mxu0 0.0
    %2477 = vmatpush1.msra.mxu0 0.0
    %2478 = vmatprep.subr.mxu0 0.0
    %2479 = vmatpush1.msra.mxu0 0.0
    %2480 = vmatprep.subr.mxu0 0.0
    %2481 = vmatpush1.msra.mxu0 0.0
    %2482 = vmatprep.subr.mxu0 0.0
    %2483 = vmatpush1.msra.mxu0 0.0
    %2484 = vmatprep.subr.mxu0 0.0
    %2485 = vmatpush1.msra.mxu0 0.0
    %2486 = vmatprep.subr.mxu0 0.0
    %2487 = vmatpush1.msra.mxu0 0.0
    %2488 = vmatprep.subr.mxu0 0.0
    %2489 = vmatpush1.msra.mxu0 0.0
    %2490 = vmatprep.subr.mxu0 0.0
    %2491 = vmatpush1.msra.mxu0 0.0
    %2492 = vmatprep.subr.mxu0 0.0
    %2493 = vmatpush1.msra.mxu0 0.0
    %2494 = vmatprep.subr.mxu0 0.0
    %2495 = vmatpush1.msra.mxu0 0.0
    %2496 = vmatprep.subr.mxu0 0.0
    %2497 = vmatpush1.msra.mxu0 0.0
    %2498 = vmatprep.subr.mxu0 0.0
    %2499 = vmatpush1.msra.mxu0 0.0
    %2500 = vmatprep.subr.mxu0 0.0
    %2501 = vmatpush1.msra.mxu0 0.0
    %2502 = vmatprep.subr.mxu0 0.0
    %2503 = vmatpush1.msra.mxu0 0.0
    %2504 = vmatprep.subr.mxu0 0.0
    %2505 = vmatpush1.msra.mxu0 0.0
    %2506 = vmatprep.subr.mxu0 0.0
    %2507 = vmatpush1.msra.mxu0 0.0
    %2508 = vmatprep.subr.mxu0 0.0
    %2509 = vmatpush1.msra.mxu0 0.0
    %2510 = vmatprep.subr.mxu0 0.0
    %2511 = vmatpush1.msra.mxu0 0.0
    %2512 = vmatprep.subr.mxu0 0.0
    %2513 = vmatpush1.msra.mxu0 0.0
    %2514 = vmatprep.subr.mxu0 0.0
    %2515 = vmatpush1.msra.mxu0 0.0
    %2516 = vmatprep.subr.mxu0 0.0
    %2517 = vmatpush1.msra.mxu0 0.0
    %2518 = vmatprep.mubr.f32.mxu0 0.0
    %2519 = vmatmul.mubr.f32.gmra.mrb[0].mxu0 %v2452
    %v2520 = vpop.f32.mrb[0].mxu0
    %v2521 = vadd.f32 %v2449, %v2520
    %v2522 = vpop.f32.mrb[0].mxu0
    %2523 = vdwg.mxu0
    %2526 = vrot.lane.b32.xlu0 %v2440, 64
    %v2527 = vpop.permute.xlu0 %2526
    %2528 = vrot.lane.b32.xlu0 %v2521, 64
    %v2529 = vpop.permute.xlu0 %2528
    %vm2532 = vcmask 1048064
    %2533 = vst.msk [vmem:[#allocation2] sm:$0xff] %vm2532, %v2527
    %2534 = vst.msk [vmem:[#allocation2 + $0x10] sm:$0xff] %vm2532, %v2529
    %2535 = vset.pattern.permute.xlu0 2
    %2536 = vperm.xlu0 %2535, %v1822
    %v2537 = vpop.permute.xlu0 %2536
    %2539 = vset.pattern.permute.xlu0 2
    %2540 = vperm.xlu0 %2539, %v1892
    %v2541 = vpop.permute.xlu0 %2540
    %v2543 = vlaneseq
    %v2544 = vshrl.u32 %v2543, 7
    %v2545 = vsub.s32 %v1747, %v2544
    %v2546 = vrot.slane %v2537, %v2545
    %v2547 = vlaneseq
    %v2548 = vshrl.u32 %v2547, 7
    %v2549 = vsub.s32 %v1747, %v2548
    %v2550 = vrot.slane %v2541, %v2549
    %v2551 = vsel %vm2070, %v2546, %v2546
    %v2552 = vsel %vm2072, %v2546, %v2551
    %v2553 = vsel %vm2074, %v2546, %v2552
    %v2554 = vsel %vm2076, %v2546, %v2553
    %v2555 = vsel %vm2078, %v2546, %v2554
    %v2556 = vsel %vm2080, %v2546, %v2555
    %v2557 = vsel %vm2070, %v2550, %v2550
    %v2558 = vsel %vm2072, %v2550, %v2557
    %v2559 = vsel %vm2074, %v2550, %v2558
    %v2560 = vsel %vm2076, %v2550, %v2559
    %v2561 = vsel %vm2078, %v2550, %v2560
    %v2562 = vsel %vm2080, %v2550, %v2561
    %v2565 = vsub.f32 %v2537, %v2556
    %v2566 = vsub.f32 %v2541, %v2562
    %v2567 = vsel %vm2092, %v2565, -1e+30
    %v2568 = vsel %vm2092, %v2566, -1e+30
    %v2569 = vmul.f32 %v2567, 1.442695
    %v2570 = vpow.pop %v2569
    %v2571 = vmul.f32 %v2568, 1.442695
    %v2572 = vpow.pop %v2571
    %v2573 = vmul.f32 %v2570, %v1970
    %v2574 = vmul.f32 %v2572, %v2047
    %2575 = vset.pattern.permute.xlu0 2
    %2576 = vperm.xlu0 %2575, %v1730
    %v2577 = vpop.permute.xlu0 %2576
    %2578 = vset.pattern.permute.xlu0 2
    %2579 = vperm.xlu0 %2578, %v1731
    %v2580 = vpop.permute.xlu0 %2579
    %v2581 = vlaneseq
    %v2582 = vshrl.u32 %v2581, 7
    %v2583 = vsub.s32 %v1747, %v2582
    %v2584 = vrot.slane %v2577, %v2583
    %v2585 = vlaneseq
    %v2586 = vshrl.u32 %v2585, 7
    %v2587 = vsub.s32 %v1747, %v2586
    %v2588 = vrot.slane %v2580, %v2587
    %v2589 = vsel %vm2070, %v2584, %v2584
    %v2590 = vsel %vm2072, %v2584, %v2589
    %v2591 = vsel %vm2074, %v2584, %v2590
    %v2592 = vsel %vm2076, %v2584, %v2591
    %v2593 = vsel %vm2078, %v2584, %v2592
    %v2594 = vsel %vm2080, %v2584, %v2593
    %v2595 = vsel %vm2070, %v2588, %v2588
    %v2596 = vsel %vm2072, %v2588, %v2595
    %v2597 = vsel %vm2074, %v2588, %v2596
    %v2598 = vsel %vm2076, %v2588, %v2597
    %v2599 = vsel %vm2078, %v2588, %v2598
    %v2600 = vsel %vm2080, %v2588, %v2599
    %v2603 = vmul.f32 %v2573, %v2594
    %v2604 = vmul.f32 %v2574, %v2600
    %2605 = vrot.lane.b32.xlu0 %v2050, 126
    %v2606 = vpop.permute.xlu0 %2605
    %s2607 = vtos %v2606
    %v2608 = vstv %s2607
    %v2609 = vmul.f32 %v2608, %v1702
    %v2610 = vmul.f32 %v2608, %v1705
    %v2612 = vsel %vm1751, %v2603, 0
    %2614 = vmatprep.subr.mxu0 0.0
    %2615 = vmatpush1.msra.mxu0 %v1702
    %2616 = vmatprep.subr.mxu0 0.0
    %2617 = vmatpush1.msra.mxu0 0.0
    %2618 = vmatprep.subr.mxu0 0.0
    %2619 = vmatpush1.msra.mxu0 0.0
    %2620 = vmatprep.subr.mxu0 0.0
    %2621 = vmatpush1.msra.mxu0 0.0
    %2622 = vmatprep.subr.mxu0 0.0
    %2623 = vmatpush1.msra.mxu0 0.0
    %2624 = vmatprep.subr.mxu0 0.0
    %2625 = vmatpush1.msra.mxu0 0.0
    %2626 = vmatprep.subr.mxu0 0.0
    %2627 = vmatpush1.msra.mxu0 0.0
    %2628 = vmatprep.subr.mxu0 0.0
    %2629 = vmatpush1.msra.mxu0 0.0
    %2630 = vmatprep.subr.mxu0 0.0
    %2631 = vmatpush1.msra.mxu0 0.0
    %2632 = vmatprep.subr.mxu0 0.0
    %2633 = vmatpush1.msra.mxu0 0.0
    %2634 = vmatprep.subr.mxu0 0.0
    %2635 = vmatpush1.msra.mxu0 0.0
    %2636 = vmatprep.subr.mxu0 0.0
    %2637 = vmatpush1.msra.mxu0 0.0
    %2638 = vmatprep.subr.mxu0 0.0
    %2639 = vmatpush1.msra.mxu0 0.0
    %2640 = vmatprep.subr.mxu0 0.0
    %2641 = vmatpush1.msra.mxu0 0.0
    %2642 = vmatprep.subr.mxu0 0.0
    %2643 = vmatpush1.msra.mxu0 0.0
    %2644 = vmatprep.subr.mxu0 0.0
    %2645 = vmatpush1.msra.mxu0 0.0
    %2646 = vmatprep.subr.mxu0 0.0
    %2647 = vmatpush1.msra.mxu0 0.0
    %2648 = vmatprep.subr.mxu0 0.0
    %2649 = vmatpush1.msra.mxu0 0.0
    %2650 = vmatprep.subr.mxu0 0.0
    %2651 = vmatpush1.msra.mxu0 0.0
    %2652 = vmatprep.subr.mxu0 0.0
    %2653 = vmatpush1.msra.mxu0 0.0
    %2654 = vmatprep.subr.mxu0 0.0
    %2655 = vmatpush1.msra.mxu0 0.0
    %2656 = vmatprep.subr.mxu0 0.0
    %2657 = vmatpush1.msra.mxu0 0.0
    %2658 = vmatprep.subr.mxu0 0.0
    %2659 = vmatpush1.msra.mxu0 0.0
    %2660 = vmatprep.subr.mxu0 0.0
    %2661 = vmatpush1.msra.mxu0 0.0
    %2662 = vmatprep.subr.mxu0 0.0
    %2663 = vmatpush1.msra.mxu0 0.0
    %2664 = vmatprep.subr.mxu0 0.0
    %2665 = vmatpush1.msra.mxu0 0.0
    %2666 = vmatprep.subr.mxu0 0.0
    %2667 = vmatpush1.msra.mxu0 0.0
    %2668 = vmatprep.subr.mxu0 0.0
    %2669 = vmatpush1.msra.mxu0 0.0
    %2670 = vmatprep.subr.mxu0 0.0
    %2671 = vmatpush1.msra.mxu0 0.0
    %2672 = vmatprep.subr.mxu0 0.0
    %2673 = vmatpush1.msra.mxu0 0.0
    %2674 = vmatprep.subr.mxu0 0.0
    %2675 = vmatpush1.msra.mxu0 0.0
    %2676 = vmatprep.subr.mxu0 0.0
    %2677 = vmatpush1.msra.mxu0 0.0
    %2678 = vmatprep.mubr.f32.mxu0 0.0
    %2679 = vmatmul.mubr.f32.gmra.mrb[0].mxu0 %v2612
    %v2680 = vpop.f32.mrb[0].mxu0
    %v2681 = vadd.f32 %v2609, %v2680
    %v2682 = vpop.f32.mrb[0].mxu0
    %2683 = vdwg.mxu0
    %v2685 = vsel %vm1751, %v2604, 0
    %2687 = vmatprep.subr.mxu0 0.0
    %2688 = vmatpush1.msra.mxu0 %v1705
    %2689 = vmatprep.subr.mxu0 0.0
    %2690 = vmatpush1.msra.mxu0 0.0
    %2691 = vmatprep.subr.mxu0 0.0
    %2692 = vmatpush1.msra.mxu0 0.0
    %2693 = vmatprep.subr.mxu0 0.0
    %2694 = vmatpush1.msra.mxu0 0.0
    %2695 = vmatprep.subr.mxu0 0.0
    %2696 = vmatpush1.msra.mxu0 0.0
    %2697 = vmatprep.subr.mxu0 0.0
    %2698 = vmatpush1.msra.mxu0 0.0
    %2699 = vmatprep.subr.mxu0 0.0
    %2700 = vmatpush1.msra.mxu0 0.0
    %2701 = vmatprep.subr.mxu0 0.0
    %2702 = vmatpush1.msra.mxu0 0.0
    %2703 = vmatprep.subr.mxu0 0.0
    %2704 = vmatpush1.msra.mxu0 0.0
    %2705 = vmatprep.subr.mxu0 0.0
    %2706 = vmatpush1.msra.mxu0 0.0
    %2707 = vmatprep.subr.mxu0 0.0
    %2708 = vmatpush1.msra.mxu0 0.0
    %2709 = vmatprep.subr.mxu0 0.0
    %2710 = vmatpush1.msra.mxu0 0.0
    %2711 = vmatprep.subr.mxu0 0.0
    %2712 = vmatpush1.msra.mxu0 0.0
    %2713 = vmatprep.subr.mxu0 0.0
    %2714 = vmatpush1.msra.mxu0 0.0
    %2715 = vmatprep.subr.mxu0 0.0
    %2716 = vmatpush1.msra.mxu0 0.0
    %2717 = vmatprep.subr.mxu0 0.0
    %2718 = vmatpush1.msra.mxu0 0.0
    %2719 = vmatprep.subr.mxu0 0.0
    %2720 = vmatpush1.msra.mxu0 0.0
    %2721 = vmatprep.subr.mxu0 0.0
    %2722 = vmatpush1.msra.mxu0 0.0
    %2723 = vmatprep.subr.mxu0 0.0
    %2724 = vmatpush1.msra.mxu0 0.0
    %2725 = vmatprep.subr.mxu0 0.0
    %2726 = vmatpush1.msra.mxu0 0.0
    %2727 = vmatprep.subr.mxu0 0.0
    %2728 = vmatpush1.msra.mxu0 0.0
    %2729 = vmatprep.subr.mxu0 0.0
    %2730 = vmatpush1.msra.mxu0 0.0
    %2731 = vmatprep.subr.mxu0 0.0
    %2732 = vmatpush1.msra.mxu0 0.0
    %2733 = vmatprep.subr.mxu0 0.0
    %2734 = vmatpush1.msra.mxu0 0.0
    %2735 = vmatprep.subr.mxu0 0.0
    %2736 = vmatpush1.msra.mxu0 0.0
    %2737 = vmatprep.subr.mxu0 0.0
    %2738 = vmatpush1.msra.mxu0 0.0
    %2739 = vmatprep.subr.mxu0 0.0
    %2740 = vmatpush1.msra.mxu0 0.0
    %2741 = vmatprep.subr.mxu0 0.0
    %2742 = vmatpush1.msra.mxu0 0.0
    %2743 = vmatprep.subr.mxu0 0.0
    %2744 = vmatpush1.msra.mxu0 0.0
    %2745 = vmatprep.subr.mxu0 0.0
    %2746 = vmatpush1.msra.mxu0 0.0
    %2747 = vmatprep.subr.mxu0 0.0
    %2748 = vmatpush1.msra.mxu0 0.0
    %2749 = vmatprep.subr.mxu0 0.0
    %2750 = vmatpush1.msra.mxu0 0.0
    %2751 = vmatprep.mubr.f32.mxu0 0.0
    %2752 = vmatmul.mubr.f32.gmra.mrb[0].mxu0 %v2685
    %v2753 = vpop.f32.mrb[0].mxu0
    %v2754 = vadd.f32 %v2610, %v2753
    %v2755 = vpop.f32.mrb[0].mxu0
    %2756 = vdwg.mxu0
    %2757 = vst.msk [vmem:[#allocation2 + $0x8] sm:$0xff] %vm2283, %v2681
    %2758 = vst.msk [vmem:[#allocation2 + $0x18] sm:$0xff] %vm2283, %v2754
    %2759 = vset.pattern.permute.xlu0 3
    %2760 = vperm.xlu0 %2759, %v1822
    %v2761 = vpop.permute.xlu0 %2760
    %2763 = vset.pattern.permute.xlu0 3
    %2764 = vperm.xlu0 %2763, %v1892
    %v2765 = vpop.permute.xlu0 %2764
    %v2767 = vlaneseq
    %v2768 = vshrl.u32 %v2767, 7
    %v2769 = vsub.s32 %v1747, %v2768
    %v2770 = vrot.slane %v2761, %v2769
    %v2771 = vlaneseq
    %v2772 = vshrl.u32 %v2771, 7
    %v2773 = vsub.s32 %v1747, %v2772
    %v2774 = vrot.slane %v2765, %v2773
    %v2775 = vsel %vm2070, %v2770, %v2770
    %v2776 = vsel %vm2072, %v2770, %v2775
    %v2777 = vsel %vm2074, %v2770, %v2776
    %v2778 = vsel %vm2076, %v2770, %v2777
    %v2779 = vsel %vm2078, %v2770, %v2778
    %v2780 = vsel %vm2080, %v2770, %v2779
    %v2781 = vsel %vm2070, %v2774, %v2774
    %v2782 = vsel %vm2072, %v2774, %v2781
    %v2783 = vsel %vm2074, %v2774, %v2782
    %v2784 = vsel %vm2076, %v2774, %v2783
    %v2785 = vsel %vm2078, %v2774, %v2784
    %v2786 = vsel %vm2080, %v2774, %v2785
    %v2789 = vsub.f32 %v2761, %v2780
    %v2790 = vsub.f32 %v2765, %v2786
    %v2791 = vsel %vm2092, %v2789, -1e+30
    %v2792 = vsel %vm2092, %v2790, -1e+30
    %v2793 = vmul.f32 %v2791, 1.442695
    %v2794 = vpow.pop %v2793
    %v2795 = vmul.f32 %v2792, 1.442695
    %v2796 = vpow.pop %v2795
    %v2797 = vmul.f32 %v2794, %v1970
    %v2798 = vmul.f32 %v2796, %v2047
    %2799 = vset.pattern.permute.xlu0 3
    %2800 = vperm.xlu0 %2799, %v1730
    %v2801 = vpop.permute.xlu0 %2800
    %2802 = vset.pattern.permute.xlu0 3
    %2803 = vperm.xlu0 %2802, %v1731
    %v2804 = vpop.permute.xlu0 %2803
    %v2805 = vlaneseq
    %v2806 = vshrl.u32 %v2805, 7
    %v2807 = vsub.s32 %v1747, %v2806
    %v2808 = vrot.slane %v2801, %v2807
    %v2809 = vlaneseq
    %v2810 = vshrl.u32 %v2809, 7
    %v2811 = vsub.s32 %v1747, %v2810
    %v2812 = vrot.slane %v2804, %v2811
    %v2813 = vsel %vm2070, %v2808, %v2808
    %v2814 = vsel %vm2072, %v2808, %v2813
    %v2815 = vsel %vm2074, %v2808, %v2814
    %v2816 = vsel %vm2076, %v2808, %v2815
    %v2817 = vsel %vm2078, %v2808, %v2816
    %v2818 = vsel %vm2080, %v2808, %v2817
    %v2819 = vsel %vm2070, %v2812, %v2812
    %v2820 = vsel %vm2072, %v2812, %v2819
    %v2821 = vsel %vm2074, %v2812, %v2820
    %v2822 = vsel %vm2076, %v2812, %v2821
    %v2823 = vsel %vm2078, %v2812, %v2822
    %v2824 = vsel %vm2080, %v2812, %v2823
    %v2827 = vmul.f32 %v2797, %v2818
    %v2828 = vmul.f32 %v2798, %v2824
    %2829 = vrot.lane.b32.xlu0 %v2050, 125
    %v2830 = vpop.permute.xlu0 %2829
    %s2831 = vtos %v2830
    %v2832 = vstv %s2831
    %v2833 = vmul.f32 %v2832, %v1702
    %v2834 = vmul.f32 %v2832, %v1705
    %2836 = vrot.lane.b32.xlu0 %v1702, 64
    %v2837 = vpop.permute.xlu0 %2836
    %2840 = vrot.lane.b32.xlu0 %v2833, 64
    %v2841 = vpop.permute.xlu0 %2840
    %v2844 = vsel %vm1751, %v2827, 0
    %2846 = vmatprep.subr.mxu0 0.0
    %2847 = vmatpush1.msra.mxu0 %v2837
    %2848 = vmatprep.subr.mxu0 0.0
    %2849 = vmatpush1.msra.mxu0 0.0
    %2850 = vmatprep.subr.mxu0 0.0
    %2851 = vmatpush1.msra.mxu0 0.0
    %2852 = vmatprep.subr.mxu0 0.0
    %2853 = vmatpush1.msra.mxu0 0.0
    %2854 = vmatprep.subr.mxu0 0.0
    %2855 = vmatpush1.msra.mxu0 0.0
    %2856 = vmatprep.subr.mxu0 0.0
    %2857 = vmatpush1.msra.mxu0 0.0
    %2858 = vmatprep.subr.mxu0 0.0
    %2859 = vmatpush1.msra.mxu0 0.0
    %2860 = vmatprep.subr.mxu0 0.0
    %2861 = vmatpush1.msra.mxu0 0.0
    %2862 = vmatprep.subr.mxu0 0.0
    %2863 = vmatpush1.msra.mxu0 0.0
    %2864 = vmatprep.subr.mxu0 0.0
    %2865 = vmatpush1.msra.mxu0 0.0
    %2866 = vmatprep.subr.mxu0 0.0
    %2867 = vmatpush1.msra.mxu0 0.0
    %2868 = vmatprep.subr.mxu0 0.0
    %2869 = vmatpush1.msra.mxu0 0.0
    %2870 = vmatprep.subr.mxu0 0.0
    %2871 = vmatpush1.msra.mxu0 0.0
    %2872 = vmatprep.subr.mxu0 0.0
    %2873 = vmatpush1.msra.mxu0 0.0
    %2874 = vmatprep.subr.mxu0 0.0
    %2875 = vmatpush1.msra.mxu0 0.0
    %2876 = vmatprep.subr.mxu0 0.0
    %2877 = vmatpush1.msra.mxu0 0.0
    %2878 = vmatprep.subr.mxu0 0.0
    %2879 = vmatpush1.msra.mxu0 0.0
    %2880 = vmatprep.subr.mxu0 0.0
    %2881 = vmatpush1.msra.mxu0 0.0
    %2882 = vmatprep.subr.mxu0 0.0
    %2883 = vmatpush1.msra.mxu0 0.0
    %2884 = vmatprep.subr.mxu0 0.0
    %2885 = vmatpush1.msra.mxu0 0.0
    %2886 = vmatprep.subr.mxu0 0.0
    %2887 = vmatpush1.msra.mxu0 0.0
    %2888 = vmatprep.subr.mxu0 0.0
    %2889 = vmatpush1.msra.mxu0 0.0
    %2890 = vmatprep.subr.mxu0 0.0
    %2891 = vmatpush1.msra.mxu0 0.0
    %2892 = vmatprep.subr.mxu0 0.0
    %2893 = vmatpush1.msra.mxu0 0.0
    %2894 = vmatprep.subr.mxu0 0.0
    %2895 = vmatpush1.msra.mxu0 0.0
    %2896 = vmatprep.subr.mxu0 0.0
    %2897 = vmatpush1.msra.mxu0 0.0
    %2898 = vmatprep.subr.mxu0 0.0
    %2899 = vmatpush1.msra.mxu0 0.0
    %2900 = vmatprep.subr.mxu0 0.0
    %2901 = vmatpush1.msra.mxu0 0.0
    %2902 = vmatprep.subr.mxu0 0.0
    %2903 = vmatpush1.msra.mxu0 0.0
    %2904 = vmatprep.subr.mxu0 0.0
    %2905 = vmatpush1.msra.mxu0 0.0
    %2906 = vmatprep.subr.mxu0 0.0
    %2907 = vmatpush1.msra.mxu0 0.0
    %2908 = vmatprep.subr.mxu0 0.0
    %2909 = vmatpush1.msra.mxu0 0.0
    %2910 = vmatprep.mubr.f32.mxu0 0.0
    %2911 = vmatmul.mubr.f32.gmra.mrb[0].mxu0 %v2844
    %v2912 = vpop.f32.mrb[0].mxu0
    %v2913 = vadd.f32 %v2841, %v2912
    %v2914 = vpop.f32.mrb[0].mxu0
    %2915 = vdwg.mxu0
    %2917 = vrot.lane.b32.xlu0 %v1705, 64
    %v2918 = vpop.permute.xlu0 %2917
    %2921 = vrot.lane.b32.xlu0 %v2834, 64
    %v2922 = vpop.permute.xlu0 %2921
    %v2925 = vsel %vm1751, %v2828, 0
    %2927 = vmatprep.subr.mxu0 0.0
    %2928 = vmatpush1.msra.mxu0 %v2918
    %2929 = vmatprep.subr.mxu0 0.0
    %2930 = vmatpush1.msra.mxu0 0.0
    %2931 = vmatprep.subr.mxu0 0.0
    %2932 = vmatpush1.msra.mxu0 0.0
    %2933 = vmatprep.subr.mxu0 0.0
    %2934 = vmatpush1.msra.mxu0 0.0
    %2935 = vmatprep.subr.mxu0 0.0
    %2936 = vmatpush1.msra.mxu0 0.0
    %2937 = vmatprep.subr.mxu0 0.0
    %2938 = vmatpush1.msra.mxu0 0.0
    %2939 = vmatprep.subr.mxu0 0.0
    %2940 = vmatpush1.msra.mxu0 0.0
    %2941 = vmatprep.subr.mxu0 0.0
    %2942 = vmatpush1.msra.mxu0 0.0
    %2943 = vmatprep.subr.mxu0 0.0
    %2944 = vmatpush1.msra.mxu0 0.0
    %2945 = vmatprep.subr.mxu0 0.0
    %2946 = vmatpush1.msra.mxu0 0.0
    %2947 = vmatprep.subr.mxu0 0.0
    %2948 = vmatpush1.msra.mxu0 0.0
    %2949 = vmatprep.subr.mxu0 0.0
    %2950 = vmatpush1.msra.mxu0 0.0
    %2951 = vmatprep.subr.mxu0 0.0
    %2952 = vmatpush1.msra.mxu0 0.0
    %2953 = vmatprep.subr.mxu0 0.0
    %2954 = vmatpush1.msra.mxu0 0.0
    %2955 = vmatprep.subr.mxu0 0.0
    %2956 = vmatpush1.msra.mxu0 0.0
    %2957 = vmatprep.subr.mxu0 0.0
    %2958 = vmatpush1.msra.mxu0 0.0
    %2959 = vmatprep.subr.mxu0 0.0
    %2960 = vmatpush1.msra.mxu0 0.0
    %2961 = vmatprep.subr.mxu0 0.0
    %2962 = vmatpush1.msra.mxu0 0.0
    %2963 = vmatprep.subr.mxu0 0.0
    %2964 = vmatpush1.msra.mxu0 0.0
    %2965 = vmatprep.subr.mxu0 0.0
    %2966 = vmatpush1.msra.mxu0 0.0
    %2967 = vmatprep.subr.mxu0 0.0
    %2968 = vmatpush1.msra.mxu0 0.0
    %2969 = vmatprep.subr.mxu0 0.0
    %2970 = vmatpush1.msra.mxu0 0.0
    %2971 = vmatprep.subr.mxu0 0.0
    %2972 = vmatpush1.msra.mxu0 0.0
    %2973 = vmatprep.subr.mxu0 0.0
    %2974 = vmatpush1.msra.mxu0 0.0
    %2975 = vmatprep.subr.mxu0 0.0
    %2976 = vmatpush1.msra.mxu0 0.0
    %2977 = vmatprep.subr.mxu0 0.0
    %2978 = vmatpush1.msra.mxu0 0.0
    %2979 = vmatprep.subr.mxu0 0.0
    %2980 = vmatpush1.msra.mxu0 0.0
    %2981 = vmatprep.subr.mxu0 0.0
    %2982 = vmatpush1.msra.mxu0 0.0
    %2983 = vmatprep.subr.mxu0 0.0
    %2984 = vmatpush1.msra.mxu0 0.0
    %2985 = vmatprep.subr.mxu0 0.0
    %2986 = vmatpush1.msra.mxu0 0.0
    %2987 = vmatprep.subr.mxu0 0.0
    %2988 = vmatpush1.msra.mxu0 0.0
    %2989 = vmatprep.subr.mxu0 0.0
    %2990 = vmatpush1.msra.mxu0 0.0
    %2991 = vmatprep.mubr.f32.mxu0 0.0
    %2992 = vmatmul.mubr.f32.gmra.mrb[0].mxu0 %v2925
    %v2993 = vpop.f32.mrb[0].mxu0
    %v2994 = vadd.f32 %v2922, %v2993
    %v2995 = vpop.f32.mrb[0].mxu0
    %2996 = vdwg.mxu0
    %2999 = vrot.lane.b32.xlu0 %v2913, 64
    %v3000 = vpop.permute.xlu0 %2999
    %3001 = vrot.lane.b32.xlu0 %v2994, 64
    %v3002 = vpop.permute.xlu0 %3001
    %3005 = vst.msk [vmem:[#allocation2 + $0x8] sm:$0xff] %vm2532, %v3000
    %3006 = vst.msk [vmem:[#allocation2 + $0x18] sm:$0xff] %vm2532, %v3002
    %v3007 = vld [vmem:[#allocation2] sm:$0xff]
    %v3008 = vld [vmem:[#allocation2 + $0x8] sm:$0xff]
    %v3009 = vld [vmem:[#allocation2 + $0x10] sm:$0xff]
    %v3010 = vld [vmem:[#allocation2 + $0x18] sm:$0xff]
    %v3011 = vxor.u32 %v947, 2147483648
    %v3012 = vxor.u32 %v949, 2147483648
    %v3013 = vxor.u32 %v951, 2147483648
    %v3014 = vxor.u32 %v953, 2147483648
    %v3015 = vmul.f32 %v3011, 1.442695
    %v3016 = vpow.pop %v3015
    %v3017 = vmul.f32 %v3012, 1.442695
    %v3018 = vpow.pop %v3017
    %v3019 = vmul.f32 %v3013, 1.442695
    %v3020 = vpow.pop %v3019
    %v3021 = vmul.f32 %v3014, 1.442695
    %v3022 = vpow.pop %v3021
    %v3023 = vadd.f32 %v3016, 1.0
    %v3024 = vadd.f32 %v3018, 1.0
    %v3025 = vadd.f32 %v3020, 1.0
    %v3026 = vadd.f32 %v3022, 1.0
    %v3027 = vrcp.pop %v3023
    %v3028 = vmul.f32 1.0, %v3027
    %v3029 = vrcp.pop %v3024
    %v3030 = vmul.f32 1.0, %v3029
    %v3031 = vrcp.pop %v3025
    %v3032 = vmul.f32 1.0, %v3031
    %v3033 = vrcp.pop %v3026
    %v3034 = vmul.f32 1.0, %v3033
    %v3035 = vmul.f32 %v947, %v3028
    %v3036 = vmul.f32 %v949, %v3030
    %v3037 = vmul.f32 %v951, %v3032
    %v3038 = vmul.f32 %v953, %v3034
    %v3039 = vmul.f32 %v3007, %v3035
    %v3040 = vmul.f32 %v3008, %v3036
    %v3041 = vmul.f32 %v3009, %v3037
    %v3042 = vmul.f32 %v3010, %v3038
    %v3043 = vmul.f32 %v3039, %v3039
    %v3044 = vmul.f32 %v3040, %v3040
    %v3045 = vmul.f32 %v3041, %v3041
    %v3046 = vmul.f32 %v3042, %v3042
    %v3047 = vadd.f32 %v3043, %v3044
    %3048 = vadd.xlane.f32.xlu0 %v3047
    %v3049 = vpop.xlane.xlu0 %3048
    %v3050 = vadd.f32 %v3045, %v3046
    %3051 = vadd.xlane.f32.xlu0 %v3050
    %v3052 = vpop.xlane.xlu0 %3051
    %v3053 = vrcp.pop 256.0
    %v3054 = vmul.f32 %v3049, %v3053
    %v3055 = vmul.f32 %v3052, %v3053
    %v3056 = vadd.f32 %v3054, 1e-05
    %v3057 = vadd.f32 %v3055, 1e-05
    %v3058 = vrsqrt.pop %v3056
    %v3059 = vrsqrt.pop %v3057
    %v3060 = vmul.f32 %v3039, %v3058
    %v3061 = vmul.f32 %v3040, %v3058
    %v3062 = vmul.f32 %v3041, %v3059
    %v3063 = vmul.f32 %v3042, %v3059
    %v3064 = vld [vmem:[%s14] sm:$0x3]
    %v3066 = vlaneseq
    %v3067 = vshrl.u32 %v3066, 7
    %v3068 = vsub.s32 0, %v3067
    %v3069 = vrot.slane %v3064, %v3068
    %v3070 = vlaneseq
    %v3071 = vshrl.u32 %v3070, 7
    %v3072 = vsub.s32 1, %v3071
    %v3073 = vrot.slane %v3064, %v3072
    %v3076 = vmul.f32 %v3060, %v3069
    %v3077 = vmul.f32 %v3061, %v3073
    %v3078 = vmul.f32 %v3062, %v3069
    %v3079 = vmul.f32 %v3063, %v3073
    %v3080 = vpack.c.bf16 %v3078, %v3076
    %v3081 = vpack.c.bf16 %v3079, %v3077
    %v3082 = vld [vmem:[%s15] sm:$0xf]
    %v3083 = vld [vmem:[%s15 + $0x4] sm:$0xf]
    %v3084 = vld [vmem:[%s15 + $0x8] sm:$0xf]
    %v3085 = vld [vmem:[%s15 + $0xc] sm:$0xf]
    %v3086 = vld [vmem:[%s15 + $0x10] sm:$0xf]
    %v3087 = vld [vmem:[%s15 + $0x14] sm:$0xf]
    %v3088 = vld [vmem:[%s15 + $0x18] sm:$0xf]
    %v3089 = vld [vmem:[%s15 + $0x1c] sm:$0xf]
    %v3090 = vld [vmem:[%s15 + $0x20] sm:$0xf]
    %v3091 = vld [vmem:[%s15 + $0x24] sm:$0xf]
    %v3092 = vld [vmem:[%s15 + $0x28] sm:$0xf]
    %v3093 = vld [vmem:[%s15 + $0x2c] sm:$0xf]
    %v3094 = vld [vmem:[%s15 + $0x30] sm:$0xf]
    %v3095 = vld [vmem:[%s15 + $0x34] sm:$0xf]
    %v3096 = vld [vmem:[%s15 + $0x38] sm:$0xf]
    %v3097 = vld [vmem:[%s15 + $0x3c] sm:$0xf]
    %v3098 = vld [vmem:[%s15 + $0x40] sm:$0xf]
    %v3099 = vld [vmem:[%s15 + $0x44] sm:$0xf]
    %v3100 = vld [vmem:[%s15 + $0x48] sm:$0xf]
    %v3101 = vld [vmem:[%s15 + $0x4c] sm:$0xf]
    %v3102 = vld [vmem:[%s15 + $0x50] sm:$0xf]
    %v3103 = vld [vmem:[%s15 + $0x54] sm:$0xf]
    %v3104 = vld [vmem:[%s15 + $0x58] sm:$0xf]
    %v3105 = vld [vmem:[%s15 + $0x5c] sm:$0xf]
    %v3106 = vld [vmem:[%s15 + $0x60] sm:$0xf]
    %v3107 = vld [vmem:[%s15 + $0x64] sm:$0xf]
    %v3108 = vld [vmem:[%s15 + $0x68] sm:$0xf]
    %v3109 = vld [vmem:[%s15 + $0x6c] sm:$0xf]
    %v3110 = vld [vmem:[%s15 + $0x70] sm:$0xf]
    %v3111 = vld [vmem:[%s15 + $0x74] sm:$0xf]
    %v3112 = vld [vmem:[%s15 + $0x78] sm:$0xf]
    %v3113 = vld [vmem:[%s15 + $0x7c] sm:$0xf]
    %v3114 = vld [vmem:[%s16] sm:$0x1]
    %v3116 = vlaneseq
    %v3117 = vshrl.u32 %v3116, 7
    %v3118 = vsub.s32 0, %v3117
    %v3119 = vrot.slane %v3114, %v3118
    %v3153 = vunpack.c.l.b16 %v3082
    %v3154 = vunpack.c.l.b16 %v3083
    %v3155 = vunpack.c.l.b16 %v3084
    %v3156 = vunpack.c.l.b16 %v3085
    %v3157 = vunpack.c.l.b16 %v3086
    %v3158 = vunpack.c.l.b16 %v3087
    %v3159 = vunpack.c.l.b16 %v3088
    %v3160 = vunpack.c.l.b16 %v3089
    %v3161 = vunpack.c.l.b16 %v3090
    %v3162 = vunpack.c.l.b16 %v3091
    %v3163 = vunpack.c.l.b16 %v3092
    %v3164 = vunpack.c.l.b16 %v3093
    %v3165 = vunpack.c.l.b16 %v3094
    %v3166 = vunpack.c.l.b16 %v3095
    %v3167 = vunpack.c.l.b16 %v3096
    %v3168 = vunpack.c.l.b16 %v3097
    %v3169 = vunpack.c.l.b16 %v3098
    %v3170 = vunpack.c.l.b16 %v3099
    %v3171 = vunpack.c.l.b16 %v3100
    %v3172 = vunpack.c.l.b16 %v3101
    %v3173 = vunpack.c.l.b16 %v3102
    %v3174 = vunpack.c.l.b16 %v3103
    %v3175 = vunpack.c.l.b16 %v3104
    %v3176 = vunpack.c.l.b16 %v3105
    %v3177 = vunpack.c.l.b16 %v3106
    %v3178 = vunpack.c.l.b16 %v3107
    %v3179 = vunpack.c.l.b16 %v3108
    %v3180 = vunpack.c.l.b16 %v3109
    %v3181 = vunpack.c.l.b16 %v3110
    %v3182 = vunpack.c.l.b16 %v3111
    %v3183 = vunpack.c.l.b16 %v3112
    %v3184 = vunpack.c.l.b16 %v3113
    %v3185 = vpack.c.b16 %v3154, %v3153
    %v3186 = vpack.c.b16 %v3156, %v3155
    %v3187 = vpack.c.b16 %v3158, %v3157
    %v3188 = vpack.c.b16 %v3160, %v3159
    %v3189 = vpack.c.b16 %v3162, %v3161
    %v3190 = vpack.c.b16 %v3164, %v3163
    %v3191 = vpack.c.b16 %v3166, %v3165
    %v3192 = vpack.c.b16 %v3168, %v3167
    %v3193 = vpack.c.b16 %v3170, %v3169
    %v3194 = vpack.c.b16 %v3172, %v3171
    %v3195 = vpack.c.b16 %v3174, %v3173
    %v3196 = vpack.c.b16 %v3176, %v3175
    %v3197 = vpack.c.b16 %v3178, %v3177
    %v3198 = vpack.c.b16 %v3180, %v3179
    %v3199 = vpack.c.b16 %v3182, %v3181
    %v3200 = vpack.c.b16 %v3184, %v3183
    %3217 = vmatprep.subr.bf16.mxu0 0
    %3218 = vmatpush1.bf16.msra.mxu0 %v3185
    %3219 = vmatprep.subr.bf16.mxu0 0
    %3220 = vmatpush1.bf16.msra.mxu0 %v3186
    %3221 = vmatprep.subr.bf16.mxu0 0
    %3222 = vmatpush1.bf16.msra.mxu0 %v3187
    %3223 = vmatprep.subr.bf16.mxu0 0
    %3224 = vmatpush1.bf16.msra.mxu0 %v3188
    %3225 = vmatprep.subr.bf16.mxu0 0
    %3226 = vmatpush1.bf16.msra.mxu0 %v3189
    %3227 = vmatprep.subr.bf16.mxu0 0
    %3228 = vmatpush1.bf16.msra.mxu0 %v3190
    %3229 = vmatprep.subr.bf16.mxu0 0
    %3230 = vmatpush1.bf16.msra.mxu0 %v3191
    %3231 = vmatprep.subr.bf16.mxu0 0
    %3232 = vmatpush1.bf16.msra.mxu0 %v3192
    %3233 = vmatprep.subr.bf16.mxu0 0
    %3234 = vmatpush1.bf16.msra.mxu0 %v3193
    %3235 = vmatprep.subr.bf16.mxu0 0
    %3236 = vmatpush1.bf16.msra.mxu0 %v3194
    %3237 = vmatprep.subr.bf16.mxu0 0
    %3238 = vmatpush1.bf16.msra.mxu0 %v3195
    %3239 = vmatprep.subr.bf16.mxu0 0
    %3240 = vmatpush1.bf16.msra.mxu0 %v3196
    %3241 = vmatprep.subr.bf16.mxu0 0
    %3242 = vmatpush1.bf16.msra.mxu0 %v3197
    %3243 = vmatprep.subr.bf16.mxu0 0
    %3244 = vmatpush1.bf16.msra.mxu0 %v3198
    %3245 = vmatprep.subr.bf16.mxu0 0
    %3246 = vmatpush1.bf16.msra.mxu0 %v3199
    %3247 = vmatprep.subr.bf16.mxu0 0
    %3248 = vmatpush1.bf16.msra.mxu0 %v3200
    %3249 = vmatprep.mubr.bf16.mxu0 %v3081
    %3250 = vmatmul.mubr.bf16.gmra.mrb[0].mxu0 %v3080
    %v3251 = vpop.f32.mrb[0].mxu0
    %v3252 = vadd.f32 %v3119, %v3251
    %v3253 = vpop.f32.mrb[0].mxu0
    %v3254 = vpop.f32.mrb[0].mxu0
    %v3255 = vadd.f32 %v3119, %v3254
    %v3256 = vpop.f32.mrb[0].mxu0
    %3257 = vdwg.mxu0
    %v3258 = vld [vmem:[%s17] sm:$0x1]
    %v3260 = vlaneseq
    %v3261 = vshrl.u32 %v3260, 7
    %v3262 = vsub.s32 0, %v3261
    %v3263 = vrot.slane %v3258, %v3262
    %v3265 = vmul.f32 %v3252, %v3263
    %v3266 = vmul.f32 %v3255, %v3263
    %3267 = vadd.xlane.f32.xlu0 %v3265
    %v3268 = vpop.xlane.xlu0 %3267
    %3269 = vadd.xlane.f32.xlu0 %v3266
    %v3270 = vpop.xlane.xlu0 %3269
    %v3271 = vld [vmem:[#allocation3] sm:$0x1]
    %v3273 = vlaneseq
    %v3274 = vshrl.u32 %v3273, 7
    %v3275 = vsub.s32 0, %v3274
    %v3276 = vrot.slane %v3271, %v3275
    %v3278 = vadd.f32 %v3268, %v3276
    %v3279 = vadd.f32 %v3270, %v3276
    %vm3280 = vcmask 7168
    %v3281 = vsel %vm3280, %v3278, -inf
    %v3282 = vrot.slane %v3281, 4
    %v3283 = vmax.f32 %v3281, %v3282
    %v3284 = vrot.slane %v3283, 2
    %v3285 = vmax.f32 %v3283, %v3284
    %v3286 = vrot.slane %v3285, 1
    %v3287 = vmax.f32 %v3285, %v3286
    %v3288 = vsel %vm3280, %v3279, -inf
    %v3289 = vrot.slane %v3288, 4
    %v3290 = vmax.f32 %v3288, %v3289
    %v3291 = vrot.slane %v3290, 2
    %v3292 = vmax.f32 %v3290, %v3291
    %v3293 = vrot.slane %v3292, 1
    %v3294 = vmax.f32 %v3292, %v3293
    %v3295 = vsub.f32 %v3278, %v3287
    %v3296 = vsub.f32 %v3279, %v3294
    %v3297 = vmul.f32 %v3295, 1.442695
    %v3298 = vpow.pop %v3297
    %v3299 = vmul.f32 %v3296, 1.442695
    %v3300 = vpow.pop %v3299
    %v3301 = vsel %vm3280, %v3298, 0.0
    %v3302 = vrot.slane %v3301, 4
    %v3303 = vadd.f32 %v3301, %v3302
    %v3304 = vrot.slane %v3303, 2
    %v3305 = vadd.f32 %v3303, %v3304
    %v3306 = vrot.slane %v3305, 1
    %v3307 = vadd.f32 %v3305, %v3306
    %v3308 = vsel %vm3280, %v3300, 0.0
    %v3309 = vrot.slane %v3308, 4
    %v3310 = vadd.f32 %v3308, %v3309
    %v3311 = vrot.slane %v3310, 2
    %v3312 = vadd.f32 %v3310, %v3311
    %v3313 = vrot.slane %v3312, 1
    %v3314 = vadd.f32 %v3312, %v3313
    %v3315 = vrcp.pop %v3307
    %v3316 = vmul.f32 %v3298, %v3315
    %v3317 = vrcp.pop %v3314
    %v3318 = vmul.f32 %v3300, %v3317
    %3320 = vset.pattern.permute.xlu0 0
    %3321 = vperm.xlu0 %3320, %v3316
    %v3322 = vpop.permute.xlu0 %3321
    %3325 = vset.pattern.permute.xlu0 0
    %3326 = vperm.xlu0 %3325, %v3318
    %v3327 = vpop.permute.xlu0 %3326
    %v3329 = vmul.f32 %v3252, %v3322
    %v3330 = vmul.f32 %v3255, %v3327
    %v3331 = vrot.slane %v3329, 4
    %v3332 = vadd.f32 %v3329, %v3331
    %v3333 = vrot.slane %v3332, 2
    %v3334 = vadd.f32 %v3332, %v3333
    %v3335 = vrot.slane %v3334, 1
    %v3336 = vadd.f32 %v3334, %v3335
    %v3337 = vrot.slane %v3330, 4
    %v3338 = vadd.f32 %v3330, %v3337
    %v3339 = vrot.slane %v3338, 2
    %v3340 = vadd.f32 %v3338, %v3339
    %v3341 = vrot.slane %v3340, 1
    %v3342 = vadd.f32 %v3340, %v3341
    %v3343 = vpack.c.bf16 %v3336, %v3336
    %v3344 = vpack.c.bf16 %v3342, %v3342
    %v3345 = vld [vmem:[%s19] sm:$0xff]
    %v3346 = vld [vmem:[%s19 + $0x8] sm:$0xff]
    %v3347 = vld [vmem:[%s19 + $0x10] sm:$0xff]
    %v3348 = vld [vmem:[%s19 + $0x18] sm:$0xff]
    %v3349 = vld [vmem:[%s19 + $0x20] sm:$0xff]
    %v3350 = vld [vmem:[%s19 + $0x28] sm:$0xff]
    %v3351 = vld [vmem:[%s19 + $0x30] sm:$0xff]
    %v3352 = vld [vmem:[%s19 + $0x38] sm:$0xff]
    %v3353 = vld [vmem:[%s19 + $0x40] sm:$0xff]
    %v3354 = vld [vmem:[%s19 + $0x48] sm:$0xff]
    %v3355 = vld [vmem:[%s19 + $0x50] sm:$0xff]
    %v3356 = vld [vmem:[%s19 + $0x58] sm:$0xff]
    %v3357 = vld [vmem:[%s19 + $0x60] sm:$0xff]
    %v3358 = vld [vmem:[%s19 + $0x68] sm:$0xff]
    %v3359 = vld [vmem:[%s19 + $0x70] sm:$0xff]
    %v3360 = vld [vmem:[%s19 + $0x78] sm:$0xff]
    %v3361 = vld [vmem:[%s20] sm:$0x3]
    %v3363 = vlaneseq
    %v3364 = vshrl.u32 %v3363, 7
    %v3365 = vsub.s32 0, %v3364
    %v3366 = vrot.slane %v3361, %v3365
    %v3367 = vlaneseq
    %v3368 = vshrl.u32 %v3367, 7
    %v3369 = vsub.s32 1, %v3368
    %v3370 = vrot.slane %v3361, %v3369
    %v3375 = vunpack.c.l.b16 %v3343
    %v3376 = vunpack.c.l.b16 %v3344
    %v3377 = vsel %vm2069, %v3376, %v3375
    %v3378 = vpack.c.b16 %v3377, %v3377
    %v3396 = vunpack.c.l.b16 %v3345
    %v3397 = vunpack.c.h.b16 %v3345
    %v3398 = vunpack.c.l.b16 %v3346
    %v3399 = vunpack.c.h.b16 %v3346
    %v3400 = vunpack.c.l.b16 %v3347
    %v3401 = vunpack.c.h.b16 %v3347
    %v3402 = vunpack.c.l.b16 %v3348
    %v3403 = vunpack.c.h.b16 %v3348
    %v3404 = vunpack.c.l.b16 %v3349
    %v3405 = vunpack.c.h.b16 %v3349
    %v3406 = vunpack.c.l.b16 %v3350
    %v3407 = vunpack.c.h.b16 %v3350
    %v3408 = vunpack.c.l.b16 %v3351
    %v3409 = vunpack.c.h.b16 %v3351
    %v3410 = vunpack.c.l.b16 %v3352
    %v3411 = vunpack.c.h.b16 %v3352
    %v3412 = vunpack.c.l.b16 %v3353
    %v3413 = vunpack.c.h.b16 %v3353
    %v3414 = vunpack.c.l.b16 %v3354
    %v3415 = vunpack.c.h.b16 %v3354
    %v3416 = vunpack.c.l.b16 %v3355
    %v3417 = vunpack.c.h.b16 %v3355
    %v3418 = vunpack.c.l.b16 %v3356
    %v3419 = vunpack.c.h.b16 %v3356
    %v3420 = vunpack.c.l.b16 %v3357
    %v3421 = vunpack.c.h.b16 %v3357
    %v3422 = vunpack.c.l.b16 %v3358
    %v3423 = vunpack.c.h.b16 %v3358
    %v3424 = vunpack.c.l.b16 %v3359
    %v3425 = vunpack.c.h.b16 %v3359
    %v3426 = vunpack.c.l.b16 %v3360
    %v3427 = vunpack.c.h.b16 %v3360
    %v3428 = vpack.c.b16 %v3398, %v3396
    %v3429 = vpack.c.b16 %v3399, %v3397
    %v3430 = vpack.c.b16 %v3402, %v3400
    %v3431 = vpack.c.b16 %v3403, %v3401
    %v3432 = vpack.c.b16 %v3406, %v3404
    %v3433 = vpack.c.b16 %v3407, %v3405
    %v3434 = vpack.c.b16 %v3410, %v3408
    %v3435 = vpack.c.b16 %v3411, %v3409
    %v3436 = vpack.c.b16 %v3414, %v3412
    %v3437 = vpack.c.b16 %v3415, %v3413
    %v3438 = vpack.c.b16 %v3418, %v3416
    %v3439 = vpack.c.b16 %v3419, %v3417
    %v3440 = vpack.c.b16 %v3422, %v3420
    %v3441 = vpack.c.b16 %v3423, %v3421
    %v3442 = vpack.c.b16 %v3426, %v3424
    %v3443 = vpack.c.b16 %v3427, %v3425
    %3460 = vmatprep.subr.bf16.mxu0 %v3429
    %3461 = vmatpush1.bf16.msra.mxu0 %v3428
    %3462 = vmatprep.subr.bf16.mxu0 %v3431
    %3463 = vmatpush1.bf16.msra.mxu0 %v3430
    %3464 = vmatprep.subr.bf16.mxu0 %v3433
    %3465 = vmatpush1.bf16.msra.mxu0 %v3432
    %3466 = vmatprep.subr.bf16.mxu0 %v3435
    %3467 = vmatpush1.bf16.msra.mxu0 %v3434
    %3468 = vmatprep.subr.bf16.mxu0 %v3437
    %3469 = vmatpush1.bf16.msra.mxu0 %v3436
    %3470 = vmatprep.subr.bf16.mxu0 %v3439
    %3471 = vmatpush1.bf16.msra.mxu0 %v3438
    %3472 = vmatprep.subr.bf16.mxu0 %v3441
    %3473 = vmatpush1.bf16.msra.mxu0 %v3440
    %3474 = vmatprep.subr.bf16.mxu0 %v3443
    %3475 = vmatpush1.bf16.msra.mxu0 %v3442
    %3476 = vmatprep.subr.bf16.mxu0 0
    %3477 = vmatpush1.bf16.msra.mxu0 0
    %3478 = vmatprep.subr.bf16.mxu0 0
    %3479 = vmatpush1.bf16.msra.mxu0 0
    %3480 = vmatprep.subr.bf16.mxu0 0
    %3481 = vmatpush1.bf16.msra.mxu0 0
    %3482 = vmatprep.subr.bf16.mxu0 0
    %3483 = vmatpush1.bf16.msra.mxu0 0
    %3484 = vmatprep.subr.bf16.mxu0 0
    %3485 = vmatpush1.bf16.msra.mxu0 0
    %3486 = vmatprep.subr.bf16.mxu0 0
    %3487 = vmatpush1.bf16.msra.mxu0 0
    %3488 = vmatprep.subr.bf16.mxu0 0
    %3489 = vmatpush1.bf16.msra.mxu0 0
    %3490 = vmatprep.subr.bf16.mxu0 0
    %3491 = vmatpush1.bf16.msra.mxu0 0
    %3492 = vmatprep.mubr.bf16.mxu0 0
    %3493 = vmatmul.mubr.bf16.gmra.mrb[0].mxu0 %v3378
    %v3494 = vpop.f32.mrb[0].mxu0
    %v3495 = vadd.f32 %v3366, %v3494
    %v3496 = vpop.f32.mrb[0].mxu0
    %v3497 = vadd.f32 %v3370, %v3496
    %v3498 = vpop.f32.mrb[0].mxu0
    %v3499 = vpop.f32.mrb[0].mxu0
    %3500 = vdwg.mxu0
    %v3503 = vcombine.low %v3495, %v3497
    %v3505 = vunpack.c.l.s4 1983009808
    %v3506 = vunpack.c.0.s8 %v3505
    %v3507 = vlaneseq
    %v3508 = vshrl.u32 %v3507, 7
    %v3509 = vsub.s32 %v3506, %v3508
    %v3510 = vrot.slane %v3503, %v3509
    %3512 = vst [vmem:[#allocation4] sm:$0xf] %v3510
    // Predicated region
    $region86: #{forward.1} parent=1 // pred_check
      _
    $region87: #{forward.1} parent=1 // pred_check_branch
      %3514 = sbr.rel (0) target = $region89
    $region88: #{forward.1} parent=1 // pred_region
      %s3516 = ssub.s32 64, 64
      %3517 = vsyncadd [#allocation5], %s3516
      %s3519 = sshll.u32 [#allocation4], 4
      %s3520 = int_to_ptr.vmem [resolvable:$true] %s3519
      %3522 = dma.vmem_to_hbm [thread:$0]  %s3520, 64, %s21, [#allocation5]
    $region89: #{forward.1} parent=1 // pred_fallthru
      _
    // Predicated region
    $region90: #{forward.1} parent=1 // pred_check
      _
    $region91: #{forward.1} parent=1 // pred_check_branch
      %3524 = sbr.rel (0) target = $region93
    $region92: #{forward.1} parent=1 // pred_region
      %3525 = dma.done [#allocation5], 64
    $region93: #{forward.1} parent=1 // pred_fallthru
      _
    %3526 = vsyncpa [#allocation5], 1

</llo_original>
